<compile_context>
chip_gen: v7x
topology: tpu7x:2x2x1
jax: 0.10.0
libtpu: 0.0.40
codegen_flags: <defaults>
</compile_context>

<pallas_src>
import functools

import jax
import jax.numpy as jnp
from jax.experimental import pallas as pl
from jax.experimental.pallas import tpu as pltpu

_VMEM_LIMIT = 32 * 1024 * 1024   # explicit scoped-VMEM budget; safe on v5e/v6e/v7x
_LANES = 128


def _round_up(x, m):
    return (x + m - 1) // m * m


def _compiler_params(semantics):
    return pltpu.CompilerParams(dimension_semantics=semantics,
                                vmem_limit_bytes=_VMEM_LIMIT)


# --------------------- ConvTranspose2d(k=2, s=2) hot path -------------------
def _matmul_bias_kernel(x_ref, w_ref, b_ref, o_ref):
    # x: (TR, Cin) bf16, w: (Cin, 4*Cout_p) bf16, b: (1, 4*Cout_p) f32
    o_ref[...] = (jnp.dot(x_ref[...], w_ref[...],
                          preferred_element_type=jnp.float32)
                  + b_ref[...]).astype(o_ref.dtype)


def conv_transpose_2x2_s2(x_nhwc, w_up, b_up, *, row_tile=256):
    # x_nhwc: (N,H,W,Cin); w_up: (Cin,Cout,2,2) (PyTorch layout); b_up: (Cout,)
    N, H, W, Cin = x_nhwc.shape
    Cout = w_up.shape[1]
    Cout_p = _round_up(Cout, _LANES // 4)     # 4*Cout_p is a multiple of 128 lanes
    C4 = 4 * Cout_p

    R = N * H * W
    TR = row_tile
    R_pad = _round_up(R, TR)
    x_flat = x_nhwc.reshape(R, Cin)
    if R_pad != R:
        x_flat = jnp.pad(x_flat, ((0, R_pad - R), (0, 0)))
    x_flat = x_flat.astype(jnp.bfloat16)

    # (Cin,Cout,2,2) -> (Cin,kh,kw,Cout_p) -> (Cin, 4*Cout_p); columns ordered
    # (kh, kw, c) so the sub-pixel interleave below is a cheap reshape/transpose.
    w = jnp.transpose(w_up, (0, 2, 3, 1))
    w = jnp.pad(w, ((0, 0), (0, 0), (0, 0), (0, Cout_p - Cout)))
    w = w.reshape(Cin, C4).astype(jnp.bfloat16)
    b = jnp.pad(b_up, (0, Cout_p - Cout)).astype(jnp.float32)
    b = jnp.broadcast_to(b, (2, 2, Cout_p)).reshape(1, C4)

    y = pl.pallas_call(
        _matmul_bias_kernel,
        grid=(R_pad // TR,),
        in_specs=[pl.BlockSpec((TR, Cin), lambda i: (i, 0)),
                  pl.BlockSpec((Cin, C4), lambda i: (0, 0)),
                  pl.BlockSpec((1, C4), lambda i: (0, 0))],
        out_specs=pl.BlockSpec((TR, C4), lambda i: (i, 0)),
        out_shape=jax.ShapeDtypeStruct((R_pad, C4), jnp.float32),
        compiler_params=_compiler_params(("parallel",)),
    )(x_flat, w, b)

    # sub-pixel interleave: out[n, 2h+kh, 2w+kw, c]  (XLA layout glue only)
    y = y[:R].reshape(N, H, W, 2, 2, Cout_p)[..., :Cout]
    y = y.transpose(0, 1, 3, 2, 4, 5)          # (N,H,kh,W,kw,Co)
    return y.reshape(N, 2 * H, 2 * W, Cout)


# ------------------- Conv3x3(pad=1) + BatchNorm + ReLU ----------------------
def _conv3x3_stats_kernel(x_ref, w_ref, b_ref, y_ref, sum_ref, sq_ref, patch_ref,
                          *, h_blk, W, Cin):
    # x_ref:     (1, h_blk+2, W+2, Cin) bf16  -- halo'd row block of one image
    # w_ref:     (9*Cin, Cout_p)        bf16  -- im2col-ordered conv weight
    # b_ref:     (1, Cout_p)            f32
    # y_ref:     (1, h_blk*W, Cout_p)   f32   -- pre-BN conv output (lane dense)
    # sum_ref:   (1, 1, Cout_p)         f32   -- per-tile channel partial sum
    # sq_ref:    (1, 1, Cout_p)         f32   -- per-tile channel partial sum-sq
    # patch_ref: VMEM scratch (h_blk*W, 9*Cin) bf16
    x = x_ref[0]
    rows = h_blk * W
    # Build the im2col patch once per tile, then one K=9*Cin MXU matmul.
    for ky in range(3):
        for kx in range(3):
            t = ky * 3 + kx
            patch_ref[:, t * Cin:(t + 1) * Cin] = (
                x[ky:ky + h_blk, kx:kx + W, :].reshape(rows, Cin))
    acc = jnp.dot(patch_ref[...], w_ref[...],
                  preferred_element_type=jnp.float32) + b_ref[...]
    y_ref[0] = acc
    # Partial BatchNorm statistics; reduced to GLOBAL stats in the wrapper so
    # normalization stays exact over all N*H*W rows despite the tiling.
    sum_ref[0] = jnp.sum(acc, axis=0, keepdims=True)
    sq_ref[0] = jnp.sum(acc * acc, axis=0, keepdims=True)


def _bn_relu_kernel(y_ref, scale_ref, shift_ref, o_ref):
    o_ref[...] = jnp.maximum(y_ref[...] * scale_ref[...] + shift_ref[...],
                             0.0).astype(o_ref.dtype)


def _pick_h_block(H, W, target_rows=512):
    # Largest divisor of H whose row-block (h_blk*W rows) stays <= target_rows.
    best = 1
    for d in range(1, H + 1):
        if H % d == 0 and d * W <= target_rows:
            best = d
    return best


def conv3x3_bn_relu(x_nhwc, w_oihw, b, gamma, beta, *, eps=1e-5,
                    out_dtype=jnp.float32, row_tile=256):
    N, H, W, Cin = x_nhwc.shape
    Cout = w_oihw.shape[0]
    Cout_p = _round_up(Cout, _LANES)
    h_blk = _pick_h_block(H, W)
    n_hblk = H // h_blk
    rows_blk = h_blk * W
    G = N * n_hblk

    # Halo'd row blocks, materialized once in the wrapper (XLA layout glue) so
    # every BlockSpec stays non-overlapping while the grid tiles N x H-blocks.
    # TODO(synk): for very large H, fetch the halo'd slab with a manual
    # double-buffered DMA (memory_space=pl.ANY) instead of materializing blocks.
    xp = jnp.pad(x_nhwc, ((0, 0), (1, 1), (1, 1), (0, 0)))
    xb = jnp.stack([xp[:, hb * h_blk:hb * h_blk + h_blk + 2]
                    for hb in range(n_hblk)], axis=1)
    xb = xb.reshape(G, h_blk + 2, W + 2, Cin).astype(jnp.bfloat16)

    # OIHW -> (ky, kx, ci, co) -> (9*Cin, Cout_p); matches the im2col tap order.
    w = jnp.transpose(w_oihw, (2, 3, 1, 0)).reshape(9 * Cin, Cout)
    w = jnp.pad(w, ((0, 0), (0, Cout_p - Cout))).astype(jnp.bfloat16)
    bcol = jnp.pad(b, (0, Cout_p - Cout)).astype(jnp.float32).reshape(1, Cout_p)

    kern = functools.partial(_conv3x3_stats_kernel, h_blk=h_blk, W=W, Cin=Cin)
    y, ssum, ssq = pl.pallas_call(
        kern,
        grid=(G,),
        in_specs=[
            pl.BlockSpec((1, h_blk + 2, W + 2, Cin), lambda g: (g, 0, 0, 0)),
            pl.BlockSpec((9 * Cin, Cout_p), lambda g: (0, 0)),
            pl.BlockSpec((1, Cout_p), lambda g: (0, 0)),
        ],
        out_specs=[
            pl.BlockSpec((1, rows_blk, Cout_p), lambda g: (g, 0, 0)),
            pl.BlockSpec((1, 1, Cout_p), lambda g: (g, 0, 0)),
            pl.BlockSpec((1, 1, Cout_p), lambda g: (g, 0, 0)),
        ],
        out_shape=[
            jax.ShapeDtypeStruct((G, rows_blk, Cout_p), jnp.float32),
            jax.ShapeDtypeStruct((G, 1, Cout_p), jnp.float32),
            jax.ShapeDtypeStruct((G, 1, Cout_p), jnp.float32),
        ],
        scratch_shapes=[pltpu.VMEM((rows_blk, 9 * Cin), jnp.bfloat16)],
        compiler_params=_compiler_params(("parallel",)),
    )(xb, w, bcol)

    # Global training-mode BatchNorm stats (biased variance) over all N*H*W.
    # One-pass E[x^2]-E[x]^2 in f32 (stats are tiny: (Cout_p,)); padded
    # channels have gamma=0/beta=0 so they stay exactly zero.
    count = jnp.float32(N * H * W)
    mean = jnp.sum(ssum, axis=(0, 1)) / count
    var = jnp.maximum(jnp.sum(ssq, axis=(0, 1)) / count - mean * mean, 0.0)
    g = jnp.pad(gamma, (0, Cout_p - Cout)).astype(jnp.float32)
    bt = jnp.pad(beta, (0, Cout_p - Cout)).astype(jnp.float32)
    scale = g * jax.lax.rsqrt(var + eps)
    shift = bt - mean * scale

    # Pass 2: tiled elementwise BN-apply + ReLU on lane-dense rows.
    R = N * H * W
    R_pad = _round_up(R, row_tile)
    yf = y.reshape(R, Cout_p)
    if R_pad != R:
        yf = jnp.pad(yf, ((0, R_pad - R), (0, 0)))
    out = pl.pallas_call(
        _bn_relu_kernel,
        grid=(R_pad // row_tile,),
        in_specs=[pl.BlockSpec((row_tile, Cout_p), lambda i: (i, 0)),
                  pl.BlockSpec((1, Cout_p), lambda i: (0, 0)),
                  pl.BlockSpec((1, Cout_p), lambda i: (0, 0))],
        out_specs=pl.BlockSpec((row_tile, Cout_p), lambda i: (i, 0)),
        out_shape=jax.ShapeDtypeStruct((R_pad, Cout_p), out_dtype),
        compiler_params=_compiler_params(("parallel",)),
    )(yf, scale.reshape(1, Cout_p), shift.reshape(1, Cout_p))
    return out[:R, :Cout].reshape(N, H, W, Cout)


# ------------------------------- UpConv -------------------------------------
@jax.jit
def upconv_forward(params, x1_nchw, x2_nchw):
    x1 = jnp.transpose(x1_nchw, (0, 2, 3, 1))         # NCHW -> NHWC
    x2 = jnp.transpose(x2_nchw, (0, 2, 3, 1))
    up = conv_transpose_2x2_s2(x1, params["w_up"], params["b_up"])
    x = jnp.concatenate([x2, up], axis=-1)            # torch.cat([x2, x1], dim=1)
    # First DoubleConv stage writes bf16 (it is only consumed as bf16 matmul
    # input by the second stage); the final stage returns f32.
    h = conv3x3_bn_relu(x, params["w1"], params["b1"], params["g1"],
                        params["beta1"], out_dtype=jnp.bfloat16)
    h = conv3x3_bn_relu(h, params["w2"], params["b2"], params["g2"],
                        params["beta2"], out_dtype=jnp.float32)
    return jnp.transpose(h, (0, 3, 1, 2))             # NHWC -> NCHW


def init_params(key, in_channels, out_channels):
    ks = jax.random.split(key, 6)
    p = {}
    # ConvTranspose2d weight: (in_ch, out_ch, 2, 2)
    p["w_up"] = 0.1 * jax.random.normal(ks[0], (in_channels, out_channels, 2, 2), jnp.float32)
    p["b_up"] = 0.1 * jax.random.normal(ks[1], (out_channels,), jnp.float32)
    # DoubleConv: Conv2d(in_ch, out_ch, 3) ; Conv2d(out_ch, out_ch, 3)  (OIHW)
    p["w1"] = 0.1 * jax.random.normal(ks[2], (out_channels, in_channels, 3, 3), jnp.float32)
    p["b1"] = 0.1 * jax.random.normal(ks[3], (out_channels,), jnp.float32)
    p["g1"] = jnp.ones((out_channels,), jnp.float32)      # BN gamma init
    p["beta1"] = jnp.zeros((out_channels,), jnp.float32)  # BN beta init
    p["w2"] = 0.1 * jax.random.normal(ks[4], (out_channels, out_channels, 3, 3), jnp.float32)
    p["b2"] = 0.1 * jax.random.normal(ks[5], (out_channels,), jnp.float32)
    p["g2"] = jnp.ones((out_channels,), jnp.float32)
    p["beta2"] = jnp.zeros((out_channels,), jnp.float32)
    return p


if __name__ == "__main__":
    key = jax.random.PRNGKey(0)
    k1, k2, kp = jax.random.split(key, 3)
    in_ch, out_ch = 8, 4                     # U-Net convention: in_ch = 2*out_ch
    # x1: low-res decoder feature (NCHW), x2: skip connection (NCHW)
    x1 = jax.random.normal(k1, (2, in_ch, 8, 8), jnp.float32)
    x2 = jax.random.normal(k2, (2, out_ch, 16, 16), jnp.float32)
    params = init_params(kp, in_ch, out_ch)

    out = upconv_forward(params, x1, x2)
    jax.block_until_ready(out)
    assert out.shape == (2, out_ch, 16, 16), out.shape
    assert bool(jnp.all(jnp.isfinite(out)))
    print("KERNEL_OK")
</pallas_src>

<mosaic_0001>
module attributes {stable_mosaic.version = 11 : i64} {
  func.func @_matmul_bias_kernel(%arg0: i32, %arg1: memref<256x8xbf16, #tpu.memory_space<vmem>>, %arg2: memref<8x128xbf16, #tpu.memory_space<vmem>>, %arg3: memref<1x128xf32, #tpu.memory_space<vmem>>, %arg4: memref<256x128xf32, #tpu.memory_space<vmem>>) attributes {dimension_semantics = [#tpu.dimension_semantics<parallel>], iteration_bounds = array<i64: 1>, scalar_prefetch = 0 : i64, scratch_operands = 0 : i64, tpu.core_type = #tpu.core_type<tc>, window_params = [{transform_indices = @transform_0, window_bounds = array<i64: 256, 8>}, {pipeline_mode = #tpu.pipeline_mode<synchronous>, transform_indices = @transform_1, window_bounds = array<i64: 8, 128>}, {pipeline_mode = #tpu.pipeline_mode<synchronous>, transform_indices = @transform_2, window_bounds = array<i64: 1, 128>}, {transform_indices = @transform_3, window_bounds = array<i64: 256, 128>}]} {
    %c0 = arith.constant 0 : index
    %c0_0 = arith.constant 0 : index
    %0 = vector.load %arg1[%c0, %c0_0] : memref<256x8xbf16, #tpu.memory_space<vmem>>, vector<256x8xbf16>
    %c0_1 = arith.constant 0 : index
    %c0_2 = arith.constant 0 : index
    %1 = vector.load %arg2[%c0_1, %c0_2] : memref<8x128xbf16, #tpu.memory_space<vmem>>, vector<8x128xbf16>
    %cst = arith.constant dense<0.000000e+00> : vector<256x128xf32>
    %2 = tpu.matmul %0, %1, %cst {dimension_numbers = #tpu.dot_dimension_numbers<[1], [0], [0], [1], [0, 0, 1, 1], [], []>} : vector<256x8xbf16>, vector<8x128xbf16>, vector<256x128xf32> -> vector<256x128xf32>
    %c0_3 = arith.constant 0 : index
    %c0_4 = arith.constant 0 : index
    %3 = vector.load %arg3[%c0_3, %c0_4] : memref<1x128xf32, #tpu.memory_space<vmem>>, vector<1x128xf32>
    %4 = vector.broadcast %3 : vector<1x128xf32> to vector<256x128xf32>
    %5 = arith.addf %2, %4 : vector<256x128xf32>
    %c0_5 = arith.constant 0 : index
    %c0_6 = arith.constant 0 : index
    %6 = vector.load %arg4[%c0_5, %c0_6] : memref<256x128xf32, #tpu.memory_space<vmem>>, vector<256x128xf32>
    tpu.vector_store %arg4[%c0_5, %c0_6], %5 {strides = array<i32>} : memref<256x128xf32, #tpu.memory_space<vmem>>, vector<256x128xf32>,
    return
  }
  func.func @transform_0(%arg0: i32) -> (i32, i32) {
    %c0_i32 = arith.constant 0 : i32
    %c0_i32_0 = arith.constant 0 : i32
    return %arg0, %c0_i32 : i32, i32
  }
  func.func @transform_1(%arg0: i32) -> (i32, i32) {
    %c0_i32 = arith.constant 0 : i32
    %c0_i32_0 = arith.constant 0 : i32
    %c0_i32_1 = arith.constant 0 : i32
    return %c0_i32, %c0_i32_0 : i32, i32
  }
  func.func @transform_2(%arg0: i32) -> (i32, i32) {
    %c0_i32 = arith.constant 0 : i32
    %c0_i32_0 = arith.constant 0 : i32
    %c0_i32_1 = arith.constant 0 : i32
    return %c0_i32, %c0_i32_0 : i32, i32
  }
  func.func @transform_3(%arg0: i32) -> (i32, i32) {
    %c0_i32 = arith.constant 0 : i32
    %c0_i32_0 = arith.constant 0 : i32
    return %arg0, %c0_i32 : i32, i32
  }
}

module attributes {stable_mosaic.version = 11 : i64} {
  func.func @_conv3x3_stats_kernel(%arg0: i32, %arg1: memref<1x18x18x8xbf16, #tpu.memory_space<vmem>>, %arg2: memref<72x128xbf16, #tpu.memory_space<vmem>>, %arg3: memref<1x128xf32, #tpu.memory_space<vmem>>, %arg4: memref<1x256x128xf32, #tpu.memory_space<vmem>>, %arg5: memref<1x1x128xf32, #tpu.memory_space<vmem>>, %arg6: memref<1x1x128xf32, #tpu.memory_space<vmem>>, %arg7: memref<256x72xbf16, #tpu.memory_space<vmem>>) attributes {dimension_semantics = [#tpu.dimension_semantics<parallel>], iteration_bounds = array<i64: 2>, scalar_prefetch = 0 : i64, scratch_operands = 1 : i64, tpu.core_type = #tpu.core_type<tc>, window_params = [{transform_indices = @transform_0, window_bounds = array<i64: 1, 18, 18, 8>}, {pipeline_mode = #tpu.pipeline_mode<synchronous>, transform_indices = @transform_1, window_bounds = array<i64: 72, 128>}, {pipeline_mode = #tpu.pipeline_mode<synchronous>, transform_indices = @transform_2, window_bounds = array<i64: 1, 128>}, {transform_indices = @transform_3, window_bounds = array<i64: 1, 256, 128>}, {transform_indices = @transform_4, window_bounds = array<i64: 1, 1, 128>}, {transform_indices = @transform_5, window_bounds = array<i64: 1, 1, 128>}]} {
    %c0 = arith.constant 0 : index
    %c0_0 = arith.constant 0 : index
    %c0_1 = arith.constant 0 : index
    %c0_2 = arith.constant 0 : index
    %0 = vector.load %arg1[%c0, %c0_0, %c0_1, %c0_2] : memref<1x18x18x8xbf16, #tpu.memory_space<vmem>>, vector<1x18x18x8xbf16>
    %1 = vector.shape_cast %0 : vector<1x18x18x8xbf16> to vector<18x18x8xbf16>
    %2 = vector.extract_strided_slice %1 {offsets = [0, 0, 0], sizes = [16, 16, 8], strides = [1, 1, 1]} : vector<18x18x8xbf16> to vector<16x16x8xbf16>
    %3 = vector.shape_cast %2 : vector<16x16x8xbf16> to vector<256x8xbf16>
    %c0_3 = arith.constant 0 : index
    %c0_4 = arith.constant 0 : index
    %4 = vector.load %arg7[%c0_3, %c0_4] : memref<256x72xbf16, #tpu.memory_space<vmem>>, vector<256x8xbf16>
    tpu.vector_store %arg7[%c0_3, %c0_4], %3 {strides = array<i32>} : memref<256x72xbf16, #tpu.memory_space<vmem>>, vector<256x8xbf16>,
    %5 = vector.extract_strided_slice %1 {offsets = [0, 1, 0], sizes = [16, 16, 8], strides = [1, 1, 1]} : vector<18x18x8xbf16> to vector<16x16x8xbf16>
    %6 = vector.shape_cast %5 : vector<16x16x8xbf16> to vector<256x8xbf16>
    %c0_5 = arith.constant 0 : index
    %c8 = arith.constant 8 : index
    %7 = vector.load %arg7[%c0_5, %c8] : memref<256x72xbf16, #tpu.memory_space<vmem>>, vector<256x8xbf16>
    tpu.vector_store %arg7[%c0_5, %c8], %6 {strides = array<i32>} : memref<256x72xbf16, #tpu.memory_space<vmem>>, vector<256x8xbf16>,
    %8 = vector.extract_strided_slice %1 {offsets = [0, 2, 0], sizes = [16, 16, 8], strides = [1, 1, 1]} : vector<18x18x8xbf16> to vector<16x16x8xbf16>
    %9 = vector.shape_cast %8 : vector<16x16x8xbf16> to vector<256x8xbf16>
    %c0_6 = arith.constant 0 : index
    %c16 = arith.constant 16 : index
    %10 = vector.load %arg7[%c0_6, %c16] : memref<256x72xbf16, #tpu.memory_space<vmem>>, vector<256x8xbf16>
    tpu.vector_store %arg7[%c0_6, %c16], %9 {strides = array<i32>} : memref<256x72xbf16, #tpu.memory_space<vmem>>, vector<256x8xbf16>,
    %11 = vector.extract_strided_slice %1 {offsets = [1, 0, 0], sizes = [16, 16, 8], strides = [1, 1, 1]} : vector<18x18x8xbf16> to vector<16x16x8xbf16>
    %12 = vector.shape_cast %11 : vector<16x16x8xbf16> to vector<256x8xbf16>
    %c0_7 = arith.constant 0 : index
    %c24 = arith.constant 24 : index
    %13 = vector.load %arg7[%c0_7, %c24] : memref<256x72xbf16, #tpu.memory_space<vmem>>, vector<256x8xbf16>
    tpu.vector_store %arg7[%c0_7, %c24], %12 {strides = array<i32>} : memref<256x72xbf16, #tpu.memory_space<vmem>>, vector<256x8xbf16>,
    %14 = vector.extract_strided_slice %1 {offsets = [1, 1, 0], sizes = [16, 16, 8], strides = [1, 1, 1]} : vector<18x18x8xbf16> to vector<16x16x8xbf16>
    %15 = vector.shape_cast %14 : vector<16x16x8xbf16> to vector<256x8xbf16>
    %c0_8 = arith.constant 0 : index
    %c32 = arith.constant 32 : index
    %16 = vector.load %arg7[%c0_8, %c32] : memref<256x72xbf16, #tpu.memory_space<vmem>>, vector<256x8xbf16>
    tpu.vector_store %arg7[%c0_8, %c32], %15 {strides = array<i32>} : memref<256x72xbf16, #tpu.memory_space<vmem>>, vector<256x8xbf16>,
    %17 = vector.extract_strided_slice %1 {offsets = [1, 2, 0], sizes = [16, 16, 8], strides = [1, 1, 1]} : vector<18x18x8xbf16> to vector<16x16x8xbf16>
    %18 = vector.shape_cast %17 : vector<16x16x8xbf16> to vector<256x8xbf16>
    %c0_9 = arith.constant 0 : index
    %c40 = arith.constant 40 : index
    %19 = vector.load %arg7[%c0_9, %c40] : memref<256x72xbf16, #tpu.memory_space<vmem>>, vector<256x8xbf16>
    tpu.vector_store %arg7[%c0_9, %c40], %18 {strides = array<i32>} : memref<256x72xbf16, #tpu.memory_space<vmem>>, vector<256x8xbf16>,
    %20 = vector.extract_strided_slice %1 {offsets = [2, 0, 0], sizes = [16, 16, 8], strides = [1, 1, 1]} : vector<18x18x8xbf16> to vector<16x16x8xbf16>
    %21 = vector.shape_cast %20 : vector<16x16x8xbf16> to vector<256x8xbf16>
    %c0_10 = arith.constant 0 : index
    %c48 = arith.constant 48 : index
    %22 = vector.load %arg7[%c0_10, %c48] : memref<256x72xbf16, #tpu.memory_space<vmem>>, vector<256x8xbf16>
    tpu.vector_store %arg7[%c0_10, %c48], %21 {strides = array<i32>} : memref<256x72xbf16, #tpu.memory_space<vmem>>, vector<256x8xbf16>,
    %23 = vector.extract_strided_slice %1 {offsets = [2, 1, 0], sizes = [16, 16, 8], strides = [1, 1, 1]} : vector<18x18x8xbf16> to vector<16x16x8xbf16>
    %24 = vector.shape_cast %23 : vector<16x16x8xbf16> to vector<256x8xbf16>
    %c0_11 = arith.constant 0 : index
    %c56 = arith.constant 56 : index
    %25 = vector.load %arg7[%c0_11, %c56] : memref<256x72xbf16, #tpu.memory_space<vmem>>, vector<256x8xbf16>
    tpu.vector_store %arg7[%c0_11, %c56], %24 {strides = array<i32>} : memref<256x72xbf16, #tpu.memory_space<vmem>>, vector<256x8xbf16>,
    %26 = vector.extract_strided_slice %1 {offsets = [2, 2, 0], sizes = [16, 16, 8], strides = [1, 1, 1]} : vector<18x18x8xbf16> to vector<16x16x8xbf16>
    %27 = vector.shape_cast %26 : vector<16x16x8xbf16> to vector<256x8xbf16>
    %c0_12 = arith.constant 0 : index
    %c64 = arith.constant 64 : index
    %28 = vector.load %arg7[%c0_12, %c64] : memref<256x72xbf16, #tpu.memory_space<vmem>>, vector<256x8xbf16>
    tpu.vector_store %arg7[%c0_12, %c64], %27 {strides = array<i32>} : memref<256x72xbf16, #tpu.memory_space<vmem>>, vector<256x8xbf16>,
    %c0_13 = arith.constant 0 : index
    %c0_14 = arith.constant 0 : index
    %29 = vector.load %arg7[%c0_13, %c0_14] : memref<256x72xbf16, #tpu.memory_space<vmem>>, vector<256x72xbf16>
    %c0_15 = arith.constant 0 : index
    %c0_16 = arith.constant 0 : index
    %30 = vector.load %arg2[%c0_15, %c0_16] : memref<72x128xbf16, #tpu.memory_space<vmem>>, vector<72x128xbf16>
    %cst = arith.constant dense<0.000000e+00> : vector<256x128xf32>
    %31 = tpu.matmul %29, %30, %cst {dimension_numbers = #tpu.dot_dimension_numbers<[1], [0], [0], [1], [0, 0, 1, 1], [], []>} : vector<256x72xbf16>, vector<72x128xbf16>, vector<256x128xf32> -> vector<256x128xf32>
    %c0_17 = arith.constant 0 : index
    %c0_18 = arith.constant 0 : index
    %32 = vector.load %arg3[%c0_17, %c0_18] : memref<1x128xf32, #tpu.memory_space<vmem>>, vector<1x128xf32>
    %33 = vector.broadcast %32 : vector<1x128xf32> to vector<256x128xf32>
    %34 = arith.addf %31, %33 : vector<256x128xf32>
    %c0_19 = arith.constant 0 : index
    %c0_20 = arith.constant 0 : index
    %c0_21 = arith.constant 0 : index
    %35 = vector.load %arg4[%c0_19, %c0_20, %c0_21] : memref<1x256x128xf32, #tpu.memory_space<vmem>>, vector<1x256x128xf32>
    %36 = vector.shape_cast %35 : vector<1x256x128xf32> to vector<256x128xf32>
    %37 = vector.shape_cast %34 : vector<256x128xf32> to vector<1x256x128xf32>
    tpu.vector_store %arg4[%c0_19, %c0_20, %c0_21], %37 {strides = array<i32>} : memref<1x256x128xf32, #tpu.memory_space<vmem>>, vector<1x256x128xf32>,
    %cst_22 = arith.constant dense<0.000000e+00> : vector<128xf32>
    %38 = vector.multi_reduction <add>, %34, %cst_22 [0] : vector<256x128xf32> to vector<128xf32>
    %39 = vector.shape_cast %38 : vector<128xf32> to vector<1x128xf32>
    %c0_23 = arith.constant 0 : index
    %c0_24 = arith.constant 0 : index
    %c0_25 = arith.constant 0 : index
    %40 = vector.load %arg5[%c0_23, %c0_24, %c0_25] : memref<1x1x128xf32, #tpu.memory_space<vmem>>, vector<1x1x128xf32>
    %41 = vector.shape_cast %40 : vector<1x1x128xf32> to vector<1x128xf32>
    %42 = vector.shape_cast %39 : vector<1x128xf32> to vector<1x1x128xf32>
    tpu.vector_store %arg5[%c0_23, %c0_24, %c0_25], %42 {strides = array<i32>} : memref<1x1x128xf32, #tpu.memory_space<vmem>>, vector<1x1x128xf32>,
    %43 = arith.mulf %34, %34 : vector<256x128xf32>
    %cst_26 = arith.constant dense<0.000000e+00> : vector<128xf32>
    %44 = vector.multi_reduction <add>, %43, %cst_26 [0] : vector<256x128xf32> to vector<128xf32>
    %45 = vector.shape_cast %44 : vector<128xf32> to vector<1x128xf32>
    %c0_27 = arith.constant 0 : index
    %c0_28 = arith.constant 0 : index
    %c0_29 = arith.constant 0 : index
    %46 = vector.load %arg6[%c0_27, %c0_28, %c0_29] : memref<1x1x128xf32, #tpu.memory_space<vmem>>, vector<1x1x128xf32>
    %47 = vector.shape_cast %46 : vector<1x1x128xf32> to vector<1x128xf32>
    %48 = vector.shape_cast %45 : vector<1x128xf32> to vector<1x1x128xf32>
    tpu.vector_store %arg6[%c0_27, %c0_28, %c0_29], %48 {strides = array<i32>} : memref<1x1x128xf32, #tpu.memory_space<vmem>>, vector<1x1x128xf32>,
    return
  }
  func.func @transform_0(%arg0: i32) -> (i32, i32, i32, i32) {
    %c0_i32 = arith.constant 0 : i32
    %c0_i32_0 = arith.constant 0 : i32
    %c0_i32_1 = arith.constant 0 : i32
    %c0_i32_2 = arith.constant 0 : i32
    return %arg0, %c0_i32, %c0_i32_0, %c0_i32_1 : i32, i32, i32, i32
  }
  func.func @transform_1(%arg0: i32) -> (i32, i32) {
    %c0_i32 = arith.constant 0 : i32
    %c0_i32_0 = arith.constant 0 : i32
    %c0_i32_1 = arith.constant 0 : i32
    return %c0_i32, %c0_i32_0 : i32, i32
  }
  func.func @transform_2(%arg0: i32) -> (i32, i32) {
    %c0_i32 = arith.constant 0 : i32
    %c0_i32_0 = arith.constant 0 : i32
    %c0_i32_1 = arith.constant 0 : i32
    return %c0_i32, %c0_i32_0 : i32, i32
  }
  func.func @transform_3(%arg0: i32) -> (i32, i32, i32) {
    %c0_i32 = arith.constant 0 : i32
    %c0_i32_0 = arith.constant 0 : i32
    %c0_i32_1 = arith.constant 0 : i32
    return %arg0, %c0_i32, %c0_i32_0 : i32, i32, i32
  }
  func.func @transform_4(%arg0: i32) -> (i32, i32, i32) {
    %c0_i32 = arith.constant 0 : i32
    %c0_i32_0 = arith.constant 0 : i32
    %c0_i32_1 = arith.constant 0 : i32
    return %arg0, %c0_i32, %c0_i32_0 : i32, i32, i32
  }
  func.func @transform_5(%arg0: i32) -> (i32, i32, i32) {
    %c0_i32 = arith.constant 0 : i32
    %c0_i32_0 = arith.constant 0 : i32
    %c0_i32_1 = arith.constant 0 : i32
    return %arg0, %c0_i32, %c0_i32_0 : i32, i32, i32
  }
}

module attributes {stable_mosaic.version = 11 : i64} {
  func.func @_bn_relu_kernel(%arg0: i32, %arg1: memref<256x128xf32, #tpu.memory_space<vmem>>, %arg2: memref<1x128xf32, #tpu.memory_space<vmem>>, %arg3: memref<1x128xf32, #tpu.memory_space<vmem>>, %arg4: memref<256x128xbf16, #tpu.memory_space<vmem>>) attributes {dimension_semantics = [#tpu.dimension_semantics<parallel>], iteration_bounds = array<i64: 2>, scalar_prefetch = 0 : i64, scratch_operands = 0 : i64, tpu.core_type = #tpu.core_type<tc>, window_params = [{transform_indices = @transform_0, window_bounds = array<i64: 256, 128>}, {pipeline_mode = #tpu.pipeline_mode<synchronous>, transform_indices = @transform_1, window_bounds = array<i64: 1, 128>}, {pipeline_mode = #tpu.pipeline_mode<synchronous>, transform_indices = @transform_2, window_bounds = array<i64: 1, 128>}, {transform_indices = @transform_3, window_bounds = array<i64: 256, 128>}]} {
    %c0 = arith.constant 0 : index
    %c0_0 = arith.constant 0 : index
    %0 = vector.load %arg1[%c0, %c0_0] : memref<256x128xf32, #tpu.memory_space<vmem>>, vector<256x128xf32>
    %c0_1 = arith.constant 0 : index
    %c0_2 = arith.constant 0 : index
    %1 = vector.load %arg2[%c0_1, %c0_2] : memref<1x128xf32, #tpu.memory_space<vmem>>, vector<1x128xf32>
    %2 = vector.broadcast %1 : vector<1x128xf32> to vector<256x128xf32>
    %3 = arith.mulf %0, %2 : vector<256x128xf32>
    %c0_3 = arith.constant 0 : index
    %c0_4 = arith.constant 0 : index
    %4 = vector.load %arg3[%c0_3, %c0_4] : memref<1x128xf32, #tpu.memory_space<vmem>>, vector<1x128xf32>
    %5 = vector.broadcast %4 : vector<1x128xf32> to vector<256x128xf32>
    %6 = arith.addf %3, %5 : vector<256x128xf32>
    %cst = arith.constant 0.000000e+00 : f32
    %7 = vector.broadcast %cst : f32 to vector<256x128xf32>
    %8 = arith.maximumf %6, %7 : vector<256x128xf32>
    %9 = arith.truncf %8 : vector<256x128xf32> to vector<256x128xbf16>
    %c0_5 = arith.constant 0 : index
    %c0_6 = arith.constant 0 : index
    %10 = vector.load %arg4[%c0_5, %c0_6] : memref<256x128xbf16, #tpu.memory_space<vmem>>, vector<256x128xbf16>
    tpu.vector_store %arg4[%c0_5, %c0_6], %9 {strides = array<i32>} : memref<256x128xbf16, #tpu.memory_space<vmem>>, vector<256x128xbf16>,
    return
  }
  func.func @transform_0(%arg0: i32) -> (i32, i32) {
    %c0_i32 = arith.constant 0 : i32
    %c0_i32_0 = arith.constant 0 : i32
    return %arg0, %c0_i32 : i32, i32
  }
  func.func @transform_1(%arg0: i32) -> (i32, i32) {
    %c0_i32 = arith.constant 0 : i32
    %c0_i32_0 = arith.constant 0 : i32
    %c0_i32_1 = arith.constant 0 : i32
    return %c0_i32, %c0_i32_0 : i32, i32
  }
  func.func @transform_2(%arg0: i32) -> (i32, i32) {
    %c0_i32 = arith.constant 0 : i32
    %c0_i32_0 = arith.constant 0 : i32
    %c0_i32_1 = arith.constant 0 : i32
    return %c0_i32, %c0_i32_0 : i32, i32
  }
  func.func @transform_3(%arg0: i32) -> (i32, i32) {
    %c0_i32 = arith.constant 0 : i32
    %c0_i32_0 = arith.constant 0 : i32
    return %arg0, %c0_i32 : i32, i32
  }
}

module attributes {stable_mosaic.version = 11 : i64} {
  func.func @_conv3x3_stats_kernel(%arg0: i32, %arg1: memref<1x18x18x4xbf16, #tpu.memory_space<vmem>>, %arg2: memref<36x128xbf16, #tpu.memory_space<vmem>>, %arg3: memref<1x128xf32, #tpu.memory_space<vmem>>, %arg4: memref<1x256x128xf32, #tpu.memory_space<vmem>>, %arg5: memref<1x1x128xf32, #tpu.memory_space<vmem>>, %arg6: memref<1x1x128xf32, #tpu.memory_space<vmem>>, %arg7: memref<256x36xbf16, #tpu.memory_space<vmem>>) attributes {dimension_semantics = [#tpu.dimension_semantics<parallel>], iteration_bounds = array<i64: 2>, scalar_prefetch = 0 : i64, scratch_operands = 1 : i64, tpu.core_type = #tpu.core_type<tc>, window_params = [{transform_indices = @transform_0, window_bounds = array<i64: 1, 18, 18, 4>}, {pipeline_mode = #tpu.pipeline_mode<synchronous>, transform_indices = @transform_1, window_bounds = array<i64: 36, 128>}, {pipeline_mode = #tpu.pipeline_mode<synchronous>, transform_indices = @transform_2, window_bounds = array<i64: 1, 128>}, {transform_indices = @transform_3, window_bounds = array<i64: 1, 256, 128>}, {transform_indices = @transform_4, window_bounds = array<i64: 1, 1, 128>}, {transform_indices = @transform_5, window_bounds = array<i64: 1, 1, 128>}]} {
    %c0 = arith.constant 0 : index
    %c0_0 = arith.constant 0 : index
    %c0_1 = arith.constant 0 : index
    %c0_2 = arith.constant 0 : index
    %0 = vector.load %arg1[%c0, %c0_0, %c0_1, %c0_2] : memref<1x18x18x4xbf16, #tpu.memory_space<vmem>>, vector<1x18x18x4xbf16>
    %1 = vector.shape_cast %0 : vector<1x18x18x4xbf16> to vector<18x18x4xbf16>
    %2 = vector.extract_strided_slice %1 {offsets = [0, 0, 0], sizes = [16, 16, 4], strides = [1, 1, 1]} : vector<18x18x4xbf16> to vector<16x16x4xbf16>
    %3 = vector.shape_cast %2 : vector<16x16x4xbf16> to vector<256x4xbf16>
    %c0_3 = arith.constant 0 : index
    %c0_4 = arith.constant 0 : index
    %4 = vector.load %arg7[%c0_3, %c0_4] : memref<256x36xbf16, #tpu.memory_space<vmem>>, vector<256x4xbf16>
    tpu.vector_store %arg7[%c0_3, %c0_4], %3 {strides = array<i32>} : memref<256x36xbf16, #tpu.memory_space<vmem>>, vector<256x4xbf16>,
    %5 = vector.extract_strided_slice %1 {offsets = [0, 1, 0], sizes = [16, 16, 4], strides = [1, 1, 1]} : vector<18x18x4xbf16> to vector<16x16x4xbf16>
    %6 = vector.shape_cast %5 : vector<16x16x4xbf16> to vector<256x4xbf16>
    %c0_5 = arith.constant 0 : index
    %c4 = arith.constant 4 : index
    %7 = vector.load %arg7[%c0_5, %c4] : memref<256x36xbf16, #tpu.memory_space<vmem>>, vector<256x4xbf16>
    tpu.vector_store %arg7[%c0_5, %c4], %6 {strides = array<i32>} : memref<256x36xbf16, #tpu.memory_space<vmem>>, vector<256x4xbf16>,
    %8 = vector.extract_strided_slice %1 {offsets = [0, 2, 0], sizes = [16, 16, 4], strides = [1, 1, 1]} : vector<18x18x4xbf16> to vector<16x16x4xbf16>
    %9 = vector.shape_cast %8 : vector<16x16x4xbf16> to vector<256x4xbf16>
    %c0_6 = arith.constant 0 : index
    %c8 = arith.constant 8 : index
    %10 = vector.load %arg7[%c0_6, %c8] : memref<256x36xbf16, #tpu.memory_space<vmem>>, vector<256x4xbf16>
    tpu.vector_store %arg7[%c0_6, %c8], %9 {strides = array<i32>} : memref<256x36xbf16, #tpu.memory_space<vmem>>, vector<256x4xbf16>,
    %11 = vector.extract_strided_slice %1 {offsets = [1, 0, 0], sizes = [16, 16, 4], strides = [1, 1, 1]} : vector<18x18x4xbf16> to vector<16x16x4xbf16>
    %12 = vector.shape_cast %11 : vector<16x16x4xbf16> to vector<256x4xbf16>
    %c0_7 = arith.constant 0 : index
    %c12 = arith.constant 12 : index
    %13 = vector.load %arg7[%c0_7, %c12] : memref<256x36xbf16, #tpu.memory_space<vmem>>, vector<256x4xbf16>
    tpu.vector_store %arg7[%c0_7, %c12], %12 {strides = array<i32>} : memref<256x36xbf16, #tpu.memory_space<vmem>>, vector<256x4xbf16>,
    %14 = vector.extract_strided_slice %1 {offsets = [1, 1, 0], sizes = [16, 16, 4], strides = [1, 1, 1]} : vector<18x18x4xbf16> to vector<16x16x4xbf16>
    %15 = vector.shape_cast %14 : vector<16x16x4xbf16> to vector<256x4xbf16>
    %c0_8 = arith.constant 0 : index
    %c16 = arith.constant 16 : index
    %16 = vector.load %arg7[%c0_8, %c16] : memref<256x36xbf16, #tpu.memory_space<vmem>>, vector<256x4xbf16>
    tpu.vector_store %arg7[%c0_8, %c16], %15 {strides = array<i32>} : memref<256x36xbf16, #tpu.memory_space<vmem>>, vector<256x4xbf16>,
    %17 = vector.extract_strided_slice %1 {offsets = [1, 2, 0], sizes = [16, 16, 4], strides = [1, 1, 1]} : vector<18x18x4xbf16> to vector<16x16x4xbf16>
    %18 = vector.shape_cast %17 : vector<16x16x4xbf16> to vector<256x4xbf16>
    %c0_9 = arith.constant 0 : index
    %c20 = arith.constant 20 : index
    %19 = vector.load %arg7[%c0_9, %c20] : memref<256x36xbf16, #tpu.memory_space<vmem>>, vector<256x4xbf16>
    tpu.vector_store %arg7[%c0_9, %c20], %18 {strides = array<i32>} : memref<256x36xbf16, #tpu.memory_space<vmem>>, vector<256x4xbf16>,
    %20 = vector.extract_strided_slice %1 {offsets = [2, 0, 0], sizes = [16, 16, 4], strides = [1, 1, 1]} : vector<18x18x4xbf16> to vector<16x16x4xbf16>
    %21 = vector.shape_cast %20 : vector<16x16x4xbf16> to vector<256x4xbf16>
    %c0_10 = arith.constant 0 : index
    %c24 = arith.constant 24 : index
    %22 = vector.load %arg7[%c0_10, %c24] : memref<256x36xbf16, #tpu.memory_space<vmem>>, vector<256x4xbf16>
    tpu.vector_store %arg7[%c0_10, %c24], %21 {strides = array<i32>} : memref<256x36xbf16, #tpu.memory_space<vmem>>, vector<256x4xbf16>,
    %23 = vector.extract_strided_slice %1 {offsets = [2, 1, 0], sizes = [16, 16, 4], strides = [1, 1, 1]} : vector<18x18x4xbf16> to vector<16x16x4xbf16>
    %24 = vector.shape_cast %23 : vector<16x16x4xbf16> to vector<256x4xbf16>
    %c0_11 = arith.constant 0 : index
    %c28 = arith.constant 28 : index
    %25 = vector.load %arg7[%c0_11, %c28] : memref<256x36xbf16, #tpu.memory_space<vmem>>, vector<256x4xbf16>
    tpu.vector_store %arg7[%c0_11, %c28], %24 {strides = array<i32>} : memref<256x36xbf16, #tpu.memory_space<vmem>>, vector<256x4xbf16>,
    %26 = vector.extract_strided_slice %1 {offsets = [2, 2, 0], sizes = [16, 16, 4], strides = [1, 1, 1]} : vector<18x18x4xbf16> to vector<16x16x4xbf16>
    %27 = vector.shape_cast %26 : vector<16x16x4xbf16> to vector<256x4xbf16>
    %c0_12 = arith.constant 0 : index
    %c32 = arith.constant 32 : index
    %28 = vector.load %arg7[%c0_12, %c32] : memref<256x36xbf16, #tpu.memory_space<vmem>>, vector<256x4xbf16>
    tpu.vector_store %arg7[%c0_12, %c32], %27 {strides = array<i32>} : memref<256x36xbf16, #tpu.memory_space<vmem>>, vector<256x4xbf16>,
    %c0_13 = arith.constant 0 : index
    %c0_14 = arith.constant 0 : index
    %29 = vector.load %arg7[%c0_13, %c0_14] : memref<256x36xbf16, #tpu.memory_space<vmem>>, vector<256x36xbf16>
    %c0_15 = arith.constant 0 : index
    %c0_16 = arith.constant 0 : index
    %30 = vector.load %arg2[%c0_15, %c0_16] : memref<36x128xbf16, #tpu.memory_space<vmem>>, vector<36x128xbf16>
    %cst = arith.constant dense<0.000000e+00> : vector<256x128xf32>
    %31 = tpu.matmul %29, %30, %cst {dimension_numbers = #tpu.dot_dimension_numbers<[1], [0], [0], [1], [0, 0, 1, 1], [], []>} : vector<256x36xbf16>, vector<36x128xbf16>, vector<256x128xf32> -> vector<256x128xf32>
    %c0_17 = arith.constant 0 : index
    %c0_18 = arith.constant 0 : index
    %32 = vector.load %arg3[%c0_17, %c0_18] : memref<1x128xf32, #tpu.memory_space<vmem>>, vector<1x128xf32>
    %33 = vector.broadcast %32 : vector<1x128xf32> to vector<256x128xf32>
    %34 = arith.addf %31, %33 : vector<256x128xf32>
    %c0_19 = arith.constant 0 : index
    %c0_20 = arith.constant 0 : index
    %c0_21 = arith.constant 0 : index
    %35 = vector.load %arg4[%c0_19, %c0_20, %c0_21] : memref<1x256x128xf32, #tpu.memory_space<vmem>>, vector<1x256x128xf32>
    %36 = vector.shape_cast %35 : vector<1x256x128xf32> to vector<256x128xf32>
    %37 = vector.shape_cast %34 : vector<256x128xf32> to vector<1x256x128xf32>
    tpu.vector_store %arg4[%c0_19, %c0_20, %c0_21], %37 {strides = array<i32>} : memref<1x256x128xf32, #tpu.memory_space<vmem>>, vector<1x256x128xf32>,
    %cst_22 = arith.constant dense<0.000000e+00> : vector<128xf32>
    %38 = vector.multi_reduction <add>, %34, %cst_22 [0] : vector<256x128xf32> to vector<128xf32>
    %39 = vector.shape_cast %38 : vector<128xf32> to vector<1x128xf32>
    %c0_23 = arith.constant 0 : index
    %c0_24 = arith.constant 0 : index
    %c0_25 = arith.constant 0 : index
    %40 = vector.load %arg5[%c0_23, %c0_24, %c0_25] : memref<1x1x128xf32, #tpu.memory_space<vmem>>, vector<1x1x128xf32>
    %41 = vector.shape_cast %40 : vector<1x1x128xf32> to vector<1x128xf32>
    %42 = vector.shape_cast %39 : vector<1x128xf32> to vector<1x1x128xf32>
    tpu.vector_store %arg5[%c0_23, %c0_24, %c0_25], %42 {strides = array<i32>} : memref<1x1x128xf32, #tpu.memory_space<vmem>>, vector<1x1x128xf32>,
    %43 = arith.mulf %34, %34 : vector<256x128xf32>
    %cst_26 = arith.constant dense<0.000000e+00> : vector<128xf32>
    %44 = vector.multi_reduction <add>, %43, %cst_26 [0] : vector<256x128xf32> to vector<128xf32>
    %45 = vector.shape_cast %44 : vector<128xf32> to vector<1x128xf32>
    %c0_27 = arith.constant 0 : index
    %c0_28 = arith.constant 0 : index
    %c0_29 = arith.constant 0 : index
    %46 = vector.load %arg6[%c0_27, %c0_28, %c0_29] : memref<1x1x128xf32, #tpu.memory_space<vmem>>, vector<1x1x128xf32>
    %47 = vector.shape_cast %46 : vector<1x1x128xf32> to vector<1x128xf32>
    %48 = vector.shape_cast %45 : vector<1x128xf32> to vector<1x1x128xf32>
    tpu.vector_store %arg6[%c0_27, %c0_28, %c0_29], %48 {strides = array<i32>} : memref<1x1x128xf32, #tpu.memory_space<vmem>>, vector<1x1x128xf32>,
    return
  }
  func.func @transform_0(%arg0: i32) -> (i32, i32, i32, i32) {
    %c0_i32 = arith.constant 0 : i32
    %c0_i32_0 = arith.constant 0 : i32
    %c0_i32_1 = arith.constant 0 : i32
    %c0_i32_2 = arith.constant 0 : i32
    return %arg0, %c0_i32, %c0_i32_0, %c0_i32_1 : i32, i32, i32, i32
  }
  func.func @transform_1(%arg0: i32) -> (i32, i32) {
    %c0_i32 = arith.constant 0 : i32
    %c0_i32_0 = arith.constant 0 : i32
    %c0_i32_1 = arith.constant 0 : i32
    return %c0_i32, %c0_i32_0 : i32, i32
  }
  func.func @transform_2(%arg0: i32) -> (i32, i32) {
    %c0_i32 = arith.constant 0 : i32
    %c0_i32_0 = arith.constant 0 : i32
    %c0_i32_1 = arith.constant 0 : i32
    return %c0_i32, %c0_i32_0 : i32, i32
  }
  func.func @transform_3(%arg0: i32) -> (i32, i32, i32) {
    %c0_i32 = arith.constant 0 : i32
    %c0_i32_0 = arith.constant 0 : i32
    %c0_i32_1 = arith.constant 0 : i32
    return %arg0, %c0_i32, %c0_i32_0 : i32, i32, i32
  }
  func.func @transform_4(%arg0: i32) -> (i32, i32, i32) {
    %c0_i32 = arith.constant 0 : i32
    %c0_i32_0 = arith.constant 0 : i32
    %c0_i32_1 = arith.constant 0 : i32
    return %arg0, %c0_i32, %c0_i32_0 : i32, i32, i32
  }
  func.func @transform_5(%arg0: i32) -> (i32, i32, i32) {
    %c0_i32 = arith.constant 0 : i32
    %c0_i32_0 = arith.constant 0 : i32
    %c0_i32_1 = arith.constant 0 : i32
    return %arg0, %c0_i32, %c0_i32_0 : i32, i32, i32
  }
}

module attributes {stable_mosaic.version = 11 : i64} {
  func.func @_bn_relu_kernel(%arg0: i32, %arg1: memref<256x128xf32, #tpu.memory_space<vmem>>, %arg2: memref<1x128xf32, #tpu.memory_space<vmem>>, %arg3: memref<1x128xf32, #tpu.memory_space<vmem>>, %arg4: memref<256x128xf32, #tpu.memory_space<vmem>>) attributes {dimension_semantics = [#tpu.dimension_semantics<parallel>], iteration_bounds = array<i64: 2>, scalar_prefetch = 0 : i64, scratch_operands = 0 : i64, tpu.core_type = #tpu.core_type<tc>, window_params = [{transform_indices = @transform_0, window_bounds = array<i64: 256, 128>}, {pipeline_mode = #tpu.pipeline_mode<synchronous>, transform_indices = @transform_1, window_bounds = array<i64: 1, 128>}, {pipeline_mode = #tpu.pipeline_mode<synchronous>, transform_indices = @transform_2, window_bounds = array<i64: 1, 128>}, {transform_indices = @transform_3, window_bounds = array<i64: 256, 128>}]} {
    %c0 = arith.constant 0 : index
    %c0_0 = arith.constant 0 : index
    %0 = vector.load %arg1[%c0, %c0_0] : memref<256x128xf32, #tpu.memory_space<vmem>>, vector<256x128xf32>
    %c0_1 = arith.constant 0 : index
    %c0_2 = arith.constant 0 : index
    %1 = vector.load %arg2[%c0_1, %c0_2] : memref<1x128xf32, #tpu.memory_space<vmem>>, vector<1x128xf32>
    %2 = vector.broadcast %1 : vector<1x128xf32> to vector<256x128xf32>
    %3 = arith.mulf %0, %2 : vector<256x128xf32>
    %c0_3 = arith.constant 0 : index
    %c0_4 = arith.constant 0 : index
    %4 = vector.load %arg3[%c0_3, %c0_4] : memref<1x128xf32, #tpu.memory_space<vmem>>, vector<1x128xf32>
    %5 = vector.broadcast %4 : vector<1x128xf32> to vector<256x128xf32>
    %6 = arith.addf %3, %5 : vector<256x128xf32>
    %cst = arith.constant 0.000000e+00 : f32
    %7 = vector.broadcast %cst : f32 to vector<256x128xf32>
    %8 = arith.maximumf %6, %7 : vector<256x128xf32>
    %c0_5 = arith.constant 0 : index
    %c0_6 = arith.constant 0 : index
    %9 = vector.load %arg4[%c0_5, %c0_6] : memref<256x128xf32, #tpu.memory_space<vmem>>, vector<256x128xf32>
    tpu.vector_store %arg4[%c0_5, %c0_6], %8 {strides = array<i32>} : memref<256x128xf32, #tpu.memory_space<vmem>>, vector<256x128xf32>,
    return
  }
  func.func @transform_0(%arg0: i32) -> (i32, i32) {
    %c0_i32 = arith.constant 0 : i32
    %c0_i32_0 = arith.constant 0 : i32
    return %arg0, %c0_i32 : i32, i32
  }
  func.func @transform_1(%arg0: i32) -> (i32, i32) {
    %c0_i32 = arith.constant 0 : i32
    %c0_i32_0 = arith.constant 0 : i32
    %c0_i32_1 = arith.constant 0 : i32
    return %c0_i32, %c0_i32_0 : i32, i32
  }
  func.func @transform_2(%arg0: i32) -> (i32, i32) {
    %c0_i32 = arith.constant 0 : i32
    %c0_i32_0 = arith.constant 0 : i32
    %c0_i32_1 = arith.constant 0 : i32
    return %c0_i32, %c0_i32_0 : i32, i32
  }
  func.func @transform_3(%arg0: i32) -> (i32, i32) {
    %c0_i32 = arith.constant 0 : i32
    %c0_i32_0 = arith.constant 0 : i32
    return %arg0, %c0_i32 : i32, i32
  }
}

</mosaic_0001>

<llo_original>
// kernel: upconv_forward.5
$region0: #{upconv_forward.5}
  #allocation0 [shape = 'u32[]', space=smem, size = 0x4, offset = 0x4, fixed_abs, tag = 'smem constant byte address 0x4 - core index']
  #allocation1 [shape = 'u32[144,128]{1,0:T(1,128)}', space=vmem, size = 0x12000, scoped, tag = 'internal scratch']
  %s0 = inlined_call_operand.vmem [shape: bf16[256,8], index: 0, kind: input, shape index: {}]
  %s1 = inlined_call_operand.vmem [shape: bf16[8,128], index: 1, kind: input, shape index: {}]
  %s2 = inlined_call_operand.vmem [shape: f32[1,128], index: 2, kind: input, shape index: {}]
  %s3 = inlined_call_operand.vmem [shape: f32[256,128], index: 3, kind: output, shape index: {}]
  %s4 = sld [smem:[#allocation0]]
  $region22: #{upconv_forward.5} parent=0
    _
  %s6 = ssub.s32 1, %s4
  %s7 = scalar_select 0, %s6, %s4
  // Predicated region
  $region2: #{upconv_forward.5} parent=0 // pred_check
    _
  $region3: #{upconv_forward.5} parent=0 // pred_check_branch
    %9 = sbr.rel (0) target = $region5
  $region4: #{upconv_forward.5} parent=0 // pred_region
    _
  $region5: #{upconv_forward.5} parent=0 // pred_fallthru
    _
  // Predicated region
  $region6: #{upconv_forward.5} parent=0 // pred_check
    _
  $region7: #{upconv_forward.5} parent=0 // pred_check_branch
    %11 = sbr.rel (0) target = $region9
  $region8: #{upconv_forward.5} parent=0 // pred_region
    _
  $region9: #{upconv_forward.5} parent=0 // pred_fallthru
    _
  // Predicated region
  $region10: #{upconv_forward.5} parent=0 // pred_check
    _
  $region11: #{upconv_forward.5} parent=0 // pred_check_branch
    %13 = sbr.rel (0) target = $region13
  $region12: #{upconv_forward.5} parent=0 // pred_region
    _
  $region13: #{upconv_forward.5} parent=0 // pred_fallthru
    _
  %v15 = vld [vmem:[%s0] sm:$0xf]
  %v16 = vld [vmem:[%s0 + $0x4] sm:$0xf]
  %v17 = vld [vmem:[%s0 + $0x8] sm:$0xf]
  %v18 = vld [vmem:[%s0 + $0xc] sm:$0xf]
  %v19 = vld [vmem:[%s0 + $0x10] sm:$0xf]
  %v20 = vld [vmem:[%s0 + $0x14] sm:$0xf]
  %v21 = vld [vmem:[%s0 + $0x18] sm:$0xf]
  %v22 = vld [vmem:[%s0 + $0x1c] sm:$0xf]
  %v23 = vld [vmem:[%s0 + $0x20] sm:$0xf]
  %v24 = vld [vmem:[%s0 + $0x24] sm:$0xf]
  %v25 = vld [vmem:[%s0 + $0x28] sm:$0xf]
  %v26 = vld [vmem:[%s0 + $0x2c] sm:$0xf]
  %v27 = vld [vmem:[%s0 + $0x30] sm:$0xf]
  %v28 = vld [vmem:[%s0 + $0x34] sm:$0xf]
  %v29 = vld [vmem:[%s0 + $0x38] sm:$0xf]
  %v30 = vld [vmem:[%s0 + $0x3c] sm:$0xf]
  %v31 = vld [vmem:[%s0 + $0x40] sm:$0xf]
  %v32 = vld [vmem:[%s0 + $0x44] sm:$0xf]
  %v33 = vld [vmem:[%s0 + $0x48] sm:$0xf]
  %v34 = vld [vmem:[%s0 + $0x4c] sm:$0xf]
  %v35 = vld [vmem:[%s0 + $0x50] sm:$0xf]
  %v36 = vld [vmem:[%s0 + $0x54] sm:$0xf]
  %v37 = vld [vmem:[%s0 + $0x58] sm:$0xf]
  %v38 = vld [vmem:[%s0 + $0x5c] sm:$0xf]
  %v39 = vld [vmem:[%s0 + $0x60] sm:$0xf]
  %v40 = vld [vmem:[%s0 + $0x64] sm:$0xf]
  %v41 = vld [vmem:[%s0 + $0x68] sm:$0xf]
  %v42 = vld [vmem:[%s0 + $0x6c] sm:$0xf]
  %v43 = vld [vmem:[%s0 + $0x70] sm:$0xf]
  %v44 = vld [vmem:[%s0 + $0x74] sm:$0xf]
  %v45 = vld [vmem:[%s0 + $0x78] sm:$0xf]
  %v46 = vld [vmem:[%s0 + $0x7c] sm:$0xf]
  %v47 = vld [vmem:[%s1] sm:$0xf]
  %v48 = vld [vmem:[%s2] sm:$0x1]
  %v50 = vlaneseq
  %v51 = vshrl.u32 %v50, 7
  %v52 = vsub.s32 0, %v51
  %v53 = vrot.slane %v48, %v52
  %v87 = vunpack.c.l.b16 %v15
  %v88 = vunpack.c.l.b16 %v16
  %v89 = vunpack.c.l.b16 %v17
  %v90 = vunpack.c.l.b16 %v18
  %v91 = vunpack.c.l.b16 %v19
  %v92 = vunpack.c.l.b16 %v20
  %v93 = vunpack.c.l.b16 %v21
  %v94 = vunpack.c.l.b16 %v22
  %v95 = vunpack.c.l.b16 %v23
  %v96 = vunpack.c.l.b16 %v24
  %v97 = vunpack.c.l.b16 %v25
  %v98 = vunpack.c.l.b16 %v26
  %v99 = vunpack.c.l.b16 %v27
  %v100 = vunpack.c.l.b16 %v28
  %v101 = vunpack.c.l.b16 %v29
  %v102 = vunpack.c.l.b16 %v30
  %v103 = vunpack.c.l.b16 %v31
  %v104 = vunpack.c.l.b16 %v32
  %v105 = vunpack.c.l.b16 %v33
  %v106 = vunpack.c.l.b16 %v34
  %v107 = vunpack.c.l.b16 %v35
  %v108 = vunpack.c.l.b16 %v36
  %v109 = vunpack.c.l.b16 %v37
  %v110 = vunpack.c.l.b16 %v38
  %v111 = vunpack.c.l.b16 %v39
  %v112 = vunpack.c.l.b16 %v40
  %v113 = vunpack.c.l.b16 %v41
  %v114 = vunpack.c.l.b16 %v42
  %v115 = vunpack.c.l.b16 %v43
  %v116 = vunpack.c.l.b16 %v44
  %v117 = vunpack.c.l.b16 %v45
  %v118 = vunpack.c.l.b16 %v46
  %v119 = vpack.c.b16 %v88, %v87
  %v120 = vpack.c.b16 %v90, %v89
  %v121 = vpack.c.b16 %v92, %v91
  %v122 = vpack.c.b16 %v94, %v93
  %v123 = vpack.c.b16 %v96, %v95
  %v124 = vpack.c.b16 %v98, %v97
  %v125 = vpack.c.b16 %v100, %v99
  %v126 = vpack.c.b16 %v102, %v101
  %v127 = vpack.c.b16 %v104, %v103
  %v128 = vpack.c.b16 %v106, %v105
  %v129 = vpack.c.b16 %v108, %v107
  %v130 = vpack.c.b16 %v110, %v109
  %v131 = vpack.c.b16 %v112, %v111
  %v132 = vpack.c.b16 %v114, %v113
  %v133 = vpack.c.b16 %v116, %v115
  %v134 = vpack.c.b16 %v118, %v117
  %vm135 = vcmask 64512
  %v137 = vsel %vm135, %v119, 0
  %v140 = vsel %vm135, %v120, 0
  %v143 = vsel %vm135, %v121, 0
  %v146 = vsel %vm135, %v122, 0
  %v149 = vsel %vm135, %v123, 0
  %v152 = vsel %vm135, %v124, 0
  %v155 = vsel %vm135, %v125, 0
  %v158 = vsel %vm135, %v126, 0
  %v161 = vsel %vm135, %v127, 0
  %v164 = vsel %vm135, %v128, 0
  %v167 = vsel %vm135, %v129, 0
  %v170 = vsel %vm135, %v130, 0
  %v173 = vsel %vm135, %v131, 0
  %v176 = vsel %vm135, %v132, 0
  %v179 = vsel %vm135, %v133, 0
  %v182 = vsel %vm135, %v134, 0
  %vm184 = vcmask 1043456
  %v186 = vsel %vm184, %v47, 0
  %188 = vmatprep.subr.bf16.mxu0 0
  %189 = vmatpush1.bf16.msra.mxu0 %v186
  %190 = vmatprep.subr.bf16.mxu0 0
  %191 = vmatpush1.bf16.msra.mxu0 0
  %192 = vmatprep.subr.bf16.mxu0 0
  %193 = vmatpush1.bf16.msra.mxu0 0
  %194 = vmatprep.subr.bf16.mxu0 0
  %195 = vmatpush1.bf16.msra.mxu0 0
  %196 = vmatprep.subr.bf16.mxu0 0
  %197 = vmatpush1.bf16.msra.mxu0 0
  %198 = vmatprep.subr.bf16.mxu0 0
  %199 = vmatpush1.bf16.msra.mxu0 0
  %200 = vmatprep.subr.bf16.mxu0 0
  %201 = vmatpush1.bf16.msra.mxu0 0
  %202 = vmatprep.subr.bf16.mxu0 0
  %203 = vmatpush1.bf16.msra.mxu0 0
  %204 = vmatprep.subr.bf16.mxu0 0
  %205 = vmatpush1.bf16.msra.mxu0 0
  %206 = vmatprep.subr.bf16.mxu0 0
  %207 = vmatpush1.bf16.msra.mxu0 0
  %208 = vmatprep.subr.bf16.mxu0 0
  %209 = vmatpush1.bf16.msra.mxu0 0
  %210 = vmatprep.subr.bf16.mxu0 0
  %211 = vmatpush1.bf16.msra.mxu0 0
  %212 = vmatprep.subr.bf16.mxu0 0
  %213 = vmatpush1.bf16.msra.mxu0 0
  %214 = vmatprep.subr.bf16.mxu0 0
  %215 = vmatpush1.bf16.msra.mxu0 0
  %216 = vmatprep.subr.bf16.mxu0 0
  %217 = vmatpush1.bf16.msra.mxu0 0
  %218 = vmatprep.subr.bf16.mxu0 0
  %219 = vmatpush1.bf16.msra.mxu0 0
  %220 = vmatprep.mubr.bf16.mxu0 0
  %221 = vmatmul.mubr.bf16.gmra.mrb[0].mxu0 %v137
  %v222 = vpop.f32.mrb[0].mxu0
  %v223 = vadd.f32 %v53, %v222
  %v224 = vpop.f32.mrb[0].mxu0
  %v225 = vpop.f32.mrb[0].mxu0
  %v226 = vadd.f32 %v53, %v225
  %v227 = vpop.f32.mrb[0].mxu0
  %228 = vmatprep.mubr.bf16.mxu0 0
  %229 = vmatmul.mubr.bf16.gmra.mrb[0].mxu0 %v140
  %v230 = vpop.f32.mrb[0].mxu0
  %v231 = vadd.f32 %v53, %v230
  %v232 = vpop.f32.mrb[0].mxu0
  %v233 = vpop.f32.mrb[0].mxu0
  %v234 = vadd.f32 %v53, %v233
  %v235 = vpop.f32.mrb[0].mxu0
  %236 = vmatprep.mubr.bf16.mxu0 0
  %237 = vmatmul.mubr.bf16.gmra.mrb[0].mxu0 %v143
  %v238 = vpop.f32.mrb[0].mxu0
  %v239 = vadd.f32 %v53, %v238
  %v240 = vpop.f32.mrb[0].mxu0
  %v241 = vpop.f32.mrb[0].mxu0
  %v242 = vadd.f32 %v53, %v241
  %v243 = vpop.f32.mrb[0].mxu0
  %244 = vmatprep.mubr.bf16.mxu0 0
  %245 = vmatmul.mubr.bf16.gmra.mrb[0].mxu0 %v146
  %v246 = vpop.f32.mrb[0].mxu0
  %v247 = vadd.f32 %v53, %v246
  %v248 = vpop.f32.mrb[0].mxu0
  %v249 = vpop.f32.mrb[0].mxu0
  %v250 = vadd.f32 %v53, %v249
  %v251 = vpop.f32.mrb[0].mxu0
  %252 = vmatprep.mubr.bf16.mxu0 0
  %253 = vmatmul.mubr.bf16.gmra.mrb[0].mxu0 %v149
  %v254 = vpop.f32.mrb[0].mxu0
  %v255 = vadd.f32 %v53, %v254
  %v256 = vpop.f32.mrb[0].mxu0
  %v257 = vpop.f32.mrb[0].mxu0
  %v258 = vadd.f32 %v53, %v257
  %v259 = vpop.f32.mrb[0].mxu0
  %260 = vmatprep.mubr.bf16.mxu0 0
  %261 = vmatmul.mubr.bf16.gmra.mrb[0].mxu0 %v152
  %v262 = vpop.f32.mrb[0].mxu0
  %v263 = vadd.f32 %v53, %v262
  %v264 = vpop.f32.mrb[0].mxu0
  %v265 = vpop.f32.mrb[0].mxu0
  %v266 = vadd.f32 %v53, %v265
  %v267 = vpop.f32.mrb[0].mxu0
  %268 = vmatprep.mubr.bf16.mxu0 0
  %269 = vmatmul.mubr.bf16.gmra.mrb[0].mxu0 %v155
  %v270 = vpop.f32.mrb[0].mxu0
  %v271 = vadd.f32 %v53, %v270
  %v272 = vpop.f32.mrb[0].mxu0
  %v273 = vpop.f32.mrb[0].mxu0
  %v274 = vadd.f32 %v53, %v273
  %v275 = vpop.f32.mrb[0].mxu0
  %276 = vmatprep.mubr.bf16.mxu0 0
  %277 = vmatmul.mubr.bf16.gmra.mrb[0].mxu0 %v158
  %v278 = vpop.f32.mrb[0].mxu0
  %v279 = vadd.f32 %v53, %v278
  %v280 = vpop.f32.mrb[0].mxu0
  %v281 = vpop.f32.mrb[0].mxu0
  %v282 = vadd.f32 %v53, %v281
  %v283 = vpop.f32.mrb[0].mxu0
  %284 = vmatprep.mubr.bf16.mxu0 0
  %285 = vmatmul.mubr.bf16.gmra.mrb[0].mxu0 %v161
  %v286 = vpop.f32.mrb[0].mxu0
  %v287 = vadd.f32 %v53, %v286
  %v288 = vpop.f32.mrb[0].mxu0
  %v289 = vpop.f32.mrb[0].mxu0
  %v290 = vadd.f32 %v53, %v289
  %v291 = vpop.f32.mrb[0].mxu0
  %292 = vmatprep.mubr.bf16.mxu0 0
  %293 = vmatmul.mubr.bf16.gmra.mrb[0].mxu0 %v164
  %v294 = vpop.f32.mrb[0].mxu0
  %v295 = vadd.f32 %v53, %v294
  %v296 = vpop.f32.mrb[0].mxu0
  %v297 = vpop.f32.mrb[0].mxu0
  %v298 = vadd.f32 %v53, %v297
  %v299 = vpop.f32.mrb[0].mxu0
  %300 = vmatprep.mubr.bf16.mxu0 0
  %301 = vmatmul.mubr.bf16.gmra.mrb[0].mxu0 %v167
  %v302 = vpop.f32.mrb[0].mxu0
  %v303 = vadd.f32 %v53, %v302
  %v304 = vpop.f32.mrb[0].mxu0
  %v305 = vpop.f32.mrb[0].mxu0
  %v306 = vadd.f32 %v53, %v305
  %v307 = vpop.f32.mrb[0].mxu0
  %308 = vmatprep.mubr.bf16.mxu0 0
  %309 = vmatmul.mubr.bf16.gmra.mrb[0].mxu0 %v170
  %v310 = vpop.f32.mrb[0].mxu0
  %v311 = vadd.f32 %v53, %v310
  %v312 = vpop.f32.mrb[0].mxu0
  %v313 = vpop.f32.mrb[0].mxu0
  %v314 = vadd.f32 %v53, %v313
  %v315 = vpop.f32.mrb[0].mxu0
  %316 = vmatprep.mubr.bf16.mxu0 0
  %317 = vmatmul.mubr.bf16.gmra.mrb[0].mxu0 %v173
  %v318 = vpop.f32.mrb[0].mxu0
  %v319 = vadd.f32 %v53, %v318
  %v320 = vpop.f32.mrb[0].mxu0
  %v321 = vpop.f32.mrb[0].mxu0
  %v322 = vadd.f32 %v53, %v321
  %v323 = vpop.f32.mrb[0].mxu0
  %324 = vmatprep.mubr.bf16.mxu0 0
  %325 = vmatmul.mubr.bf16.gmra.mrb[0].mxu0 %v176
  %v326 = vpop.f32.mrb[0].mxu0
  %v327 = vadd.f32 %v53, %v326
  %v328 = vpop.f32.mrb[0].mxu0
  %v329 = vpop.f32.mrb[0].mxu0
  %v330 = vadd.f32 %v53, %v329
  %v331 = vpop.f32.mrb[0].mxu0
  %332 = vmatprep.mubr.bf16.mxu0 0
  %333 = vmatmul.mubr.bf16.gmra.mrb[0].mxu0 %v179
  %v334 = vpop.f32.mrb[0].mxu0
  %v335 = vadd.f32 %v53, %v334
  %v336 = vpop.f32.mrb[0].mxu0
  %v337 = vpop.f32.mrb[0].mxu0
  %v338 = vadd.f32 %v53, %v337
  %v339 = vpop.f32.mrb[0].mxu0
  %340 = vmatprep.mubr.bf16.mxu0 0
  %341 = vmatmul.mubr.bf16.gmra.mrb[0].mxu0 %v182
  %v342 = vpop.f32.mrb[0].mxu0
  %v343 = vadd.f32 %v53, %v342
  %v344 = vpop.f32.mrb[0].mxu0
  %v345 = vpop.f32.mrb[0].mxu0
  %v346 = vadd.f32 %v53, %v345
  %v347 = vpop.f32.mrb[0].mxu0
  %348 = vdwg.mxu0
  %349 = vst [vmem:[%s3] sm:$0xff] %v223
  %350 = vst [vmem:[%s3 + $0x8] sm:$0xff] %v226
  %351 = vst [vmem:[%s3 + $0x10] sm:$0xff] %v231
  %352 = vst [vmem:[%s3 + $0x18] sm:$0xff] %v234
  %353 = vst [vmem:[%s3 + $0x20] sm:$0xff] %v239
  %354 = vst [vmem:[%s3 + $0x28] sm:$0xff] %v242
  %355 = vst [vmem:[%s3 + $0x30] sm:$0xff] %v247
  %356 = vst [vmem:[%s3 + $0x38] sm:$0xff] %v250
  %357 = vst [vmem:[%s3 + $0x40] sm:$0xff] %v255
  %358 = vst [vmem:[%s3 + $0x48] sm:$0xff] %v258
  %359 = vst [vmem:[%s3 + $0x50] sm:$0xff] %v263
  %360 = vst [vmem:[%s3 + $0x58] sm:$0xff] %v266
  %361 = vst [vmem:[%s3 + $0x60] sm:$0xff] %v271
  %362 = vst [vmem:[%s3 + $0x68] sm:$0xff] %v274
  %363 = vst [vmem:[%s3 + $0x70] sm:$0xff] %v279
  %364 = vst [vmem:[%s3 + $0x78] sm:$0xff] %v282
  %365 = vst [vmem:[%s3 + $0x80] sm:$0xff] %v287
  %366 = vst [vmem:[%s3 + $0x88] sm:$0xff] %v290
  %367 = vst [vmem:[%s3 + $0x90] sm:$0xff] %v295
  %368 = vst [vmem:[%s3 + $0x98] sm:$0xff] %v298
  %369 = vst [vmem:[%s3 + $0xa0] sm:$0xff] %v303
  %370 = vst [vmem:[%s3 + $0xa8] sm:$0xff] %v306
  %371 = vst [vmem:[%s3 + $0xb0] sm:$0xff] %v311
  %372 = vst [vmem:[%s3 + $0xb8] sm:$0xff] %v314
  %373 = vst [vmem:[%s3 + $0xc0] sm:$0xff] %v319
  %374 = vst [vmem:[%s3 + $0xc8] sm:$0xff] %v322
  %375 = vst [vmem:[%s3 + $0xd0] sm:$0xff] %v327
  %376 = vst [vmem:[%s3 + $0xd8] sm:$0xff] %v330
  %377 = vst [vmem:[%s3 + $0xe0] sm:$0xff] %v335
  %378 = vst [vmem:[%s3 + $0xe8] sm:$0xff] %v338
  %379 = vst [vmem:[%s3 + $0xf0] sm:$0xff] %v343
  %380 = vst [vmem:[%s3 + $0xf8] sm:$0xff] %v346
  // Predicated region
  $region14: #{upconv_forward.5} parent=0 // pred_check
    _
  $region15: #{upconv_forward.5} parent=0 // pred_check_branch
    %382 = sbr.rel (0) target = $region17
  $region16: #{upconv_forward.5} parent=0 // pred_region
    _
  $region17: #{upconv_forward.5} parent=0 // pred_fallthru
    _
  // Predicated region
  $region18: #{upconv_forward.5} parent=0 // pred_check
    _
  $region19: #{upconv_forward.5} parent=0 // pred_check_branch
    %384 = sbr.rel (0) target = $region21
  $region20: #{upconv_forward.5} parent=0 // pred_region
    _
  $region21: #{upconv_forward.5} parent=0 // pred_fallthru
    _

// kernel: upconv_forward.7
$region0: #{upconv_forward.7}
  #allocation0 [shape = 'u32[]', space=smem, size = 0x4, offset = 0x4, fixed_abs, tag = 'smem constant byte address 0x4 - core index']
  #allocation1 [shape = 'u32[144,128]{1,0:T(1,128)}', space=vmem, size = 0x12000, scoped, tag = 'internal scratch']
  %s0 = inlined_call_operand.vmem [shape: f32[512,128], index: 0, kind: input, shape index: {}]
  %s1 = inlined_call_operand.vmem [shape: f32[1,128], index: 1, kind: input, shape index: {}]
  %s2 = inlined_call_operand.vmem [shape: f32[1,128], index: 2, kind: input, shape index: {}]
  %s3 = inlined_call_operand.vmem [shape: bf16[512,128], index: 3, kind: output, shape index: {}]
  %s4 = sld [smem:[#allocation0]]
  $region45: #{upconv_forward.7} parent=0
    _
  %s6 = ssub.s32 1, %s4
  %s7 = scalar_select 0, %s6, %s4
  loop: start=0, step=1, limit=4
  $region2: #{upconv_forward.7} parent=0 // loop_pre_header
    _
  $region3: #{upconv_forward.7} parent=0 // loop_header
    %s9 = sphi 0, %s13
    %p10 = scmp.ge.s32.totalorder %s9, 4
    %s19 = sphi 0, %s21
    %s22 = sphi 0, %s19
    %s23 = sphi 0, %s22
    %s39 = sphi 0, %s23
    %s43 = sphi 0, %s43
    %s45 = sphi 0, %s43
    %s46 = sphi 0, %s45
    %s60 = sphi 0, %s46
    %s64 = sphi 0, %s64
    %s66 = sphi 0, %s64
    %s67 = sphi 0, %s66
    %s81 = sphi 0, %s67
    %s87 = sphi 0, %s89
    %s90 = sphi 0, %s87
    %s91 = sphi 0, %s90
    %s107 = sphi 0, %s91
  $region4: #{upconv_forward.7} parent=0 // loop_header_branch
    %12 = sbr.rel (%p10) target = $region8
  $region5: #{upconv_forward.7} parent=0 // loop_body
    %s14 = ssub.s32 %s9, 1
    %s15 = ssub.s32 %s9, 2
    %s16 = sadd.s32 %s9, 1
    %s17 = ssub.s32 %s9, %s16
    %p18 = scmp.eq.s32.totalorder %s17, 0
    %s20 = sadd.s32 %s19, 1
    %s21 = scalar_select %p18, %s19, %s20
    %p24 = pneg %p18
    %p25 = scmp.eq.s32.totalorder %s9, 1
    %p26 = por %p24, %p25
    %p27 = scmp.ne.s32.totalorder %s19, %s22
    %p28 = scmp.eq.s32.totalorder %s9, 0
    %p29 = por %p27, %p28
    %p30 = scmp.ne.s32.totalorder %s19, %s22
    %p31 = scmp.eq.s32.totalorder %s14, 1
    %p32 = por %p30, %p31
    %p33 = scmp.ne.s32.totalorder %s22, %s23
    %p34 = scmp.eq.s32.totalorder %s14, 0
    %p35 = por %p33, %p34
    %p36 = scmp.ne.s32.totalorder %s22, %s23
    %p37 = scmp.eq.s32.totalorder %s15, 1
    %p38 = por %p36, %p37
    %p40 = scmp.ne.s32.totalorder %s23, %s39
    %p41 = scmp.eq.s32.totalorder %s15, 0
    %p42 = por %p40, %p41
    %s44 = sadd.s32 %s43, 1
    %p47 = scmp.eq.s32.totalorder %s9, 1
    %p48 = scmp.ne.s32.totalorder %s43, %s45
    %p49 = scmp.eq.s32.totalorder %s9, 0
    %p50 = por %p48, %p49
    %p51 = scmp.ne.s32.totalorder %s43, %s45
    %p52 = scmp.eq.s32.totalorder %s14, 1
    %p53 = por %p51, %p52
    %p54 = scmp.ne.s32.totalorder %s45, %s46
    %p55 = scmp.eq.s32.totalorder %s14, 0
    %p56 = por %p54, %p55
    %p57 = scmp.ne.s32.totalorder %s45, %s46
    %p58 = scmp.eq.s32.totalorder %s15, 1
    %p59 = por %p57, %p58
    %p61 = scmp.ne.s32.totalorder %s46, %s60
    %p62 = scmp.eq.s32.totalorder %s15, 0
    %p63 = por %p61, %p62
    %s65 = sadd.s32 %s64, 1
    %p68 = scmp.eq.s32.totalorder %s9, 1
    %p69 = scmp.ne.s32.totalorder %s64, %s66
    %p70 = scmp.eq.s32.totalorder %s9, 0
    %p71 = por %p69, %p70
    %p72 = scmp.ne.s32.totalorder %s64, %s66
    %p73 = scmp.eq.s32.totalorder %s14, 1
    %p74 = por %p72, %p73
    %p75 = scmp.ne.s32.totalorder %s66, %s67
    %p76 = scmp.eq.s32.totalorder %s14, 0
    %p77 = por %p75, %p76
    %p78 = scmp.ne.s32.totalorder %s66, %s67
    %p79 = scmp.eq.s32.totalorder %s15, 1
    %p80 = por %p78, %p79
    %p82 = scmp.ne.s32.totalorder %s67, %s81
    %p83 = scmp.eq.s32.totalorder %s15, 0
    %p84 = por %p82, %p83
    %s85 = ssub.s32 %s9, %s16
    %p86 = scmp.eq.s32.totalorder %s85, 0
    %s88 = sadd.s32 %s87, 1
    %s89 = scalar_select %p86, %s87, %s88
    %p92 = pneg %p86
    %p93 = scmp.eq.s32.totalorder %s9, 1
    %p94 = por %p92, %p93
    %p95 = scmp.ne.s32.totalorder %s87, %s90
    %p96 = scmp.eq.s32.totalorder %s9, 0
    %p97 = por %p95, %p96
    %p98 = scmp.ne.s32.totalorder %s87, %s90
    %p99 = scmp.eq.s32.totalorder %s14, 1
    %p100 = por %p98, %p99
    %p101 = scmp.ne.s32.totalorder %s90, %s91
    %p102 = scmp.eq.s32.totalorder %s14, 0
    %p103 = por %p101, %p102
    %p104 = scmp.ne.s32.totalorder %s90, %s91
    %p105 = scmp.eq.s32.totalorder %s15, 1
    %p106 = por %p104, %p105
    %p108 = scmp.ne.s32.totalorder %s91, %s107
    %p109 = scmp.eq.s32.totalorder %s15, 0
    %p110 = por %p108, %p109
    %p111 = scmp.le.s32.totalorder 1, %s9
    %p112 = scmp.lt.s32.totalorder %s9, 3
    %p113 = pnand %p111, %p112
    %p114 = pneg %p113
    // Predicated region
    $region9: #{upconv_forward.7} parent=5 // pred_check
      _
    $region10: #{upconv_forward.7} parent=5 // pred_check_branch
      %116 = sbr.rel (%p113) target = $region12
    $region11: #{upconv_forward.7} parent=5 // pred_region
      %s117 = ssub.s32 %s9, 1
      // Predicated region
      $region13: #{upconv_forward.7} parent=11 // pred_check
        %p118 = pneg %p56
      $region14: #{upconv_forward.7} parent=11 // pred_check_branch
        %120 = sbr.rel (%p118) target = $region16
      $region15: #{upconv_forward.7} parent=11 // pred_region
        _
      $region16: #{upconv_forward.7} parent=11 // pred_fallthru
        _
      // Predicated region
      $region17: #{upconv_forward.7} parent=11 // pred_check
        %p121 = pneg %p77
      $region18: #{upconv_forward.7} parent=11 // pred_check_branch
        %123 = sbr.rel (%p121) target = $region20
      $region19: #{upconv_forward.7} parent=11 // pred_region
        _
      $region20: #{upconv_forward.7} parent=11 // pred_fallthru
        _
    $region12: #{upconv_forward.7} parent=5 // pred_fallthru
      _
    %p124 = scmp.lt.s32.totalorder %s9, 2
    // Predicated region
    $region21: #{upconv_forward.7} parent=5 // pred_check
      %p125 = pneg %p124
    $region22: #{upconv_forward.7} parent=5 // pred_check_branch
      %127 = sbr.rel (%p125) target = $region24
    $region23: #{upconv_forward.7} parent=5 // pred_region
      // Predicated region
      $region25: #{upconv_forward.7} parent=23 // pred_check
        %p128 = pneg %p29
      $region26: #{upconv_forward.7} parent=23 // pred_check_branch
        %130 = sbr.rel (%p128) target = $region28
      $region27: #{upconv_forward.7} parent=23 // pred_region
        %s131 = smul.u32 32, %s9
        %p132 = scmp.lt.s32.totalorder %s131, 63
        %s133 = scalar_select %p132, %s131, 63
        %s134 = smul.addr %s133, 8
        %s135 = scalar_lea.vmem %s0, %s134
        %s136 = smul.u32 32, %s9
      $region28: #{upconv_forward.7} parent=23 // pred_fallthru
        _
    $region24: #{upconv_forward.7} parent=5 // pred_fallthru
      _
    %p137 = scmp.le.s32.totalorder 1, %s9
    %p138 = scmp.lt.s32.totalorder %s9, 3
    %p139 = pnand %p137, %p138
    %p140 = pneg %p139
    // Predicated region
    $region29: #{upconv_forward.7} parent=5 // pred_check
      _
    $region30: #{upconv_forward.7} parent=5 // pred_check_branch
      %142 = sbr.rel (%p139) target = $region32
    $region31: #{upconv_forward.7} parent=5 // pred_region
      %s143 = ssub.s32 %s9, 1
      %s144 = smul.u32 32, %s14
      %p145 = scmp.lt.s32.totalorder %s144, 63
      %s146 = scalar_select %p145, %s144, 63
      %s147 = smul.addr %s146, 8
      %s148 = scalar_lea.vmem %s0, %s147
      %p149 = pneg %p35
      %p150 = pneg %p32
      %p151 = pneg %p56
      %p152 = pneg %p53
      %p153 = pneg %p77
      %p154 = pneg %p74
      %p155 = pneg %p103
      %p156 = pneg %p100
      %s157 = smul.u32 32, %s14
      %p158 = scmp.lt.s32.totalorder %s157, 63
      %s159 = scalar_select %p158, %s157, 63
      %s160 = smul.addr %s159, 4
      %s161 = scalar_lea.vmem %s3, %s160
      %s162 = smul.u32 32, %s14
      %p163 = scmp.lt.s32.totalorder %s162, 63
      %s164 = scalar_select %p163, %s162, 63
      %s165 = smul.addr %s164, 8
      %s166 = scalar_lea.vmem %s0, %s165
      %s167 = smul.u32 32, %s14
      %s168 = smul.u32 32, %s14
      %p169 = scmp.lt.s32.totalorder %s168, 63
      %s170 = scalar_select %p169, %s168, 63
      %s171 = smul.addr %s170, 4
      %s172 = scalar_lea.vmem %s3, %s171
      %s173 = smul.u32 32, %s14
      %v174 = vld [vmem:[%s166] sm:$0xff]
      %v175 = vld [vmem:[%s166 + $0x8] sm:$0xff]
      %v176 = vld [vmem:[%s166 + $0x10] sm:$0xff]
      %v177 = vld [vmem:[%s166 + $0x18] sm:$0xff]
      %v178 = vld [vmem:[%s166 + $0x20] sm:$0xff]
      %v179 = vld [vmem:[%s166 + $0x28] sm:$0xff]
      %v180 = vld [vmem:[%s166 + $0x30] sm:$0xff]
      %v181 = vld [vmem:[%s166 + $0x38] sm:$0xff]
      %v182 = vld [vmem:[%s166 + $0x40] sm:$0xff]
      %v183 = vld [vmem:[%s166 + $0x48] sm:$0xff]
      %v184 = vld [vmem:[%s166 + $0x50] sm:$0xff]
      %v185 = vld [vmem:[%s166 + $0x58] sm:$0xff]
      %v186 = vld [vmem:[%s166 + $0x60] sm:$0xff]
      %v187 = vld [vmem:[%s166 + $0x68] sm:$0xff]
      %v188 = vld [vmem:[%s166 + $0x70] sm:$0xff]
      %v189 = vld [vmem:[%s166 + $0x78] sm:$0xff]
      %v190 = vld [vmem:[%s166 + $0x80] sm:$0xff]
      %v191 = vld [vmem:[%s166 + $0x88] sm:$0xff]
      %v192 = vld [vmem:[%s166 + $0x90] sm:$0xff]
      %v193 = vld [vmem:[%s166 + $0x98] sm:$0xff]
      %v194 = vld [vmem:[%s166 + $0xa0] sm:$0xff]
      %v195 = vld [vmem:[%s166 + $0xa8] sm:$0xff]
      %v196 = vld [vmem:[%s166 + $0xb0] sm:$0xff]
      %v197 = vld [vmem:[%s166 + $0xb8] sm:$0xff]
      %v198 = vld [vmem:[%s166 + $0xc0] sm:$0xff]
      %v199 = vld [vmem:[%s166 + $0xc8] sm:$0xff]
      %v200 = vld [vmem:[%s166 + $0xd0] sm:$0xff]
      %v201 = vld [vmem:[%s166 + $0xd8] sm:$0xff]
      %v202 = vld [vmem:[%s166 + $0xe0] sm:$0xff]
      %v203 = vld [vmem:[%s166 + $0xe8] sm:$0xff]
      %v204 = vld [vmem:[%s166 + $0xf0] sm:$0xff]
      %v205 = vld [vmem:[%s166 + $0xf8] sm:$0xff]
      %v206 = vld [vmem:[%s1] sm:$0x1]
      %v208 = vlaneseq
      %v209 = vshrl.u32 %v208, 7
      %v210 = vsub.s32 0, %v209
      %v211 = vrot.slane %v206, %v210
      %v213 = vmul.f32 %v174, %v211
      %v214 = vmul.f32 %v175, %v211
      %v215 = vmul.f32 %v176, %v211
      %v216 = vmul.f32 %v177, %v211
      %v217 = vmul.f32 %v178, %v211
      %v218 = vmul.f32 %v179, %v211
      %v219 = vmul.f32 %v180, %v211
      %v220 = vmul.f32 %v181, %v211
      %v221 = vmul.f32 %v182, %v211
      %v222 = vmul.f32 %v183, %v211
      %v223 = vmul.f32 %v184, %v211
      %v224 = vmul.f32 %v185, %v211
      %v225 = vmul.f32 %v186, %v211
      %v226 = vmul.f32 %v187, %v211
      %v227 = vmul.f32 %v188, %v211
      %v228 = vmul.f32 %v189, %v211
      %v229 = vmul.f32 %v190, %v211
      %v230 = vmul.f32 %v191, %v211
      %v231 = vmul.f32 %v192, %v211
      %v232 = vmul.f32 %v193, %v211
      %v233 = vmul.f32 %v194, %v211
      %v234 = vmul.f32 %v195, %v211
      %v235 = vmul.f32 %v196, %v211
      %v236 = vmul.f32 %v197, %v211
      %v237 = vmul.f32 %v198, %v211
      %v238 = vmul.f32 %v199, %v211
      %v239 = vmul.f32 %v200, %v211
      %v240 = vmul.f32 %v201, %v211
      %v241 = vmul.f32 %v202, %v211
      %v242 = vmul.f32 %v203, %v211
      %v243 = vmul.f32 %v204, %v211
      %v244 = vmul.f32 %v205, %v211
      %v245 = vld [vmem:[%s2] sm:$0x1]
      %v247 = vlaneseq
      %v248 = vshrl.u32 %v247, 7
      %v249 = vsub.s32 0, %v248
      %v250 = vrot.slane %v245, %v249
      %v252 = vadd.f32 %v213, %v250
      %v253 = vadd.f32 %v214, %v250
      %v254 = vadd.f32 %v215, %v250
      %v255 = vadd.f32 %v216, %v250
      %v256 = vadd.f32 %v217, %v250
      %v257 = vadd.f32 %v218, %v250
      %v258 = vadd.f32 %v219, %v250
      %v259 = vadd.f32 %v220, %v250
      %v260 = vadd.f32 %v221, %v250
      %v261 = vadd.f32 %v222, %v250
      %v262 = vadd.f32 %v223, %v250
      %v263 = vadd.f32 %v224, %v250
      %v264 = vadd.f32 %v225, %v250
      %v265 = vadd.f32 %v226, %v250
      %v266 = vadd.f32 %v227, %v250
      %v267 = vadd.f32 %v228, %v250
      %v268 = vadd.f32 %v229, %v250
      %v269 = vadd.f32 %v230, %v250
      %v270 = vadd.f32 %v231, %v250
      %v271 = vadd.f32 %v232, %v250
      %v272 = vadd.f32 %v233, %v250
      %v273 = vadd.f32 %v234, %v250
      %v274 = vadd.f32 %v235, %v250
      %v275 = vadd.f32 %v236, %v250
      %v276 = vadd.f32 %v237, %v250
      %v277 = vadd.f32 %v238, %v250
      %v278 = vadd.f32 %v239, %v250
      %v279 = vadd.f32 %v240, %v250
      %v280 = vadd.f32 %v241, %v250
      %v281 = vadd.f32 %v242, %v250
      %v282 = vadd.f32 %v243, %v250
      %v283 = vadd.f32 %v244, %v250
      %v284 = vmax.f32 %v252, 0.0
      %v285 = vmax.f32 %v253, 0.0
      %v286 = vmax.f32 %v254, 0.0
      %v287 = vmax.f32 %v255, 0.0
      %v288 = vmax.f32 %v256, 0.0
      %v289 = vmax.f32 %v257, 0.0
      %v290 = vmax.f32 %v258, 0.0
      %v291 = vmax.f32 %v259, 0.0
      %v292 = vmax.f32 %v260, 0.0
      %v293 = vmax.f32 %v261, 0.0
      %v294 = vmax.f32 %v262, 0.0
      %v295 = vmax.f32 %v263, 0.0
      %v296 = vmax.f32 %v264, 0.0
      %v297 = vmax.f32 %v265, 0.0
      %v298 = vmax.f32 %v266, 0.0
      %v299 = vmax.f32 %v267, 0.0
      %v300 = vmax.f32 %v268, 0.0
      %v301 = vmax.f32 %v269, 0.0
      %v302 = vmax.f32 %v270, 0.0
      %v303 = vmax.f32 %v271, 0.0
      %v304 = vmax.f32 %v272, 0.0
      %v305 = vmax.f32 %v273, 0.0
      %v306 = vmax.f32 %v274, 0.0
      %v307 = vmax.f32 %v275, 0.0
      %v308 = vmax.f32 %v276, 0.0
      %v309 = vmax.f32 %v277, 0.0
      %v310 = vmax.f32 %v278, 0.0
      %v311 = vmax.f32 %v279, 0.0
      %v312 = vmax.f32 %v280, 0.0
      %v313 = vmax.f32 %v281, 0.0
      %v314 = vmax.f32 %v282, 0.0
      %v315 = vmax.f32 %v283, 0.0
      %v316 = vpack.c.bf16 %v285, %v284
      %v317 = vpack.c.bf16 %v287, %v286
      %v318 = vpack.c.bf16 %v289, %v288
      %v319 = vpack.c.bf16 %v291, %v290
      %v320 = vpack.c.bf16 %v293, %v292
      %v321 = vpack.c.bf16 %v295, %v294
      %v322 = vpack.c.bf16 %v297, %v296
      %v323 = vpack.c.bf16 %v299, %v298
      %v324 = vpack.c.bf16 %v301, %v300
      %v325 = vpack.c.bf16 %v303, %v302
      %v326 = vpack.c.bf16 %v305, %v304
      %v327 = vpack.c.bf16 %v307, %v306
      %v328 = vpack.c.bf16 %v309, %v308
      %v329 = vpack.c.bf16 %v311, %v310
      %v330 = vpack.c.bf16 %v313, %v312
      %v331 = vpack.c.bf16 %v315, %v314
      %v348 = vunpack.c.l.b16 %v316
      %v349 = vunpack.c.h.b16 %v316
      %v350 = vunpack.c.l.b16 %v317
      %v351 = vunpack.c.h.b16 %v317
      %v352 = vunpack.c.l.b16 %v318
      %v353 = vunpack.c.h.b16 %v318
      %v354 = vunpack.c.l.b16 %v319
      %v355 = vunpack.c.h.b16 %v319
      %v356 = vunpack.c.l.b16 %v320
      %v357 = vunpack.c.h.b16 %v320
      %v358 = vunpack.c.l.b16 %v321
      %v359 = vunpack.c.h.b16 %v321
      %v360 = vunpack.c.l.b16 %v322
      %v361 = vunpack.c.h.b16 %v322
      %v362 = vunpack.c.l.b16 %v323
      %v363 = vunpack.c.h.b16 %v323
      %v364 = vunpack.c.l.b16 %v324
      %v365 = vunpack.c.h.b16 %v324
      %v366 = vunpack.c.l.b16 %v325
      %v367 = vunpack.c.h.b16 %v325
      %v368 = vunpack.c.l.b16 %v326
      %v369 = vunpack.c.h.b16 %v326
      %v370 = vunpack.c.l.b16 %v327
      %v371 = vunpack.c.h.b16 %v327
      %v372 = vunpack.c.l.b16 %v328
      %v373 = vunpack.c.h.b16 %v328
      %v374 = vunpack.c.l.b16 %v329
      %v375 = vunpack.c.h.b16 %v329
      %v376 = vunpack.c.l.b16 %v330
      %v377 = vunpack.c.h.b16 %v330
      %v378 = vunpack.c.l.b16 %v331
      %v379 = vunpack.c.h.b16 %v331
      %v380 = vpack.c.b16 %v348, %v348
      %v381 = vpack.c.b16 %v349, %v349
      %v382 = vpack.c.b16 %v350, %v350
      %v383 = vpack.c.b16 %v351, %v351
      %v384 = vpack.c.b16 %v352, %v352
      %v385 = vpack.c.b16 %v353, %v353
      %v386 = vpack.c.b16 %v354, %v354
      %v387 = vpack.c.b16 %v355, %v355
      %v388 = vpack.c.b16 %v356, %v356
      %v389 = vpack.c.b16 %v357, %v357
      %v390 = vpack.c.b16 %v358, %v358
      %v391 = vpack.c.b16 %v359, %v359
      %v392 = vpack.c.b16 %v360, %v360
      %v393 = vpack.c.b16 %v361, %v361
      %v394 = vpack.c.b16 %v362, %v362
      %v395 = vpack.c.b16 %v363, %v363
      %v396 = vpack.c.b16 %v364, %v364
      %v397 = vpack.c.b16 %v365, %v365
      %v398 = vpack.c.b16 %v366, %v366
      %v399 = vpack.c.b16 %v367, %v367
      %v400 = vpack.c.b16 %v368, %v368
      %v401 = vpack.c.b16 %v369, %v369
      %v402 = vpack.c.b16 %v370, %v370
      %v403 = vpack.c.b16 %v371, %v371
      %v404 = vpack.c.b16 %v372, %v372
      %v405 = vpack.c.b16 %v373, %v373
      %v406 = vpack.c.b16 %v374, %v374
      %v407 = vpack.c.b16 %v375, %v375
      %v408 = vpack.c.b16 %v376, %v376
      %v409 = vpack.c.b16 %v377, %v377
      %v410 = vpack.c.b16 %v378, %v378
      %v411 = vpack.c.b16 %v379, %v379
      %444 = vst [vmem:[%s172] sm:$0xf] %v380
      %445 = vst [vmem:[%s172 + $0x4] sm:$0xf] %v381
      %446 = vst [vmem:[%s172 + $0x8] sm:$0xf] %v382
      %447 = vst [vmem:[%s172 + $0xc] sm:$0xf] %v383
      %448 = vst [vmem:[%s172 + $0x10] sm:$0xf] %v384
      %449 = vst [vmem:[%s172 + $0x14] sm:$0xf] %v385
      %450 = vst [vmem:[%s172 + $0x18] sm:$0xf] %v386
      %451 = vst [vmem:[%s172 + $0x1c] sm:$0xf] %v387
      %452 = vst [vmem:[%s172 + $0x20] sm:$0xf] %v388
      %453 = vst [vmem:[%s172 + $0x24] sm:$0xf] %v389
      %454 = vst [vmem:[%s172 + $0x28] sm:$0xf] %v390
      %455 = vst [vmem:[%s172 + $0x2c] sm:$0xf] %v391
      %456 = vst [vmem:[%s172 + $0x30] sm:$0xf] %v392
      %457 = vst [vmem:[%s172 + $0x34] sm:$0xf] %v393
      %458 = vst [vmem:[%s172 + $0x38] sm:$0xf] %v394
      %459 = vst [vmem:[%s172 + $0x3c] sm:$0xf] %v395
      %460 = vst [vmem:[%s172 + $0x40] sm:$0xf] %v396
      %461 = vst [vmem:[%s172 + $0x44] sm:$0xf] %v397
      %462 = vst [vmem:[%s172 + $0x48] sm:$0xf] %v398
      %463 = vst [vmem:[%s172 + $0x4c] sm:$0xf] %v399
      %464 = vst [vmem:[%s172 + $0x50] sm:$0xf] %v400
      %465 = vst [vmem:[%s172 + $0x54] sm:$0xf] %v401
      %466 = vst [vmem:[%s172 + $0x58] sm:$0xf] %v402
      %467 = vst [vmem:[%s172 + $0x5c] sm:$0xf] %v403
      %468 = vst [vmem:[%s172 + $0x60] sm:$0xf] %v404
      %469 = vst [vmem:[%s172 + $0x64] sm:$0xf] %v405
      %470 = vst [vmem:[%s172 + $0x68] sm:$0xf] %v406
      %471 = vst [vmem:[%s172 + $0x6c] sm:$0xf] %v407
      %472 = vst [vmem:[%s172 + $0x70] sm:$0xf] %v408
      %473 = vst [vmem:[%s172 + $0x74] sm:$0xf] %v409
      %474 = vst [vmem:[%s172 + $0x78] sm:$0xf] %v410
      %475 = vst [vmem:[%s172 + $0x7c] sm:$0xf] %v411
      %s476 = smul.u32 32, %s14
      %p477 = scmp.lt.s32.totalorder %s476, 63
      %s478 = scalar_select %p477, %s476, 63
      %s479 = smul.addr %s478, 4
      %s480 = scalar_lea.vmem %s3, %s479
      // Predicated region
      $region33: #{upconv_forward.7} parent=31 // pred_check
        %p481 = pneg %p100
      $region34: #{upconv_forward.7} parent=31 // pred_check_branch
        %483 = sbr.rel (%p481) target = $region36
      $region35: #{upconv_forward.7} parent=31 // pred_region
        %s484 = smul.u32 32, %s14
      $region36: #{upconv_forward.7} parent=31 // pred_fallthru
        _
    $region32: #{upconv_forward.7} parent=5 // pred_fallthru
      _
    %p485 = scmp.le.s32.totalorder 2, %s9
    // Predicated region
    $region37: #{upconv_forward.7} parent=5 // pred_check
      %p486 = pneg %p485
    $region38: #{upconv_forward.7} parent=5 // pred_check_branch
      %488 = sbr.rel (%p486) target = $region40
    $region39: #{upconv_forward.7} parent=5 // pred_region
      %s489 = ssub.s32 %s9, 2
      // Predicated region
      $region41: #{upconv_forward.7} parent=39 // pred_check
        %p490 = pneg %p106
      $region42: #{upconv_forward.7} parent=39 // pred_check_branch
        %492 = sbr.rel (%p490) target = $region44
      $region43: #{upconv_forward.7} parent=39 // pred_region
        %s493 = smul.u32 32, %s15
        %p494 = scmp.lt.s32.totalorder %s493, 63
        %s495 = scalar_select %p494, %s493, 63
        %s496 = smul.addr %s495, 4
        %s497 = scalar_lea.vmem %s3, %s496
      $region44: #{upconv_forward.7} parent=39 // pred_fallthru
        _
    $region40: #{upconv_forward.7} parent=5 // pred_fallthru
      _
  $region6: #{upconv_forward.7} parent=0 // loop_footer
    %s13 = sadd.s32 1, %s9
  $region7: #{upconv_forward.7} parent=0 // loop_footer_branch
    %8 = sbr.rel target = $region3
  $region8: #{upconv_forward.7} parent=0 // loop_exit
    _

// kernel: upconv_forward.9
$region0: #{upconv_forward.9}
  #allocation0 [shape = 'u32[]', space=smem, size = 0x4, offset = 0x4, fixed_abs, tag = 'smem constant byte address 0x4 - core index']
  #allocation1 [shape = 'u32[144,128]{1,0:T(1,128)}', space=vmem, size = 0x12000, scoped, tag = 'internal scratch']
  %s0 = inlined_call_operand.vmem [shape: f32[512,128], index: 0, kind: input, shape index: {}]
  %s1 = inlined_call_operand.vmem [shape: f32[1,128], index: 1, kind: input, shape index: {}]
  %s2 = inlined_call_operand.vmem [shape: f32[1,128], index: 2, kind: input, shape index: {}]
  %s3 = inlined_call_operand.vmem [shape: f32[512,128], index: 3, kind: output, shape index: {}]
  %s4 = sld [smem:[#allocation0]]
  $region45: #{upconv_forward.9} parent=0
    _
  %s6 = ssub.s32 1, %s4
  %s7 = scalar_select 0, %s6, %s4
  loop: start=0, step=1, limit=4
  $region2: #{upconv_forward.9} parent=0 // loop_pre_header
    _
  $region3: #{upconv_forward.9} parent=0 // loop_header
    %s9 = sphi 0, %s13
    %p10 = scmp.ge.s32.totalorder %s9, 4
    %s19 = sphi 0, %s21
    %s22 = sphi 0, %s19
    %s23 = sphi 0, %s22
    %s39 = sphi 0, %s23
    %s43 = sphi 0, %s43
    %s45 = sphi 0, %s43
    %s46 = sphi 0, %s45
    %s60 = sphi 0, %s46
    %s64 = sphi 0, %s64
    %s66 = sphi 0, %s64
    %s67 = sphi 0, %s66
    %s81 = sphi 0, %s67
    %s87 = sphi 0, %s89
    %s90 = sphi 0, %s87
    %s91 = sphi 0, %s90
    %s107 = sphi 0, %s91
  $region4: #{upconv_forward.9} parent=0 // loop_header_branch
    %12 = sbr.rel (%p10) target = $region8
  $region5: #{upconv_forward.9} parent=0 // loop_body
    %s14 = ssub.s32 %s9, 1
    %s15 = ssub.s32 %s9, 2
    %s16 = sadd.s32 %s9, 1
    %s17 = ssub.s32 %s9, %s16
    %p18 = scmp.eq.s32.totalorder %s17, 0
    %s20 = sadd.s32 %s19, 1
    %s21 = scalar_select %p18, %s19, %s20
    %p24 = pneg %p18
    %p25 = scmp.eq.s32.totalorder %s9, 1
    %p26 = por %p24, %p25
    %p27 = scmp.ne.s32.totalorder %s19, %s22
    %p28 = scmp.eq.s32.totalorder %s9, 0
    %p29 = por %p27, %p28
    %p30 = scmp.ne.s32.totalorder %s19, %s22
    %p31 = scmp.eq.s32.totalorder %s14, 1
    %p32 = por %p30, %p31
    %p33 = scmp.ne.s32.totalorder %s22, %s23
    %p34 = scmp.eq.s32.totalorder %s14, 0
    %p35 = por %p33, %p34
    %p36 = scmp.ne.s32.totalorder %s22, %s23
    %p37 = scmp.eq.s32.totalorder %s15, 1
    %p38 = por %p36, %p37
    %p40 = scmp.ne.s32.totalorder %s23, %s39
    %p41 = scmp.eq.s32.totalorder %s15, 0
    %p42 = por %p40, %p41
    %s44 = sadd.s32 %s43, 1
    %p47 = scmp.eq.s32.totalorder %s9, 1
    %p48 = scmp.ne.s32.totalorder %s43, %s45
    %p49 = scmp.eq.s32.totalorder %s9, 0
    %p50 = por %p48, %p49
    %p51 = scmp.ne.s32.totalorder %s43, %s45
    %p52 = scmp.eq.s32.totalorder %s14, 1
    %p53 = por %p51, %p52
    %p54 = scmp.ne.s32.totalorder %s45, %s46
    %p55 = scmp.eq.s32.totalorder %s14, 0
    %p56 = por %p54, %p55
    %p57 = scmp.ne.s32.totalorder %s45, %s46
    %p58 = scmp.eq.s32.totalorder %s15, 1
    %p59 = por %p57, %p58
    %p61 = scmp.ne.s32.totalorder %s46, %s60
    %p62 = scmp.eq.s32.totalorder %s15, 0
    %p63 = por %p61, %p62
    %s65 = sadd.s32 %s64, 1
    %p68 = scmp.eq.s32.totalorder %s9, 1
    %p69 = scmp.ne.s32.totalorder %s64, %s66
    %p70 = scmp.eq.s32.totalorder %s9, 0
    %p71 = por %p69, %p70
    %p72 = scmp.ne.s32.totalorder %s64, %s66
    %p73 = scmp.eq.s32.totalorder %s14, 1
    %p74 = por %p72, %p73
    %p75 = scmp.ne.s32.totalorder %s66, %s67
    %p76 = scmp.eq.s32.totalorder %s14, 0
    %p77 = por %p75, %p76
    %p78 = scmp.ne.s32.totalorder %s66, %s67
    %p79 = scmp.eq.s32.totalorder %s15, 1
    %p80 = por %p78, %p79
    %p82 = scmp.ne.s32.totalorder %s67, %s81
    %p83 = scmp.eq.s32.totalorder %s15, 0
    %p84 = por %p82, %p83
    %s85 = ssub.s32 %s9, %s16
    %p86 = scmp.eq.s32.totalorder %s85, 0
    %s88 = sadd.s32 %s87, 1
    %s89 = scalar_select %p86, %s87, %s88
    %p92 = pneg %p86
    %p93 = scmp.eq.s32.totalorder %s9, 1
    %p94 = por %p92, %p93
    %p95 = scmp.ne.s32.totalorder %s87, %s90
    %p96 = scmp.eq.s32.totalorder %s9, 0
    %p97 = por %p95, %p96
    %p98 = scmp.ne.s32.totalorder %s87, %s90
    %p99 = scmp.eq.s32.totalorder %s14, 1
    %p100 = por %p98, %p99
    %p101 = scmp.ne.s32.totalorder %s90, %s91
    %p102 = scmp.eq.s32.totalorder %s14, 0
    %p103 = por %p101, %p102
    %p104 = scmp.ne.s32.totalorder %s90, %s91
    %p105 = scmp.eq.s32.totalorder %s15, 1
    %p106 = por %p104, %p105
    %p108 = scmp.ne.s32.totalorder %s91, %s107
    %p109 = scmp.eq.s32.totalorder %s15, 0
    %p110 = por %p108, %p109
    %p111 = scmp.le.s32.totalorder 1, %s9
    %p112 = scmp.lt.s32.totalorder %s9, 3
    %p113 = pnand %p111, %p112
    %p114 = pneg %p113
    // Predicated region
    $region9: #{upconv_forward.9} parent=5 // pred_check
      _
    $region10: #{upconv_forward.9} parent=5 // pred_check_branch
      %116 = sbr.rel (%p113) target = $region12
    $region11: #{upconv_forward.9} parent=5 // pred_region
      %s117 = ssub.s32 %s9, 1
      // Predicated region
      $region13: #{upconv_forward.9} parent=11 // pred_check
        %p118 = pneg %p56
      $region14: #{upconv_forward.9} parent=11 // pred_check_branch
        %120 = sbr.rel (%p118) target = $region16
      $region15: #{upconv_forward.9} parent=11 // pred_region
        _
      $region16: #{upconv_forward.9} parent=11 // pred_fallthru
        _
      // Predicated region
      $region17: #{upconv_forward.9} parent=11 // pred_check
        %p121 = pneg %p77
      $region18: #{upconv_forward.9} parent=11 // pred_check_branch
        %123 = sbr.rel (%p121) target = $region20
      $region19: #{upconv_forward.9} parent=11 // pred_region
        _
      $region20: #{upconv_forward.9} parent=11 // pred_fallthru
        _
    $region12: #{upconv_forward.9} parent=5 // pred_fallthru
      _
    %p124 = scmp.lt.s32.totalorder %s9, 2
    // Predicated region
    $region21: #{upconv_forward.9} parent=5 // pred_check
      %p125 = pneg %p124
    $region22: #{upconv_forward.9} parent=5 // pred_check_branch
      %127 = sbr.rel (%p125) target = $region24
    $region23: #{upconv_forward.9} parent=5 // pred_region
      // Predicated region
      $region25: #{upconv_forward.9} parent=23 // pred_check
        %p128 = pneg %p29
      $region26: #{upconv_forward.9} parent=23 // pred_check_branch
        %130 = sbr.rel (%p128) target = $region28
      $region27: #{upconv_forward.9} parent=23 // pred_region
        %s131 = smul.u32 32, %s9
        %p132 = scmp.lt.s32.totalorder %s131, 63
        %s133 = scalar_select %p132, %s131, 63
        %s134 = smul.addr %s133, 8
        %s135 = scalar_lea.vmem %s0, %s134
        %s136 = smul.u32 32, %s9
      $region28: #{upconv_forward.9} parent=23 // pred_fallthru
        _
    $region24: #{upconv_forward.9} parent=5 // pred_fallthru
      _
    %p137 = scmp.le.s32.totalorder 1, %s9
    %p138 = scmp.lt.s32.totalorder %s9, 3
    %p139 = pnand %p137, %p138
    %p140 = pneg %p139
    // Predicated region
    $region29: #{upconv_forward.9} parent=5 // pred_check
      _
    $region30: #{upconv_forward.9} parent=5 // pred_check_branch
      %142 = sbr.rel (%p139) target = $region32
    $region31: #{upconv_forward.9} parent=5 // pred_region
      %s143 = ssub.s32 %s9, 1
      %s144 = smul.u32 32, %s14
      %p145 = scmp.lt.s32.totalorder %s144, 63
      %s146 = scalar_select %p145, %s144, 63
      %s147 = smul.addr %s146, 8
      %s148 = scalar_lea.vmem %s0, %s147
      %p149 = pneg %p35
      %p150 = pneg %p32
      %p151 = pneg %p56
      %p152 = pneg %p53
      %p153 = pneg %p77
      %p154 = pneg %p74
      %p155 = pneg %p103
      %p156 = pneg %p100
      %s157 = smul.u32 32, %s14
      %p158 = scmp.lt.s32.totalorder %s157, 63
      %s159 = scalar_select %p158, %s157, 63
      %s160 = smul.addr %s159, 8
      %s161 = scalar_lea.vmem %s3, %s160
      %s162 = smul.u32 32, %s14
      %p163 = scmp.lt.s32.totalorder %s162, 63
      %s164 = scalar_select %p163, %s162, 63
      %s165 = smul.addr %s164, 8
      %s166 = scalar_lea.vmem %s0, %s165
      %s167 = smul.u32 32, %s14
      %s168 = smul.u32 32, %s14
      %p169 = scmp.lt.s32.totalorder %s168, 63
      %s170 = scalar_select %p169, %s168, 63
      %s171 = smul.addr %s170, 8
      %s172 = scalar_lea.vmem %s3, %s171
      %s173 = smul.u32 32, %s14
      %v174 = vld [vmem:[%s166] sm:$0xff]
      %v175 = vld [vmem:[%s166 + $0x8] sm:$0xff]
      %v176 = vld [vmem:[%s166 + $0x10] sm:$0xff]
      %v177 = vld [vmem:[%s166 + $0x18] sm:$0xff]
      %v178 = vld [vmem:[%s166 + $0x20] sm:$0xff]
      %v179 = vld [vmem:[%s166 + $0x28] sm:$0xff]
      %v180 = vld [vmem:[%s166 + $0x30] sm:$0xff]
      %v181 = vld [vmem:[%s166 + $0x38] sm:$0xff]
      %v182 = vld [vmem:[%s166 + $0x40] sm:$0xff]
      %v183 = vld [vmem:[%s166 + $0x48] sm:$0xff]
      %v184 = vld [vmem:[%s166 + $0x50] sm:$0xff]
      %v185 = vld [vmem:[%s166 + $0x58] sm:$0xff]
      %v186 = vld [vmem:[%s166 + $0x60] sm:$0xff]
      %v187 = vld [vmem:[%s166 + $0x68] sm:$0xff]
      %v188 = vld [vmem:[%s166 + $0x70] sm:$0xff]
      %v189 = vld [vmem:[%s166 + $0x78] sm:$0xff]
      %v190 = vld [vmem:[%s166 + $0x80] sm:$0xff]
      %v191 = vld [vmem:[%s166 + $0x88] sm:$0xff]
      %v192 = vld [vmem:[%s166 + $0x90] sm:$0xff]
      %v193 = vld [vmem:[%s166 + $0x98] sm:$0xff]
      %v194 = vld [vmem:[%s166 + $0xa0] sm:$0xff]
      %v195 = vld [vmem:[%s166 + $0xa8] sm:$0xff]
      %v196 = vld [vmem:[%s166 + $0xb0] sm:$0xff]
      %v197 = vld [vmem:[%s166 + $0xb8] sm:$0xff]
      %v198 = vld [vmem:[%s166 + $0xc0] sm:$0xff]
      %v199 = vld [vmem:[%s166 + $0xc8] sm:$0xff]
      %v200 = vld [vmem:[%s166 + $0xd0] sm:$0xff]
      %v201 = vld [vmem:[%s166 + $0xd8] sm:$0xff]
      %v202 = vld [vmem:[%s166 + $0xe0] sm:$0xff]
      %v203 = vld [vmem:[%s166 + $0xe8] sm:$0xff]
      %v204 = vld [vmem:[%s166 + $0xf0] sm:$0xff]
      %v205 = vld [vmem:[%s166 + $0xf8] sm:$0xff]
      %v206 = vld [vmem:[%s1] sm:$0x1]
      %v208 = vlaneseq
      %v209 = vshrl.u32 %v208, 7
      %v210 = vsub.s32 0, %v209
      %v211 = vrot.slane %v206, %v210
      %v213 = vmul.f32 %v174, %v211
      %v214 = vmul.f32 %v175, %v211
      %v215 = vmul.f32 %v176, %v211
      %v216 = vmul.f32 %v177, %v211
      %v217 = vmul.f32 %v178, %v211
      %v218 = vmul.f32 %v179, %v211
      %v219 = vmul.f32 %v180, %v211
      %v220 = vmul.f32 %v181, %v211
      %v221 = vmul.f32 %v182, %v211
      %v222 = vmul.f32 %v183, %v211
      %v223 = vmul.f32 %v184, %v211
      %v224 = vmul.f32 %v185, %v211
      %v225 = vmul.f32 %v186, %v211
      %v226 = vmul.f32 %v187, %v211
      %v227 = vmul.f32 %v188, %v211
      %v228 = vmul.f32 %v189, %v211
      %v229 = vmul.f32 %v190, %v211
      %v230 = vmul.f32 %v191, %v211
      %v231 = vmul.f32 %v192, %v211
      %v232 = vmul.f32 %v193, %v211
      %v233 = vmul.f32 %v194, %v211
      %v234 = vmul.f32 %v195, %v211
      %v235 = vmul.f32 %v196, %v211
      %v236 = vmul.f32 %v197, %v211
      %v237 = vmul.f32 %v198, %v211
      %v238 = vmul.f32 %v199, %v211
      %v239 = vmul.f32 %v200, %v211
      %v240 = vmul.f32 %v201, %v211
      %v241 = vmul.f32 %v202, %v211
      %v242 = vmul.f32 %v203, %v211
      %v243 = vmul.f32 %v204, %v211
      %v244 = vmul.f32 %v205, %v211
      %v245 = vld [vmem:[%s2] sm:$0x1]
      %v247 = vlaneseq
      %v248 = vshrl.u32 %v247, 7
      %v249 = vsub.s32 0, %v248
      %v250 = vrot.slane %v245, %v249
      %v252 = vadd.f32 %v213, %v250
      %v253 = vadd.f32 %v214, %v250
      %v254 = vadd.f32 %v215, %v250
      %v255 = vadd.f32 %v216, %v250
      %v256 = vadd.f32 %v217, %v250
      %v257 = vadd.f32 %v218, %v250
      %v258 = vadd.f32 %v219, %v250
      %v259 = vadd.f32 %v220, %v250
      %v260 = vadd.f32 %v221, %v250
      %v261 = vadd.f32 %v222, %v250
      %v262 = vadd.f32 %v223, %v250
      %v263 = vadd.f32 %v224, %v250
      %v264 = vadd.f32 %v225, %v250
      %v265 = vadd.f32 %v226, %v250
      %v266 = vadd.f32 %v227, %v250
      %v267 = vadd.f32 %v228, %v250
      %v268 = vadd.f32 %v229, %v250
      %v269 = vadd.f32 %v230, %v250
      %v270 = vadd.f32 %v231, %v250
      %v271 = vadd.f32 %v232, %v250
      %v272 = vadd.f32 %v233, %v250
      %v273 = vadd.f32 %v234, %v250
      %v274 = vadd.f32 %v235, %v250
      %v275 = vadd.f32 %v236, %v250
      %v276 = vadd.f32 %v237, %v250
      %v277 = vadd.f32 %v238, %v250
      %v278 = vadd.f32 %v239, %v250
      %v279 = vadd.f32 %v240, %v250
      %v280 = vadd.f32 %v241, %v250
      %v281 = vadd.f32 %v242, %v250
      %v282 = vadd.f32 %v243, %v250
      %v283 = vadd.f32 %v244, %v250
      %v284 = vmax.f32 %v252, 0.0
      %v285 = vmax.f32 %v253, 0.0
      %v286 = vmax.f32 %v254, 0.0
      %v287 = vmax.f32 %v255, 0.0
      %v288 = vmax.f32 %v256, 0.0
      %v289 = vmax.f32 %v257, 0.0
      %v290 = vmax.f32 %v258, 0.0
      %v291 = vmax.f32 %v259, 0.0
      %v292 = vmax.f32 %v260, 0.0
      %v293 = vmax.f32 %v261, 0.0
      %v294 = vmax.f32 %v262, 0.0
      %v295 = vmax.f32 %v263, 0.0
      %v296 = vmax.f32 %v264, 0.0
      %v297 = vmax.f32 %v265, 0.0
      %v298 = vmax.f32 %v266, 0.0
      %v299 = vmax.f32 %v267, 0.0
      %v300 = vmax.f32 %v268, 0.0
      %v301 = vmax.f32 %v269, 0.0
      %v302 = vmax.f32 %v270, 0.0
      %v303 = vmax.f32 %v271, 0.0
      %v304 = vmax.f32 %v272, 0.0
      %v305 = vmax.f32 %v273, 0.0
      %v306 = vmax.f32 %v274, 0.0
      %v307 = vmax.f32 %v275, 0.0
      %v308 = vmax.f32 %v276, 0.0
      %v309 = vmax.f32 %v277, 0.0
      %v310 = vmax.f32 %v278, 0.0
      %v311 = vmax.f32 %v279, 0.0
      %v312 = vmax.f32 %v280, 0.0
      %v313 = vmax.f32 %v281, 0.0
      %v314 = vmax.f32 %v282, 0.0
      %v315 = vmax.f32 %v283, 0.0
      %316 = vst [vmem:[%s172] sm:$0xff] %v284
      %317 = vst [vmem:[%s172 + $0x8] sm:$0xff] %v285
      %318 = vst [vmem:[%s172 + $0x10] sm:$0xff] %v286
      %319 = vst [vmem:[%s172 + $0x18] sm:$0xff] %v287
      %320 = vst [vmem:[%s172 + $0x20] sm:$0xff] %v288
      %321 = vst [vmem:[%s172 + $0x28] sm:$0xff] %v289
      %322 = vst [vmem:[%s172 + $0x30] sm:$0xff] %v290
      %323 = vst [vmem:[%s172 + $0x38] sm:$0xff] %v291
      %324 = vst [vmem:[%s172 + $0x40] sm:$0xff] %v292
      %325 = vst [vmem:[%s172 + $0x48] sm:$0xff] %v293
      %326 = vst [vmem:[%s172 + $0x50] sm:$0xff] %v294
      %327 = vst [vmem:[%s172 + $0x58] sm:$0xff] %v295
      %328 = vst [vmem:[%s172 + $0x60] sm:$0xff] %v296
      %329 = vst [vmem:[%s172 + $0x68] sm:$0xff] %v297
      %330 = vst [vmem:[%s172 + $0x70] sm:$0xff] %v298
      %331 = vst [vmem:[%s172 + $0x78] sm:$0xff] %v299
      %332 = vst [vmem:[%s172 + $0x80] sm:$0xff] %v300
      %333 = vst [vmem:[%s172 + $0x88] sm:$0xff] %v301
      %334 = vst [vmem:[%s172 + $0x90] sm:$0xff] %v302
      %335 = vst [vmem:[%s172 + $0x98] sm:$0xff] %v303
      %336 = vst [vmem:[%s172 + $0xa0] sm:$0xff] %v304
      %337 = vst [vmem:[%s172 + $0xa8] sm:$0xff] %v305
      %338 = vst [vmem:[%s172 + $0xb0] sm:$0xff] %v306
      %339 = vst [vmem:[%s172 + $0xb8] sm:$0xff] %v307
      %340 = vst [vmem:[%s172 + $0xc0] sm:$0xff] %v308
      %341 = vst [vmem:[%s172 + $0xc8] sm:$0xff] %v309
      %342 = vst [vmem:[%s172 + $0xd0] sm:$0xff] %v310
      %343 = vst [vmem:[%s172 + $0xd8] sm:$0xff] %v311
      %344 = vst [vmem:[%s172 + $0xe0] sm:$0xff] %v312
      %345 = vst [vmem:[%s172 + $0xe8] sm:$0xff] %v313
      %346 = vst [vmem:[%s172 + $0xf0] sm:$0xff] %v314
      %347 = vst [vmem:[%s172 + $0xf8] sm:$0xff] %v315
      %s348 = smul.u32 32, %s14
      %p349 = scmp.lt.s32.totalorder %s348, 63
      %s350 = scalar_select %p349, %s348, 63
      %s351 = smul.addr %s350, 8
      %s352 = scalar_lea.vmem %s3, %s351
      // Predicated region
      $region33: #{upconv_forward.9} parent=31 // pred_check
        %p353 = pneg %p100
      $region34: #{upconv_forward.9} parent=31 // pred_check_branch
        %355 = sbr.rel (%p353) target = $region36
      $region35: #{upconv_forward.9} parent=31 // pred_region
        %s356 = smul.u32 32, %s14
      $region36: #{upconv_forward.9} parent=31 // pred_fallthru
        _
    $region32: #{upconv_forward.9} parent=5 // pred_fallthru
      _
    %p357 = scmp.le.s32.totalorder 2, %s9
    // Predicated region
    $region37: #{upconv_forward.9} parent=5 // pred_check
      %p358 = pneg %p357
    $region38: #{upconv_forward.9} parent=5 // pred_check_branch
      %360 = sbr.rel (%p358) target = $region40
    $region39: #{upconv_forward.9} parent=5 // pred_region
      %s361 = ssub.s32 %s9, 2
      // Predicated region
      $region41: #{upconv_forward.9} parent=39 // pred_check
        %p362 = pneg %p106
      $region42: #{upconv_forward.9} parent=39 // pred_check_branch
        %364 = sbr.rel (%p362) target = $region44
      $region43: #{upconv_forward.9} parent=39 // pred_region
        %s365 = smul.u32 32, %s15
        %p366 = scmp.lt.s32.totalorder %s365, 63
        %s367 = scalar_select %p366, %s365, 63
        %s368 = smul.addr %s367, 8
        %s369 = scalar_lea.vmem %s3, %s368
      $region44: #{upconv_forward.9} parent=39 // pred_fallthru
        _
    $region40: #{upconv_forward.9} parent=5 // pred_fallthru
      _
  $region6: #{upconv_forward.9} parent=0 // loop_footer
    %s13 = sadd.s32 1, %s9
  $region7: #{upconv_forward.9} parent=0 // loop_footer_branch
    %8 = sbr.rel target = $region3
  $region8: #{upconv_forward.9} parent=0 // loop_exit
    _

// kernel: upconv_forward.6
$region0: #{upconv_forward.6}
  #allocation0 [shape = 'u32[]', space=smem, size = 0x4, offset = 0x4, fixed_abs, tag = 'smem constant byte address 0x4 - core index']
  #allocation1 [shape = 'u32[144,128]{1,0:T(1,128)}', space=vmem, size = 0x12000, scoped, tag = 'internal scratch']
  #allocation2 [shape = 'bf16[256,72]{1,0:T(16,128)(2,1)}', space=vmem, size = 0x10000, scoped, tag = 'scratch operand']
  %s0 = inlined_call_operand.vmem [shape: bf16[2,18,18,8], index: 0, kind: input, shape index: {}]
  %s1 = inlined_call_operand.vmem [shape: bf16[72,128], index: 1, kind: input, shape index: {}]
  %s2 = inlined_call_operand.vmem [shape: f32[1,128], index: 2, kind: input, shape index: {}]
  %s3 = inlined_call_operand.vmem [shape: f32[2,256,128], index: 3, kind: output, shape index: {0}]
  %s4 = inlined_call_operand.vmem [shape: f32[2,1,128], index: 4, kind: output, shape index: {1}]
  %s5 = inlined_call_operand.vmem [shape: f32[2,1,128], index: 5, kind: output, shape index: {2}]
  %6 = xla_tuple %s3, %s4, %s5
  %s7 = sld [smem:[#allocation0]]
  $region61: #{upconv_forward.6} parent=0
    _
  %s9 = ssub.s32 1, %s7
  %s10 = scalar_select 0, %s9, %s7
  loop: start=0, step=1, limit=4
  $region2: #{upconv_forward.6} parent=0 // loop_pre_header
    _
  $region3: #{upconv_forward.6} parent=0 // loop_header
    %s12 = sphi 0, %s16
    %p13 = scmp.ge.s32.totalorder %s12, 4
    %s22 = sphi 0, %s24
    %s25 = sphi 0, %s22
    %s26 = sphi 0, %s25
    %s42 = sphi 0, %s26
    %s46 = sphi 0, %s46
    %s48 = sphi 0, %s46
    %s49 = sphi 0, %s48
    %s63 = sphi 0, %s49
    %s67 = sphi 0, %s67
    %s69 = sphi 0, %s67
    %s70 = sphi 0, %s69
    %s84 = sphi 0, %s70
    %s90 = sphi 0, %s92
    %s93 = sphi 0, %s90
    %s94 = sphi 0, %s93
    %s110 = sphi 0, %s94
    %s116 = sphi 0, %s118
    %s119 = sphi 0, %s116
    %s120 = sphi 0, %s119
    %s136 = sphi 0, %s120
    %s142 = sphi 0, %s144
    %s145 = sphi 0, %s142
    %s146 = sphi 0, %s145
    %s162 = sphi 0, %s146
  $region4: #{upconv_forward.6} parent=0 // loop_header_branch
    %15 = sbr.rel (%p13) target = $region8
  $region5: #{upconv_forward.6} parent=0 // loop_body
    %s17 = ssub.s32 %s12, 1
    %s18 = ssub.s32 %s12, 2
    %s19 = sadd.s32 %s12, 1
    %s20 = ssub.s32 %s12, %s19
    %p21 = scmp.eq.s32.totalorder %s20, 0
    %s23 = sadd.s32 %s22, 1
    %s24 = scalar_select %p21, %s22, %s23
    %p27 = pneg %p21
    %p28 = scmp.eq.s32.totalorder %s12, 1
    %p29 = por %p27, %p28
    %p30 = scmp.ne.s32.totalorder %s22, %s25
    %p31 = scmp.eq.s32.totalorder %s12, 0
    %p32 = por %p30, %p31
    %p33 = scmp.ne.s32.totalorder %s22, %s25
    %p34 = scmp.eq.s32.totalorder %s17, 1
    %p35 = por %p33, %p34
    %p36 = scmp.ne.s32.totalorder %s25, %s26
    %p37 = scmp.eq.s32.totalorder %s17, 0
    %p38 = por %p36, %p37
    %p39 = scmp.ne.s32.totalorder %s25, %s26
    %p40 = scmp.eq.s32.totalorder %s18, 1
    %p41 = por %p39, %p40
    %p43 = scmp.ne.s32.totalorder %s26, %s42
    %p44 = scmp.eq.s32.totalorder %s18, 0
    %p45 = por %p43, %p44
    %s47 = sadd.s32 %s46, 1
    %p50 = scmp.eq.s32.totalorder %s12, 1
    %p51 = scmp.ne.s32.totalorder %s46, %s48
    %p52 = scmp.eq.s32.totalorder %s12, 0
    %p53 = por %p51, %p52
    %p54 = scmp.ne.s32.totalorder %s46, %s48
    %p55 = scmp.eq.s32.totalorder %s17, 1
    %p56 = por %p54, %p55
    %p57 = scmp.ne.s32.totalorder %s48, %s49
    %p58 = scmp.eq.s32.totalorder %s17, 0
    %p59 = por %p57, %p58
    %p60 = scmp.ne.s32.totalorder %s48, %s49
    %p61 = scmp.eq.s32.totalorder %s18, 1
    %p62 = por %p60, %p61
    %p64 = scmp.ne.s32.totalorder %s49, %s63
    %p65 = scmp.eq.s32.totalorder %s18, 0
    %p66 = por %p64, %p65
    %s68 = sadd.s32 %s67, 1
    %p71 = scmp.eq.s32.totalorder %s12, 1
    %p72 = scmp.ne.s32.totalorder %s67, %s69
    %p73 = scmp.eq.s32.totalorder %s12, 0
    %p74 = por %p72, %p73
    %p75 = scmp.ne.s32.totalorder %s67, %s69
    %p76 = scmp.eq.s32.totalorder %s17, 1
    %p77 = por %p75, %p76
    %p78 = scmp.ne.s32.totalorder %s69, %s70
    %p79 = scmp.eq.s32.totalorder %s17, 0
    %p80 = por %p78, %p79
    %p81 = scmp.ne.s32.totalorder %s69, %s70
    %p82 = scmp.eq.s32.totalorder %s18, 1
    %p83 = por %p81, %p82
    %p85 = scmp.ne.s32.totalorder %s70, %s84
    %p86 = scmp.eq.s32.totalorder %s18, 0
    %p87 = por %p85, %p86
    %s88 = ssub.s32 %s12, %s19
    %p89 = scmp.eq.s32.totalorder %s88, 0
    %s91 = sadd.s32 %s90, 1
    %s92 = scalar_select %p89, %s90, %s91
    %p95 = pneg %p89
    %p96 = scmp.eq.s32.totalorder %s12, 1
    %p97 = por %p95, %p96
    %p98 = scmp.ne.s32.totalorder %s90, %s93
    %p99 = scmp.eq.s32.totalorder %s12, 0
    %p100 = por %p98, %p99
    %p101 = scmp.ne.s32.totalorder %s90, %s93
    %p102 = scmp.eq.s32.totalorder %s17, 1
    %p103 = por %p101, %p102
    %p104 = scmp.ne.s32.totalorder %s93, %s94
    %p105 = scmp.eq.s32.totalorder %s17, 0
    %p106 = por %p104, %p105
    %p107 = scmp.ne.s32.totalorder %s93, %s94
    %p108 = scmp.eq.s32.totalorder %s18, 1
    %p109 = por %p107, %p108
    %p111 = scmp.ne.s32.totalorder %s94, %s110
    %p112 = scmp.eq.s32.totalorder %s18, 0
    %p113 = por %p111, %p112
    %s114 = ssub.s32 %s12, %s19
    %p115 = scmp.eq.s32.totalorder %s114, 0
    %s117 = sadd.s32 %s116, 1
    %s118 = scalar_select %p115, %s116, %s117
    %p121 = pneg %p115
    %p122 = scmp.eq.s32.totalorder %s12, 1
    %p123 = por %p121, %p122
    %p124 = scmp.ne.s32.totalorder %s116, %s119
    %p125 = scmp.eq.s32.totalorder %s12, 0
    %p126 = por %p124, %p125
    %p127 = scmp.ne.s32.totalorder %s116, %s119
    %p128 = scmp.eq.s32.totalorder %s17, 1
    %p129 = por %p127, %p128
    %p130 = scmp.ne.s32.totalorder %s119, %s120
    %p131 = scmp.eq.s32.totalorder %s17, 0
    %p132 = por %p130, %p131
    %p133 = scmp.ne.s32.totalorder %s119, %s120
    %p134 = scmp.eq.s32.totalorder %s18, 1
    %p135 = por %p133, %p134
    %p137 = scmp.ne.s32.totalorder %s120, %s136
    %p138 = scmp.eq.s32.totalorder %s18, 0
    %p139 = por %p137, %p138
    %s140 = ssub.s32 %s12, %s19
    %p141 = scmp.eq.s32.totalorder %s140, 0
    %s143 = sadd.s32 %s142, 1
    %s144 = scalar_select %p141, %s142, %s143
    %p147 = pneg %p141
    %p148 = scmp.eq.s32.totalorder %s12, 1
    %p149 = por %p147, %p148
    %p150 = scmp.ne.s32.totalorder %s142, %s145
    %p151 = scmp.eq.s32.totalorder %s12, 0
    %p152 = por %p150, %p151
    %p153 = scmp.ne.s32.totalorder %s142, %s145
    %p154 = scmp.eq.s32.totalorder %s17, 1
    %p155 = por %p153, %p154
    %p156 = scmp.ne.s32.totalorder %s145, %s146
    %p157 = scmp.eq.s32.totalorder %s17, 0
    %p158 = por %p156, %p157
    %p159 = scmp.ne.s32.totalorder %s145, %s146
    %p160 = scmp.eq.s32.totalorder %s18, 1
    %p161 = por %p159, %p160
    %p163 = scmp.ne.s32.totalorder %s146, %s162
    %p164 = scmp.eq.s32.totalorder %s18, 0
    %p165 = por %p163, %p164
    %p166 = scmp.le.s32.totalorder 1, %s12
    %p167 = scmp.lt.s32.totalorder %s12, 3
    %p168 = pnand %p166, %p167
    %p169 = pneg %p168
    // Predicated region
    $region9: #{upconv_forward.6} parent=5 // pred_check
      _
    $region10: #{upconv_forward.6} parent=5 // pred_check_branch
      %171 = sbr.rel (%p168) target = $region12
    $region11: #{upconv_forward.6} parent=5 // pred_region
      %s172 = ssub.s32 %s12, 1
      // Predicated region
      $region13: #{upconv_forward.6} parent=11 // pred_check
        %p173 = pneg %p59
      $region14: #{upconv_forward.6} parent=11 // pred_check_branch
        %175 = sbr.rel (%p173) target = $region16
      $region15: #{upconv_forward.6} parent=11 // pred_region
        _
      $region16: #{upconv_forward.6} parent=11 // pred_fallthru
        _
      // Predicated region
      $region17: #{upconv_forward.6} parent=11 // pred_check
        %p176 = pneg %p80
      $region18: #{upconv_forward.6} parent=11 // pred_check_branch
        %178 = sbr.rel (%p176) target = $region20
      $region19: #{upconv_forward.6} parent=11 // pred_region
        _
      $region20: #{upconv_forward.6} parent=11 // pred_fallthru
        _
    $region12: #{upconv_forward.6} parent=5 // pred_fallthru
      _
    %p179 = scmp.lt.s32.totalorder %s12, 2
    // Predicated region
    $region21: #{upconv_forward.6} parent=5 // pred_check
      %p180 = pneg %p179
    $region22: #{upconv_forward.6} parent=5 // pred_check_branch
      %182 = sbr.rel (%p180) target = $region24
    $region23: #{upconv_forward.6} parent=5 // pred_region
      // Predicated region
      $region25: #{upconv_forward.6} parent=23 // pred_check
        %p183 = pneg %p32
      $region26: #{upconv_forward.6} parent=23 // pred_check_branch
        %185 = sbr.rel (%p183) target = $region28
      $region27: #{upconv_forward.6} parent=23 // pred_region
        %p186 = scmp.lt.s32.totalorder %s12, 1
        %s187 = scalar_select %p186, %s12, 1
        %s188 = smul.addr %s187, 54
        %s189 = smul.addr %s188, 4
        %s190 = scalar_lea.vmem %s0, %s189
      $region28: #{upconv_forward.6} parent=23 // pred_fallthru
        _
    $region24: #{upconv_forward.6} parent=5 // pred_fallthru
      _
    %p191 = scmp.le.s32.totalorder 1, %s12
    %p192 = scmp.lt.s32.totalorder %s12, 3
    %p193 = pnand %p191, %p192
    %p194 = pneg %p193
    // Predicated region
    $region29: #{upconv_forward.6} parent=5 // pred_check
      _
    $region30: #{upconv_forward.6} parent=5 // pred_check_branch
      %196 = sbr.rel (%p193) target = $region32
    $region31: #{upconv_forward.6} parent=5 // pred_region
      %s197 = ssub.s32 %s12, 1
      %p198 = scmp.lt.s32.totalorder %s17, 1
      %s199 = scalar_select %p198, %s17, 1
      %s200 = smul.addr %s199, 54
      %s201 = smul.addr %s200, 4
      %s202 = scalar_lea.vmem %s0, %s201
      %p203 = pneg %p38
      %p204 = pneg %p35
      %p205 = pneg %p59
      %p206 = pneg %p56
      %p207 = pneg %p80
      %p208 = pneg %p77
      %p209 = pneg %p106
      %p210 = pneg %p103
      %p211 = scmp.lt.s32.totalorder %s17, 1
      %s212 = scalar_select %p211, %s17, 1
      %s213 = smul.addr %s212, 32
      %s214 = smul.addr %s213, 8
      %s215 = scalar_lea.vmem %s3, %s214
      %p216 = pneg %p132
      %p217 = pneg %p129
      %p218 = scmp.lt.s32.totalorder %s17, 1
      %s219 = scalar_select %p218, %s17, 1
      %s220 = scalar_lea.vmem %s4, %s219
      %p221 = pneg %p158
      %p222 = pneg %p155
      %p223 = scmp.lt.s32.totalorder %s17, 1
      %s224 = scalar_select %p223, %s17, 1
      %s225 = scalar_lea.vmem %s5, %s224
      %p226 = scmp.lt.s32.totalorder %s17, 1
      %s227 = scalar_select %p226, %s17, 1
      %s228 = smul.addr %s227, 54
      %s229 = smul.addr %s228, 4
      %s230 = scalar_lea.vmem %s0, %s229
      %p231 = scmp.lt.s32.totalorder %s17, 1
      %s232 = scalar_select %p231, %s17, 1
      %s233 = smul.addr %s232, 32
      %s234 = smul.addr %s233, 8
      %s235 = scalar_lea.vmem %s3, %s234
      %p236 = scmp.lt.s32.totalorder %s17, 1
      %s237 = scalar_select %p236, %s17, 1
      %s238 = scalar_lea.vmem %s4, %s237
      %p239 = scmp.lt.s32.totalorder %s17, 1
      %s240 = scalar_select %p239, %s17, 1
      %s241 = scalar_lea.vmem %s5, %s240
      %v243 = vld [vmem:[%s230] sm:$0xf]
      %v244 = vld [vmem:[%s230 + $0x4] sm:$0xf]
      %v245 = vld [vmem:[%s230 + $0x8] sm:$0x1]
      %v246 = vld [vmem:[%s230 + $0xc] sm:$0xf]
      %v247 = vld [vmem:[%s230 + $0x10] sm:$0xf]
      %v248 = vld [vmem:[%s230 + $0x14] sm:$0x1]
      %v249 = vld [vmem:[%s230 + $0x18] sm:$0xf]
      %v250 = vld [vmem:[%s230 + $0x1c] sm:$0xf]
      %v251 = vld [vmem:[%s230 + $0x20] sm:$0x1]
      %v252 = vld [vmem:[%s230 + $0x24] sm:$0xf]
      %v253 = vld [vmem:[%s230 + $0x28] sm:$0xf]
      %v254 = vld [vmem:[%s230 + $0x2c] sm:$0x1]
      %v255 = vld [vmem:[%s230 + $0x30] sm:$0xf]
      %v256 = vld [vmem:[%s230 + $0x34] sm:$0xf]
      %v257 = vld [vmem:[%s230 + $0x38] sm:$0x1]
      %v258 = vld [vmem:[%s230 + $0x3c] sm:$0xf]
      %v259 = vld [vmem:[%s230 + $0x40] sm:$0xf]
      %v260 = vld [vmem:[%s230 + $0x44] sm:$0x1]
      %v261 = vld [vmem:[%s230 + $0x48] sm:$0xf]
      %v262 = vld [vmem:[%s230 + $0x4c] sm:$0xf]
      %v263 = vld [vmem:[%s230 + $0x50] sm:$0x1]
      %v264 = vld [vmem:[%s230 + $0x54] sm:$0xf]
      %v265 = vld [vmem:[%s230 + $0x58] sm:$0xf]
      %v266 = vld [vmem:[%s230 + $0x5c] sm:$0x1]
      %v267 = vld [vmem:[%s230 + $0x60] sm:$0xf]
      %v268 = vld [vmem:[%s230 + $0x64] sm:$0xf]
      %v269 = vld [vmem:[%s230 + $0x68] sm:$0x1]
      %v270 = vld [vmem:[%s230 + $0x6c] sm:$0xf]
      %v271 = vld [vmem:[%s230 + $0x70] sm:$0xf]
      %v272 = vld [vmem:[%s230 + $0x74] sm:$0x1]
      %v273 = vld [vmem:[%s230 + $0x78] sm:$0xf]
      %v274 = vld [vmem:[%s230 + $0x7c] sm:$0xf]
      %v275 = vld [vmem:[%s230 + $0x80] sm:$0x1]
      %v276 = vld [vmem:[%s230 + $0x84] sm:$0xf]
      %v277 = vld [vmem:[%s230 + $0x88] sm:$0xf]
      %v278 = vld [vmem:[%s230 + $0x8c] sm:$0x1]
      %v279 = vld [vmem:[%s230 + $0x90] sm:$0xf]
      %v280 = vld [vmem:[%s230 + $0x94] sm:$0xf]
      %v281 = vld [vmem:[%s230 + $0x98] sm:$0x1]
      %v282 = vld [vmem:[%s230 + $0x9c] sm:$0xf]
      %v283 = vld [vmem:[%s230 + $0xa0] sm:$0xf]
      %v284 = vld [vmem:[%s230 + $0xa4] sm:$0x1]
      %v285 = vld [vmem:[%s230 + $0xa8] sm:$0xf]
      %v286 = vld [vmem:[%s230 + $0xac] sm:$0xf]
      %v287 = vld [vmem:[%s230 + $0xb0] sm:$0x1]
      %v288 = vld [vmem:[%s230 + $0xb4] sm:$0xf]
      %v289 = vld [vmem:[%s230 + $0xb8] sm:$0xf]
      %v290 = vld [vmem:[%s230 + $0xbc] sm:$0x1]
      %v291 = vld [vmem:[%s230 + $0xc0] sm:$0xf]
      %v292 = vld [vmem:[%s230 + $0xc4] sm:$0xf]
      %v293 = vld [vmem:[%s230 + $0xc8] sm:$0x1]
      %v294 = vld [vmem:[%s230 + $0xcc] sm:$0xf]
      %v295 = vld [vmem:[%s230 + $0xd0] sm:$0xf]
      %v296 = vld [vmem:[%s230 + $0xd4] sm:$0x1]
      %v329 = vunpack.c.l.b16 %v243
      %v330 = vunpack.c.l.b16 %v244
      %v331 = vunpack.c.l.b16 %v246
      %v332 = vunpack.c.l.b16 %v247
      %v333 = vunpack.c.l.b16 %v249
      %v334 = vunpack.c.l.b16 %v250
      %v335 = vunpack.c.l.b16 %v252
      %v336 = vunpack.c.l.b16 %v253
      %v337 = vunpack.c.l.b16 %v255
      %v338 = vunpack.c.l.b16 %v256
      %v339 = vunpack.c.l.b16 %v258
      %v340 = vunpack.c.l.b16 %v259
      %v341 = vunpack.c.l.b16 %v261
      %v342 = vunpack.c.l.b16 %v262
      %v343 = vunpack.c.l.b16 %v264
      %v344 = vunpack.c.l.b16 %v265
      %v345 = vunpack.c.l.b16 %v267
      %v346 = vunpack.c.l.b16 %v268
      %v347 = vunpack.c.l.b16 %v270
      %v348 = vunpack.c.l.b16 %v271
      %v349 = vunpack.c.l.b16 %v273
      %v350 = vunpack.c.l.b16 %v274
      %v351 = vunpack.c.l.b16 %v276
      %v352 = vunpack.c.l.b16 %v277
      %v353 = vunpack.c.l.b16 %v279
      %v354 = vunpack.c.l.b16 %v280
      %v355 = vunpack.c.l.b16 %v282
      %v356 = vunpack.c.l.b16 %v283
      %v357 = vunpack.c.l.b16 %v285
      %v358 = vunpack.c.l.b16 %v286
      %v359 = vunpack.c.l.b16 %v288
      %v360 = vunpack.c.l.b16 %v289
      %v361 = vpack.c.b16 %v330, %v329
      %v362 = vpack.c.b16 %v332, %v331
      %v363 = vpack.c.b16 %v334, %v333
      %v364 = vpack.c.b16 %v336, %v335
      %v365 = vpack.c.b16 %v338, %v337
      %v366 = vpack.c.b16 %v340, %v339
      %v367 = vpack.c.b16 %v342, %v341
      %v368 = vpack.c.b16 %v344, %v343
      %v369 = vpack.c.b16 %v346, %v345
      %v370 = vpack.c.b16 %v348, %v347
      %v371 = vpack.c.b16 %v350, %v349
      %v372 = vpack.c.b16 %v352, %v351
      %v373 = vpack.c.b16 %v354, %v353
      %v374 = vpack.c.b16 %v356, %v355
      %v375 = vpack.c.b16 %v358, %v357
      %v376 = vpack.c.b16 %v360, %v359
      %vm393 = vcmask 64512
      %394 = vst.msk [vmem:[#allocation2] sm:$0xff] %vm393, %v361
      %395 = vst.msk [vmem:[#allocation2 + $0x8] sm:$0xff] %vm393, %v362
      %396 = vst.msk [vmem:[#allocation2 + $0x10] sm:$0xff] %vm393, %v363
      %397 = vst.msk [vmem:[#allocation2 + $0x18] sm:$0xff] %vm393, %v364
      %398 = vst.msk [vmem:[#allocation2 + $0x20] sm:$0xff] %vm393, %v365
      %399 = vst.msk [vmem:[#allocation2 + $0x28] sm:$0xff] %vm393, %v366
      %400 = vst.msk [vmem:[#allocation2 + $0x30] sm:$0xff] %vm393, %v367
      %401 = vst.msk [vmem:[#allocation2 + $0x38] sm:$0xff] %vm393, %v368
      %402 = vst.msk [vmem:[#allocation2 + $0x40] sm:$0xff] %vm393, %v369
      %403 = vst.msk [vmem:[#allocation2 + $0x48] sm:$0xff] %vm393, %v370
      %404 = vst.msk [vmem:[#allocation2 + $0x50] sm:$0xff] %vm393, %v371
      %405 = vst.msk [vmem:[#allocation2 + $0x58] sm:$0xff] %vm393, %v372
      %406 = vst.msk [vmem:[#allocation2 + $0x60] sm:$0xff] %vm393, %v373
      %407 = vst.msk [vmem:[#allocation2 + $0x68] sm:$0xff] %vm393, %v374
      %408 = vst.msk [vmem:[#allocation2 + $0x70] sm:$0xff] %vm393, %v375
      %409 = vst.msk [vmem:[#allocation2 + $0x78] sm:$0xff] %vm393, %v376
      %vm410 = vsmask.f32 3328
      %vm411 = vsmask.f32 7440
      %vm412 = vmor %vm410, %vm411
      %v414 = vshrl.u32 %v243, 16
      %v416 = vrot.slane %v414, 4
      %v417 = vshll.u32 %v243, 16
      %v419 = vrot.slane %v417, 5
      %v420 = vor.u32 %v416, %v419
      %v421 = vrot.slane %v420, 4
      %v423 = vshll.u32 %v244, 16
      %v425 = vrot.slane %v423, 5
      %v426 = vsel %vm412, %v421, %v425
      %v427 = vshrl.u32 %v244, 16
      %v429 = vrot.slane %v427, 4
      %v430 = vor.u32 %v429, %v425
      %v431 = vrot.slane %v430, 4
      %v433 = vshll.u32 %v245, 16
      %v435 = vrot.slane %v433, 5
      %v436 = vsel %vm412, %v431, %v435
      %v438 = vshrl.u32 %v246, 16
      %v440 = vrot.slane %v438, 4
      %v441 = vshll.u32 %v246, 16
      %v443 = vrot.slane %v441, 5
      %v444 = vor.u32 %v440, %v443
      %v445 = vrot.slane %v444, 4
      %v447 = vshll.u32 %v247, 16
      %v449 = vrot.slane %v447, 5
      %v450 = vsel %vm412, %v445, %v449
      %v451 = vshrl.u32 %v247, 16
      %v453 = vrot.slane %v451, 4
      %v454 = vor.u32 %v453, %v449
      %v455 = vrot.slane %v454, 4
      %v457 = vshll.u32 %v248, 16
      %v459 = vrot.slane %v457, 5
      %v460 = vsel %vm412, %v455, %v459
      %v462 = vshrl.u32 %v249, 16
      %v464 = vrot.slane %v462, 4
      %v465 = vshll.u32 %v249, 16
      %v467 = vrot.slane %v465, 5
      %v468 = vor.u32 %v464, %v467
      %v469 = vrot.slane %v468, 4
      %v471 = vshll.u32 %v250, 16
      %v473 = vrot.slane %v471, 5
      %v474 = vsel %vm412, %v469, %v473
      %v475 = vshrl.u32 %v250, 16
      %v477 = vrot.slane %v475, 4
      %v478 = vor.u32 %v477, %v473
      %v479 = vrot.slane %v478, 4
      %v481 = vshll.u32 %v251, 16
      %v483 = vrot.slane %v481, 5
      %v484 = vsel %vm412, %v479, %v483
      %v486 = vshrl.u32 %v252, 16
      %v488 = vrot.slane %v486, 4
      %v489 = vshll.u32 %v252, 16
      %v491 = vrot.slane %v489, 5
      %v492 = vor.u32 %v488, %v491
      %v493 = vrot.slane %v492, 4
      %v495 = vshll.u32 %v253, 16
      %v497 = vrot.slane %v495, 5
      %v498 = vsel %vm412, %v493, %v497
      %v499 = vshrl.u32 %v253, 16
      %v501 = vrot.slane %v499, 4
      %v502 = vor.u32 %v501, %v497
      %v503 = vrot.slane %v502, 4
      %v505 = vshll.u32 %v254, 16
      %v507 = vrot.slane %v505, 5
      %v508 = vsel %vm412, %v503, %v507
      %v510 = vshrl.u32 %v255, 16
      %v512 = vrot.slane %v510, 4
      %v513 = vshll.u32 %v255, 16
      %v515 = vrot.slane %v513, 5
      %v516 = vor.u32 %v512, %v515
      %v517 = vrot.slane %v516, 4
      %v519 = vshll.u32 %v256, 16
      %v521 = vrot.slane %v519, 5
      %v522 = vsel %vm412, %v517, %v521
      %v523 = vshrl.u32 %v256, 16
      %v525 = vrot.slane %v523, 4
      %v526 = vor.u32 %v525, %v521
      %v527 = vrot.slane %v526, 4
      %v529 = vshll.u32 %v257, 16
      %v531 = vrot.slane %v529, 5
      %v532 = vsel %vm412, %v527, %v531
      %v534 = vshrl.u32 %v258, 16
      %v536 = vrot.slane %v534, 4
      %v537 = vshll.u32 %v258, 16
      %v539 = vrot.slane %v537, 5
      %v540 = vor.u32 %v536, %v539
      %v541 = vrot.slane %v540, 4
      %v543 = vshll.u32 %v259, 16
      %v545 = vrot.slane %v543, 5
      %v546 = vsel %vm412, %v541, %v545
      %v547 = vshrl.u32 %v259, 16
      %v549 = vrot.slane %v547, 4
      %v550 = vor.u32 %v549, %v545
      %v551 = vrot.slane %v550, 4
      %v553 = vshll.u32 %v260, 16
      %v555 = vrot.slane %v553, 5
      %v556 = vsel %vm412, %v551, %v555
      %v558 = vshrl.u32 %v261, 16
      %v560 = vrot.slane %v558, 4
      %v561 = vshll.u32 %v261, 16
      %v563 = vrot.slane %v561, 5
      %v564 = vor.u32 %v560, %v563
      %v565 = vrot.slane %v564, 4
      %v567 = vshll.u32 %v262, 16
      %v569 = vrot.slane %v567, 5
      %v570 = vsel %vm412, %v565, %v569
      %v571 = vshrl.u32 %v262, 16
      %v573 = vrot.slane %v571, 4
      %v574 = vor.u32 %v573, %v569
      %v575 = vrot.slane %v574, 4
      %v577 = vshll.u32 %v263, 16
      %v579 = vrot.slane %v577, 5
      %v580 = vsel %vm412, %v575, %v579
      %v582 = vshrl.u32 %v264, 16
      %v584 = vrot.slane %v582, 4
      %v585 = vshll.u32 %v264, 16
      %v587 = vrot.slane %v585, 5
      %v588 = vor.u32 %v584, %v587
      %v589 = vrot.slane %v588, 4
      %v591 = vshll.u32 %v265, 16
      %v593 = vrot.slane %v591, 5
      %v594 = vsel %vm412, %v589, %v593
      %v595 = vshrl.u32 %v265, 16
      %v597 = vrot.slane %v595, 4
      %v598 = vor.u32 %v597, %v593
      %v599 = vrot.slane %v598, 4
      %v601 = vshll.u32 %v266, 16
      %v603 = vrot.slane %v601, 5
      %v604 = vsel %vm412, %v599, %v603
      %v606 = vshrl.u32 %v267, 16
      %v608 = vrot.slane %v606, 4
      %v609 = vshll.u32 %v267, 16
      %v611 = vrot.slane %v609, 5
      %v612 = vor.u32 %v608, %v611
      %v613 = vrot.slane %v612, 4
      %v615 = vshll.u32 %v268, 16
      %v617 = vrot.slane %v615, 5
      %v618 = vsel %vm412, %v613, %v617
      %v619 = vshrl.u32 %v268, 16
      %v621 = vrot.slane %v619, 4
      %v622 = vor.u32 %v621, %v617
      %v623 = vrot.slane %v622, 4
      %v625 = vshll.u32 %v269, 16
      %v627 = vrot.slane %v625, 5
      %v628 = vsel %vm412, %v623, %v627
      %v630 = vshrl.u32 %v270, 16
      %v632 = vrot.slane %v630, 4
      %v633 = vshll.u32 %v270, 16
      %v635 = vrot.slane %v633, 5
      %v636 = vor.u32 %v632, %v635
      %v637 = vrot.slane %v636, 4
      %v639 = vshll.u32 %v271, 16
      %v641 = vrot.slane %v639, 5
      %v642 = vsel %vm412, %v637, %v641
      %v643 = vshrl.u32 %v271, 16
      %v645 = vrot.slane %v643, 4
      %v646 = vor.u32 %v645, %v641
      %v647 = vrot.slane %v646, 4
      %v649 = vshll.u32 %v272, 16
      %v651 = vrot.slane %v649, 5
      %v652 = vsel %vm412, %v647, %v651
      %v654 = vshrl.u32 %v273, 16
      %v656 = vrot.slane %v654, 4
      %v657 = vshll.u32 %v273, 16
      %v659 = vrot.slane %v657, 5
      %v660 = vor.u32 %v656, %v659
      %v661 = vrot.slane %v660, 4
      %v663 = vshll.u32 %v274, 16
      %v665 = vrot.slane %v663, 5
      %v666 = vsel %vm412, %v661, %v665
      %v667 = vshrl.u32 %v274, 16
      %v669 = vrot.slane %v667, 4
      %v670 = vor.u32 %v669, %v665
      %v671 = vrot.slane %v670, 4
      %v673 = vshll.u32 %v275, 16
      %v675 = vrot.slane %v673, 5
      %v676 = vsel %vm412, %v671, %v675
      %v678 = vshrl.u32 %v276, 16
      %v680 = vrot.slane %v678, 4
      %v681 = vshll.u32 %v276, 16
      %v683 = vrot.slane %v681, 5
      %v684 = vor.u32 %v680, %v683
      %v685 = vrot.slane %v684, 4
      %v687 = vshll.u32 %v277, 16
      %v689 = vrot.slane %v687, 5
      %v690 = vsel %vm412, %v685, %v689
      %v691 = vshrl.u32 %v277, 16
      %v693 = vrot.slane %v691, 4
      %v694 = vor.u32 %v693, %v689
      %v695 = vrot.slane %v694, 4
      %v697 = vshll.u32 %v278, 16
      %v699 = vrot.slane %v697, 5
      %v700 = vsel %vm412, %v695, %v699
      %v702 = vshrl.u32 %v279, 16
      %v704 = vrot.slane %v702, 4
      %v705 = vshll.u32 %v279, 16
      %v707 = vrot.slane %v705, 5
      %v708 = vor.u32 %v704, %v707
      %v709 = vrot.slane %v708, 4
      %v711 = vshll.u32 %v280, 16
      %v713 = vrot.slane %v711, 5
      %v714 = vsel %vm412, %v709, %v713
      %v715 = vshrl.u32 %v280, 16
      %v717 = vrot.slane %v715, 4
      %v718 = vor.u32 %v717, %v713
      %v719 = vrot.slane %v718, 4
      %v721 = vshll.u32 %v281, 16
      %v723 = vrot.slane %v721, 5
      %v724 = vsel %vm412, %v719, %v723
      %v726 = vshrl.u32 %v282, 16
      %v728 = vrot.slane %v726, 4
      %v729 = vshll.u32 %v282, 16
      %v731 = vrot.slane %v729, 5
      %v732 = vor.u32 %v728, %v731
      %v733 = vrot.slane %v732, 4
      %v735 = vshll.u32 %v283, 16
      %v737 = vrot.slane %v735, 5
      %v738 = vsel %vm412, %v733, %v737
      %v739 = vshrl.u32 %v283, 16
      %v741 = vrot.slane %v739, 4
      %v742 = vor.u32 %v741, %v737
      %v743 = vrot.slane %v742, 4
      %v745 = vshll.u32 %v284, 16
      %v747 = vrot.slane %v745, 5
      %v748 = vsel %vm412, %v743, %v747
      %v750 = vshrl.u32 %v285, 16
      %v752 = vrot.slane %v750, 4
      %v753 = vshll.u32 %v285, 16
      %v755 = vrot.slane %v753, 5
      %v756 = vor.u32 %v752, %v755
      %v757 = vrot.slane %v756, 4
      %v759 = vshll.u32 %v286, 16
      %v761 = vrot.slane %v759, 5
      %v762 = vsel %vm412, %v757, %v761
      %v763 = vshrl.u32 %v286, 16
      %v765 = vrot.slane %v763, 4
      %v766 = vor.u32 %v765, %v761
      %v767 = vrot.slane %v766, 4
      %v769 = vshll.u32 %v287, 16
      %v771 = vrot.slane %v769, 5
      %v772 = vsel %vm412, %v767, %v771
      %v774 = vshrl.u32 %v288, 16
      %v776 = vrot.slane %v774, 4
      %v777 = vshll.u32 %v288, 16
      %v779 = vrot.slane %v777, 5
      %v780 = vor.u32 %v776, %v779
      %v781 = vrot.slane %v780, 4
      %v783 = vshll.u32 %v289, 16
      %v785 = vrot.slane %v783, 5
      %v786 = vsel %vm412, %v781, %v785
      %v787 = vshrl.u32 %v289, 16
      %v789 = vrot.slane %v787, 4
      %v790 = vor.u32 %v789, %v785
      %v791 = vrot.slane %v790, 4
      %v793 = vshll.u32 %v290, 16
      %v795 = vrot.slane %v793, 5
      %v796 = vsel %vm412, %v791, %v795
      %v797 = vunpack.c.l.b16 %v426
      %v798 = vunpack.c.l.b16 %v436
      %v799 = vunpack.c.l.b16 %v450
      %v800 = vunpack.c.l.b16 %v460
      %v801 = vunpack.c.l.b16 %v474
      %v802 = vunpack.c.l.b16 %v484
      %v803 = vunpack.c.l.b16 %v498
      %v804 = vunpack.c.l.b16 %v508
      %v805 = vunpack.c.l.b16 %v522
      %v806 = vunpack.c.l.b16 %v532
      %v807 = vunpack.c.l.b16 %v546
      %v808 = vunpack.c.l.b16 %v556
      %v809 = vunpack.c.l.b16 %v570
      %v810 = vunpack.c.l.b16 %v580
      %v811 = vunpack.c.l.b16 %v594
      %v812 = vunpack.c.l.b16 %v604
      %v813 = vunpack.c.l.b16 %v618
      %v814 = vunpack.c.l.b16 %v628
      %v815 = vunpack.c.l.b16 %v642
      %v816 = vunpack.c.l.b16 %v652
      %v817 = vunpack.c.l.b16 %v666
      %v818 = vunpack.c.l.b16 %v676
      %v819 = vunpack.c.l.b16 %v690
      %v820 = vunpack.c.l.b16 %v700
      %v821 = vunpack.c.l.b16 %v714
      %v822 = vunpack.c.l.b16 %v724
      %v823 = vunpack.c.l.b16 %v738
      %v824 = vunpack.c.l.b16 %v748
      %v825 = vunpack.c.l.b16 %v762
      %v826 = vunpack.c.l.b16 %v772
      %v827 = vunpack.c.l.b16 %v786
      %v828 = vunpack.c.l.b16 %v796
      %v829 = vpack.c.b16 %v798, %v797
      %v830 = vpack.c.b16 %v800, %v799
      %v831 = vpack.c.b16 %v802, %v801
      %v832 = vpack.c.b16 %v804, %v803
      %v833 = vpack.c.b16 %v806, %v805
      %v834 = vpack.c.b16 %v808, %v807
      %v835 = vpack.c.b16 %v810, %v809
      %v836 = vpack.c.b16 %v812, %v811
      %v837 = vpack.c.b16 %v814, %v813
      %v838 = vpack.c.b16 %v816, %v815
      %v839 = vpack.c.b16 %v818, %v817
      %v840 = vpack.c.b16 %v820, %v819
      %v841 = vpack.c.b16 %v822, %v821
      %v842 = vpack.c.b16 %v824, %v823
      %v843 = vpack.c.b16 %v826, %v825
      %v844 = vpack.c.b16 %v828, %v827
      %845 = vrot.lane.b32.xlu0 %v829, 8
      %v846 = vpop.permute.xlu0 %845
      %847 = vrot.lane.b32.xlu0 %v830, 8
      %v848 = vpop.permute.xlu0 %847
      %849 = vrot.lane.b32.xlu0 %v831, 8
      %v850 = vpop.permute.xlu0 %849
      %851 = vrot.lane.b32.xlu0 %v832, 8
      %v852 = vpop.permute.xlu0 %851
      %853 = vrot.lane.b32.xlu0 %v833, 8
      %v854 = vpop.permute.xlu0 %853
      %855 = vrot.lane.b32.xlu0 %v834, 8
      %v856 = vpop.permute.xlu0 %855
      %857 = vrot.lane.b32.xlu0 %v835, 8
      %v858 = vpop.permute.xlu0 %857
      %859 = vrot.lane.b32.xlu0 %v836, 8
      %v860 = vpop.permute.xlu0 %859
      %861 = vrot.lane.b32.xlu0 %v837, 8
      %v862 = vpop.permute.xlu0 %861
      %863 = vrot.lane.b32.xlu0 %v838, 8
      %v864 = vpop.permute.xlu0 %863
      %865 = vrot.lane.b32.xlu0 %v839, 8
      %v866 = vpop.permute.xlu0 %865
      %867 = vrot.lane.b32.xlu0 %v840, 8
      %v868 = vpop.permute.xlu0 %867
      %869 = vrot.lane.b32.xlu0 %v841, 8
      %v870 = vpop.permute.xlu0 %869
      %871 = vrot.lane.b32.xlu0 %v842, 8
      %v872 = vpop.permute.xlu0 %871
      %873 = vrot.lane.b32.xlu0 %v843, 8
      %v874 = vpop.permute.xlu0 %873
      %875 = vrot.lane.b32.xlu0 %v844, 8
      %v876 = vpop.permute.xlu0 %875
      %vm893 = vcmask 130112
      %894 = vst.msk [vmem:[#allocation2] sm:$0xff] %vm893, %v846
      %895 = vst.msk [vmem:[#allocation2 + $0x8] sm:$0xff] %vm893, %v848
      %896 = vst.msk [vmem:[#allocation2 + $0x10] sm:$0xff] %vm893, %v850
      %897 = vst.msk [vmem:[#allocation2 + $0x18] sm:$0xff] %vm893, %v852
      %898 = vst.msk [vmem:[#allocation2 + $0x20] sm:$0xff] %vm893, %v854
      %899 = vst.msk [vmem:[#allocation2 + $0x28] sm:$0xff] %vm893, %v856
      %900 = vst.msk [vmem:[#allocation2 + $0x30] sm:$0xff] %vm893, %v858
      %901 = vst.msk [vmem:[#allocation2 + $0x38] sm:$0xff] %vm893, %v860
      %902 = vst.msk [vmem:[#allocation2 + $0x40] sm:$0xff] %vm893, %v862
      %903 = vst.msk [vmem:[#allocation2 + $0x48] sm:$0xff] %vm893, %v864
      %904 = vst.msk [vmem:[#allocation2 + $0x50] sm:$0xff] %vm893, %v866
      %905 = vst.msk [vmem:[#allocation2 + $0x58] sm:$0xff] %vm893, %v868
      %906 = vst.msk [vmem:[#allocation2 + $0x60] sm:$0xff] %vm893, %v870
      %907 = vst.msk [vmem:[#allocation2 + $0x68] sm:$0xff] %vm893, %v872
      %908 = vst.msk [vmem:[#allocation2 + $0x70] sm:$0xff] %vm893, %v874
      %909 = vst.msk [vmem:[#allocation2 + $0x78] sm:$0xff] %vm893, %v876
      %vm926 = vcmask 1042432
      %vm927 = vcmask 1046532
      %vm928 = vmor %vm926, %vm927
      %v929 = vrot.slane %v243, 5
      %v930 = vrot.slane %v929, 4
      %v931 = vrot.slane %v244, 5
      %v932 = vsel %vm928, %v930, %v931
      %v933 = vrot.slane %v931, 4
      %v934 = vrot.slane %v245, 5
      %v935 = vsel %vm928, %v933, %v934
      %v936 = vrot.slane %v246, 5
      %v937 = vrot.slane %v936, 4
      %v938 = vrot.slane %v247, 5
      %v939 = vsel %vm928, %v937, %v938
      %v940 = vrot.slane %v938, 4
      %v941 = vrot.slane %v248, 5
      %v942 = vsel %vm928, %v940, %v941
      %v943 = vrot.slane %v249, 5
      %v944 = vrot.slane %v943, 4
      %v945 = vrot.slane %v250, 5
      %v946 = vsel %vm928, %v944, %v945
      %v947 = vrot.slane %v945, 4
      %v948 = vrot.slane %v251, 5
      %v949 = vsel %vm928, %v947, %v948
      %v950 = vrot.slane %v252, 5
      %v951 = vrot.slane %v950, 4
      %v952 = vrot.slane %v253, 5
      %v953 = vsel %vm928, %v951, %v952
      %v954 = vrot.slane %v952, 4
      %v955 = vrot.slane %v254, 5
      %v956 = vsel %vm928, %v954, %v955
      %v957 = vrot.slane %v255, 5
      %v958 = vrot.slane %v957, 4
      %v959 = vrot.slane %v256, 5
      %v960 = vsel %vm928, %v958, %v959
      %v961 = vrot.slane %v959, 4
      %v962 = vrot.slane %v257, 5
      %v963 = vsel %vm928, %v961, %v962
      %v964 = vrot.slane %v258, 5
      %v965 = vrot.slane %v964, 4
      %v966 = vrot.slane %v259, 5
      %v967 = vsel %vm928, %v965, %v966
      %v968 = vrot.slane %v966, 4
      %v969 = vrot.slane %v260, 5
      %v970 = vsel %vm928, %v968, %v969
      %v971 = vrot.slane %v261, 5
      %v972 = vrot.slane %v971, 4
      %v973 = vrot.slane %v262, 5
      %v974 = vsel %vm928, %v972, %v973
      %v975 = vrot.slane %v973, 4
      %v976 = vrot.slane %v263, 5
      %v977 = vsel %vm928, %v975, %v976
      %v978 = vrot.slane %v264, 5
      %v979 = vrot.slane %v978, 4
      %v980 = vrot.slane %v265, 5
      %v981 = vsel %vm928, %v979, %v980
      %v982 = vrot.slane %v980, 4
      %v983 = vrot.slane %v266, 5
      %v984 = vsel %vm928, %v982, %v983
      %v985 = vrot.slane %v267, 5
      %v986 = vrot.slane %v985, 4
      %v987 = vrot.slane %v268, 5
      %v988 = vsel %vm928, %v986, %v987
      %v989 = vrot.slane %v987, 4
      %v990 = vrot.slane %v269, 5
      %v991 = vsel %vm928, %v989, %v990
      %v992 = vrot.slane %v270, 5
      %v993 = vrot.slane %v992, 4
      %v994 = vrot.slane %v271, 5
      %v995 = vsel %vm928, %v993, %v994
      %v996 = vrot.slane %v994, 4
      %v997 = vrot.slane %v272, 5
      %v998 = vsel %vm928, %v996, %v997
      %v999 = vrot.slane %v273, 5
      %v1000 = vrot.slane %v999, 4
      %v1001 = vrot.slane %v274, 5
      %v1002 = vsel %vm928, %v1000, %v1001
      %v1003 = vrot.slane %v1001, 4
      %v1004 = vrot.slane %v275, 5
      %v1005 = vsel %vm928, %v1003, %v1004
      %v1006 = vrot.slane %v276, 5
      %v1007 = vrot.slane %v1006, 4
      %v1008 = vrot.slane %v277, 5
      %v1009 = vsel %vm928, %v1007, %v1008
      %v1010 = vrot.slane %v1008, 4
      %v1011 = vrot.slane %v278, 5
      %v1012 = vsel %vm928, %v1010, %v1011
      %v1013 = vrot.slane %v279, 5
      %v1014 = vrot.slane %v1013, 4
      %v1015 = vrot.slane %v280, 5
      %v1016 = vsel %vm928, %v1014, %v1015
      %v1017 = vrot.slane %v1015, 4
      %v1018 = vrot.slane %v281, 5
      %v1019 = vsel %vm928, %v1017, %v1018
      %v1020 = vrot.slane %v282, 5
      %v1021 = vrot.slane %v1020, 4
      %v1022 = vrot.slane %v283, 5
      %v1023 = vsel %vm928, %v1021, %v1022
      %v1024 = vrot.slane %v1022, 4
      %v1025 = vrot.slane %v284, 5
      %v1026 = vsel %vm928, %v1024, %v1025
      %v1027 = vrot.slane %v285, 5
      %v1028 = vrot.slane %v1027, 4
      %v1029 = vrot.slane %v286, 5
      %v1030 = vsel %vm928, %v1028, %v1029
      %v1031 = vrot.slane %v1029, 4
      %v1032 = vrot.slane %v287, 5
      %v1033 = vsel %vm928, %v1031, %v1032
      %v1034 = vrot.slane %v288, 5
      %v1035 = vrot.slane %v1034, 4
      %v1036 = vrot.slane %v289, 5
      %v1037 = vsel %vm928, %v1035, %v1036
      %v1038 = vrot.slane %v1036, 4
      %v1039 = vrot.slane %v290, 5
      %v1040 = vsel %vm928, %v1038, %v1039
      %v1041 = vunpack.c.l.b16 %v932
      %v1042 = vunpack.c.l.b16 %v935
      %v1043 = vunpack.c.l.b16 %v939
      %v1044 = vunpack.c.l.b16 %v942
      %v1045 = vunpack.c.l.b16 %v946
      %v1046 = vunpack.c.l.b16 %v949
      %v1047 = vunpack.c.l.b16 %v953
      %v1048 = vunpack.c.l.b16 %v956
      %v1049 = vunpack.c.l.b16 %v960
      %v1050 = vunpack.c.l.b16 %v963
      %v1051 = vunpack.c.l.b16 %v967
      %v1052 = vunpack.c.l.b16 %v970
      %v1053 = vunpack.c.l.b16 %v974
      %v1054 = vunpack.c.l.b16 %v977
      %v1055 = vunpack.c.l.b16 %v981
      %v1056 = vunpack.c.l.b16 %v984
      %v1057 = vunpack.c.l.b16 %v988
      %v1058 = vunpack.c.l.b16 %v991
      %v1059 = vunpack.c.l.b16 %v995
      %v1060 = vunpack.c.l.b16 %v998
      %v1061 = vunpack.c.l.b16 %v1002
      %v1062 = vunpack.c.l.b16 %v1005
      %v1063 = vunpack.c.l.b16 %v1009
      %v1064 = vunpack.c.l.b16 %v1012
      %v1065 = vunpack.c.l.b16 %v1016
      %v1066 = vunpack.c.l.b16 %v1019
      %v1067 = vunpack.c.l.b16 %v1023
      %v1068 = vunpack.c.l.b16 %v1026
      %v1069 = vunpack.c.l.b16 %v1030
      %v1070 = vunpack.c.l.b16 %v1033
      %v1071 = vunpack.c.l.b16 %v1037
      %v1072 = vunpack.c.l.b16 %v1040
      %v1073 = vpack.c.b16 %v1042, %v1041
      %v1074 = vpack.c.b16 %v1044, %v1043
      %v1075 = vpack.c.b16 %v1046, %v1045
      %v1076 = vpack.c.b16 %v1048, %v1047
      %v1077 = vpack.c.b16 %v1050, %v1049
      %v1078 = vpack.c.b16 %v1052, %v1051
      %v1079 = vpack.c.b16 %v1054, %v1053
      %v1080 = vpack.c.b16 %v1056, %v1055
      %v1081 = vpack.c.b16 %v1058, %v1057
      %v1082 = vpack.c.b16 %v1060, %v1059
      %v1083 = vpack.c.b16 %v1062, %v1061
      %v1084 = vpack.c.b16 %v1064, %v1063
      %v1085 = vpack.c.b16 %v1066, %v1065
      %v1086 = vpack.c.b16 %v1068, %v1067
      %v1087 = vpack.c.b16 %v1070, %v1069
      %v1088 = vpack.c.b16 %v1072, %v1071
      %1089 = vrot.lane.b32.xlu0 %v1073, 16
      %v1090 = vpop.permute.xlu0 %1089
      %1091 = vrot.lane.b32.xlu0 %v1074, 16
      %v1092 = vpop.permute.xlu0 %1091
      %1093 = vrot.lane.b32.xlu0 %v1075, 16
      %v1094 = vpop.permute.xlu0 %1093
      %1095 = vrot.lane.b32.xlu0 %v1076, 16
      %v1096 = vpop.permute.xlu0 %1095
      %1097 = vrot.lane.b32.xlu0 %v1077, 16
      %v1098 = vpop.permute.xlu0 %1097
      %1099 = vrot.lane.b32.xlu0 %v1078, 16
      %v1100 = vpop.permute.xlu0 %1099
      %1101 = vrot.lane.b32.xlu0 %v1079, 16
      %v1102 = vpop.permute.xlu0 %1101
      %1103 = vrot.lane.b32.xlu0 %v1080, 16
      %v1104 = vpop.permute.xlu0 %1103
      %1105 = vrot.lane.b32.xlu0 %v1081, 16
      %v1106 = vpop.permute.xlu0 %1105
      %1107 = vrot.lane.b32.xlu0 %v1082, 16
      %v1108 = vpop.permute.xlu0 %1107
      %1109 = vrot.lane.b32.xlu0 %v1083, 16
      %v1110 = vpop.permute.xlu0 %1109
      %1111 = vrot.lane.b32.xlu0 %v1084, 16
      %v1112 = vpop.permute.xlu0 %1111
      %1113 = vrot.lane.b32.xlu0 %v1085, 16
      %v1114 = vpop.permute.xlu0 %1113
      %1115 = vrot.lane.b32.xlu0 %v1086, 16
      %v1116 = vpop.permute.xlu0 %1115
      %1117 = vrot.lane.b32.xlu0 %v1087, 16
      %v1118 = vpop.permute.xlu0 %1117
      %1119 = vrot.lane.b32.xlu0 %v1088, 16
      %v1120 = vpop.permute.xlu0 %1119
      %vm1137 = vcmask 195712
      %1138 = vst.msk [vmem:[#allocation2] sm:$0xff] %vm1137, %v1090
      %1139 = vst.msk [vmem:[#allocation2 + $0x8] sm:$0xff] %vm1137, %v1092
      %1140 = vst.msk [vmem:[#allocation2 + $0x10] sm:$0xff] %vm1137, %v1094
      %1141 = vst.msk [vmem:[#allocation2 + $0x18] sm:$0xff] %vm1137, %v1096
      %1142 = vst.msk [vmem:[#allocation2 + $0x20] sm:$0xff] %vm1137, %v1098
      %1143 = vst.msk [vmem:[#allocation2 + $0x28] sm:$0xff] %vm1137, %v1100
      %1144 = vst.msk [vmem:[#allocation2 + $0x30] sm:$0xff] %vm1137, %v1102
      %1145 = vst.msk [vmem:[#allocation2 + $0x38] sm:$0xff] %vm1137, %v1104
      %1146 = vst.msk [vmem:[#allocation2 + $0x40] sm:$0xff] %vm1137, %v1106
      %1147 = vst.msk [vmem:[#allocation2 + $0x48] sm:$0xff] %vm1137, %v1108
      %1148 = vst.msk [vmem:[#allocation2 + $0x50] sm:$0xff] %vm1137, %v1110
      %1149 = vst.msk [vmem:[#allocation2 + $0x58] sm:$0xff] %vm1137, %v1112
      %1150 = vst.msk [vmem:[#allocation2 + $0x60] sm:$0xff] %vm1137, %v1114
      %1151 = vst.msk [vmem:[#allocation2 + $0x68] sm:$0xff] %vm1137, %v1116
      %1152 = vst.msk [vmem:[#allocation2 + $0x70] sm:$0xff] %vm1137, %v1118
      %1153 = vst.msk [vmem:[#allocation2 + $0x78] sm:$0xff] %vm1137, %v1120
      %v1156 = vunpack.c.l.b16 %v291
      %v1157 = vunpack.c.l.b16 %v292
      %v1158 = vpack.c.b16 %v1157, %v1156
      %1159 = vrot.lane.b32.xlu0 %v362, 24
      %v1160 = vpop.permute.xlu0 %1159
      %1161 = vrot.lane.b32.xlu0 %v363, 24
      %v1162 = vpop.permute.xlu0 %1161
      %1163 = vrot.lane.b32.xlu0 %v364, 24
      %v1164 = vpop.permute.xlu0 %1163
      %1165 = vrot.lane.b32.xlu0 %v365, 24
      %v1166 = vpop.permute.xlu0 %1165
      %1167 = vrot.lane.b32.xlu0 %v366, 24
      %v1168 = vpop.permute.xlu0 %1167
      %1169 = vrot.lane.b32.xlu0 %v367, 24
      %v1170 = vpop.permute.xlu0 %1169
      %1171 = vrot.lane.b32.xlu0 %v368, 24
      %v1172 = vpop.permute.xlu0 %1171
      %1173 = vrot.lane.b32.xlu0 %v369, 24
      %v1174 = vpop.permute.xlu0 %1173
      %1175 = vrot.lane.b32.xlu0 %v370, 24
      %v1176 = vpop.permute.xlu0 %1175
      %1177 = vrot.lane.b32.xlu0 %v371, 24
      %v1178 = vpop.permute.xlu0 %1177
      %1179 = vrot.lane.b32.xlu0 %v372, 24
      %v1180 = vpop.permute.xlu0 %1179
      %1181 = vrot.lane.b32.xlu0 %v373, 24
      %v1182 = vpop.permute.xlu0 %1181
      %1183 = vrot.lane.b32.xlu0 %v374, 24
      %v1184 = vpop.permute.xlu0 %1183
      %1185 = vrot.lane.b32.xlu0 %v375, 24
      %v1186 = vpop.permute.xlu0 %1185
      %1187 = vrot.lane.b32.xlu0 %v376, 24
      %v1188 = vpop.permute.xlu0 %1187
      %1189 = vrot.lane.b32.xlu0 %v1158, 24
      %v1190 = vpop.permute.xlu0 %1189
      %vm1207 = vcmask 261312
      %1208 = vst.msk [vmem:[#allocation2] sm:$0xff] %vm1207, %v1160
      %1209 = vst.msk [vmem:[#allocation2 + $0x8] sm:$0xff] %vm1207, %v1162
      %1210 = vst.msk [vmem:[#allocation2 + $0x10] sm:$0xff] %vm1207, %v1164
      %1211 = vst.msk [vmem:[#allocation2 + $0x18] sm:$0xff] %vm1207, %v1166
      %1212 = vst.msk [vmem:[#allocation2 + $0x20] sm:$0xff] %vm1207, %v1168
      %1213 = vst.msk [vmem:[#allocation2 + $0x28] sm:$0xff] %vm1207, %v1170
      %1214 = vst.msk [vmem:[#allocation2 + $0x30] sm:$0xff] %vm1207, %v1172
      %1215 = vst.msk [vmem:[#allocation2 + $0x38] sm:$0xff] %vm1207, %v1174
      %1216 = vst.msk [vmem:[#allocation2 + $0x40] sm:$0xff] %vm1207, %v1176
      %1217 = vst.msk [vmem:[#allocation2 + $0x48] sm:$0xff] %vm1207, %v1178
      %1218 = vst.msk [vmem:[#allocation2 + $0x50] sm:$0xff] %vm1207, %v1180
      %1219 = vst.msk [vmem:[#allocation2 + $0x58] sm:$0xff] %vm1207, %v1182
      %1220 = vst.msk [vmem:[#allocation2 + $0x60] sm:$0xff] %vm1207, %v1184
      %1221 = vst.msk [vmem:[#allocation2 + $0x68] sm:$0xff] %vm1207, %v1186
      %1222 = vst.msk [vmem:[#allocation2 + $0x70] sm:$0xff] %vm1207, %v1188
      %1223 = vst.msk [vmem:[#allocation2 + $0x78] sm:$0xff] %vm1207, %v1190
      %v1225 = vshrl.u32 %v291, 16
      %v1227 = vrot.slane %v1225, 4
      %v1228 = vshll.u32 %v291, 16
      %v1230 = vrot.slane %v1228, 5
      %v1231 = vor.u32 %v1227, %v1230
      %v1232 = vrot.slane %v1231, 4
      %v1234 = vshll.u32 %v292, 16
      %v1236 = vrot.slane %v1234, 5
      %v1237 = vsel %vm412, %v1232, %v1236
      %v1238 = vshrl.u32 %v292, 16
      %v1240 = vrot.slane %v1238, 4
      %v1241 = vor.u32 %v1240, %v1236
      %v1242 = vrot.slane %v1241, 4
      %v1244 = vshll.u32 %v293, 16
      %v1246 = vrot.slane %v1244, 5
      %v1247 = vsel %vm412, %v1242, %v1246
      %v1248 = vunpack.c.l.b16 %v1237
      %v1249 = vunpack.c.l.b16 %v1247
      %v1250 = vpack.c.b16 %v1249, %v1248
      %1251 = vrot.lane.b32.xlu0 %v830, 32
      %v1252 = vpop.permute.xlu0 %1251
      %1253 = vrot.lane.b32.xlu0 %v831, 32
      %v1254 = vpop.permute.xlu0 %1253
      %1255 = vrot.lane.b32.xlu0 %v832, 32
      %v1256 = vpop.permute.xlu0 %1255
      %1257 = vrot.lane.b32.xlu0 %v833, 32
      %v1258 = vpop.permute.xlu0 %1257
      %1259 = vrot.lane.b32.xlu0 %v834, 32
      %v1260 = vpop.permute.xlu0 %1259
      %1261 = vrot.lane.b32.xlu0 %v835, 32
      %v1262 = vpop.permute.xlu0 %1261
      %1263 = vrot.lane.b32.xlu0 %v836, 32
      %v1264 = vpop.permute.xlu0 %1263
      %1265 = vrot.lane.b32.xlu0 %v837, 32
      %v1266 = vpop.permute.xlu0 %1265
      %1267 = vrot.lane.b32.xlu0 %v838, 32
      %v1268 = vpop.permute.xlu0 %1267
      %1269 = vrot.lane.b32.xlu0 %v839, 32
      %v1270 = vpop.permute.xlu0 %1269
      %1271 = vrot.lane.b32.xlu0 %v840, 32
      %v1272 = vpop.permute.xlu0 %1271
      %1273 = vrot.lane.b32.xlu0 %v841, 32
      %v1274 = vpop.permute.xlu0 %1273
      %1275 = vrot.lane.b32.xlu0 %v842, 32
      %v1276 = vpop.permute.xlu0 %1275
      %1277 = vrot.lane.b32.xlu0 %v843, 32
      %v1278 = vpop.permute.xlu0 %1277
      %1279 = vrot.lane.b32.xlu0 %v844, 32
      %v1280 = vpop.permute.xlu0 %1279
      %1281 = vrot.lane.b32.xlu0 %v1250, 32
      %v1282 = vpop.permute.xlu0 %1281
      %vm1299 = vcmask 326912
      %1300 = vst.msk [vmem:[#allocation2] sm:$0xff] %vm1299, %v1252
      %1301 = vst.msk [vmem:[#allocation2 + $0x8] sm:$0xff] %vm1299, %v1254
      %1302 = vst.msk [vmem:[#allocation2 + $0x10] sm:$0xff] %vm1299, %v1256
      %1303 = vst.msk [vmem:[#allocation2 + $0x18] sm:$0xff] %vm1299, %v1258
      %1304 = vst.msk [vmem:[#allocation2 + $0x20] sm:$0xff] %vm1299, %v1260
      %1305 = vst.msk [vmem:[#allocation2 + $0x28] sm:$0xff] %vm1299, %v1262
      %1306 = vst.msk [vmem:[#allocation2 + $0x30] sm:$0xff] %vm1299, %v1264
      %1307 = vst.msk [vmem:[#allocation2 + $0x38] sm:$0xff] %vm1299, %v1266
      %1308 = vst.msk [vmem:[#allocation2 + $0x40] sm:$0xff] %vm1299, %v1268
      %1309 = vst.msk [vmem:[#allocation2 + $0x48] sm:$0xff] %vm1299, %v1270
      %1310 = vst.msk [vmem:[#allocation2 + $0x50] sm:$0xff] %vm1299, %v1272
      %1311 = vst.msk [vmem:[#allocation2 + $0x58] sm:$0xff] %vm1299, %v1274
      %1312 = vst.msk [vmem:[#allocation2 + $0x60] sm:$0xff] %vm1299, %v1276
      %1313 = vst.msk [vmem:[#allocation2 + $0x68] sm:$0xff] %vm1299, %v1278
      %1314 = vst.msk [vmem:[#allocation2 + $0x70] sm:$0xff] %vm1299, %v1280
      %1315 = vst.msk [vmem:[#allocation2 + $0x78] sm:$0xff] %vm1299, %v1282
      %v1317 = vrot.slane %v291, 5
      %v1318 = vrot.slane %v1317, 4
      %v1319 = vrot.slane %v292, 5
      %v1320 = vsel %vm928, %v1318, %v1319
      %v1321 = vrot.slane %v1319, 4
      %v1322 = vrot.slane %v293, 5
      %v1323 = vsel %vm928, %v1321, %v1322
      %v1324 = vunpack.c.l.b16 %v1320
      %v1325 = vunpack.c.l.b16 %v1323
      %v1326 = vpack.c.b16 %v1325, %v1324
      %1327 = vrot.lane.b32.xlu0 %v1074, 40
      %v1328 = vpop.permute.xlu0 %1327
      %1329 = vrot.lane.b32.xlu0 %v1075, 40
      %v1330 = vpop.permute.xlu0 %1329
      %1331 = vrot.lane.b32.xlu0 %v1076, 40
      %v1332 = vpop.permute.xlu0 %1331
      %1333 = vrot.lane.b32.xlu0 %v1077, 40
      %v1334 = vpop.permute.xlu0 %1333
      %1335 = vrot.lane.b32.xlu0 %v1078, 40
      %v1336 = vpop.permute.xlu0 %1335
      %1337 = vrot.lane.b32.xlu0 %v1079, 40
      %v1338 = vpop.permute.xlu0 %1337
      %1339 = vrot.lane.b32.xlu0 %v1080, 40
      %v1340 = vpop.permute.xlu0 %1339
      %1341 = vrot.lane.b32.xlu0 %v1081, 40
      %v1342 = vpop.permute.xlu0 %1341
      %1343 = vrot.lane.b32.xlu0 %v1082, 40
      %v1344 = vpop.permute.xlu0 %1343
      %1345 = vrot.lane.b32.xlu0 %v1083, 40
      %v1346 = vpop.permute.xlu0 %1345
      %1347 = vrot.lane.b32.xlu0 %v1084, 40
      %v1348 = vpop.permute.xlu0 %1347
      %1349 = vrot.lane.b32.xlu0 %v1085, 40
      %v1350 = vpop.permute.xlu0 %1349
      %1351 = vrot.lane.b32.xlu0 %v1086, 40
      %v1352 = vpop.permute.xlu0 %1351
      %1353 = vrot.lane.b32.xlu0 %v1087, 40
      %v1354 = vpop.permute.xlu0 %1353
      %1355 = vrot.lane.b32.xlu0 %v1088, 40
      %v1356 = vpop.permute.xlu0 %1355
      %1357 = vrot.lane.b32.xlu0 %v1326, 40
      %v1358 = vpop.permute.xlu0 %1357
      %vm1375 = vcmask 392512
      %1376 = vst.msk [vmem:[#allocation2] sm:$0xff] %vm1375, %v1328
      %1377 = vst.msk [vmem:[#allocation2 + $0x8] sm:$0xff] %vm1375, %v1330
      %1378 = vst.msk [vmem:[#allocation2 + $0x10] sm:$0xff] %vm1375, %v1332
      %1379 = vst.msk [vmem:[#allocation2 + $0x18] sm:$0xff] %vm1375, %v1334
      %1380 = vst.msk [vmem:[#allocation2 + $0x20] sm:$0xff] %vm1375, %v1336
      %1381 = vst.msk [vmem:[#allocation2 + $0x28] sm:$0xff] %vm1375, %v1338
      %1382 = vst.msk [vmem:[#allocation2 + $0x30] sm:$0xff] %vm1375, %v1340
      %1383 = vst.msk [vmem:[#allocation2 + $0x38] sm:$0xff] %vm1375, %v1342
      %1384 = vst.msk [vmem:[#allocation2 + $0x40] sm:$0xff] %vm1375, %v1344
      %1385 = vst.msk [vmem:[#allocation2 + $0x48] sm:$0xff] %vm1375, %v1346
      %1386 = vst.msk [vmem:[#allocation2 + $0x50] sm:$0xff] %vm1375, %v1348
      %1387 = vst.msk [vmem:[#allocation2 + $0x58] sm:$0xff] %vm1375, %v1350
      %1388 = vst.msk [vmem:[#allocation2 + $0x60] sm:$0xff] %vm1375, %v1352
      %1389 = vst.msk [vmem:[#allocation2 + $0x68] sm:$0xff] %vm1375, %v1354
      %1390 = vst.msk [vmem:[#allocation2 + $0x70] sm:$0xff] %vm1375, %v1356
      %1391 = vst.msk [vmem:[#allocation2 + $0x78] sm:$0xff] %vm1375, %v1358
      %v1394 = vunpack.c.l.b16 %v294
      %v1395 = vunpack.c.l.b16 %v295
      %v1396 = vpack.c.b16 %v1395, %v1394
      %1397 = vrot.lane.b32.xlu0 %v363, 48
      %v1398 = vpop.permute.xlu0 %1397
      %1399 = vrot.lane.b32.xlu0 %v364, 48
      %v1400 = vpop.permute.xlu0 %1399
      %1401 = vrot.lane.b32.xlu0 %v365, 48
      %v1402 = vpop.permute.xlu0 %1401
      %1403 = vrot.lane.b32.xlu0 %v366, 48
      %v1404 = vpop.permute.xlu0 %1403
      %1405 = vrot.lane.b32.xlu0 %v367, 48
      %v1406 = vpop.permute.xlu0 %1405
      %1407 = vrot.lane.b32.xlu0 %v368, 48
      %v1408 = vpop.permute.xlu0 %1407
      %1409 = vrot.lane.b32.xlu0 %v369, 48
      %v1410 = vpop.permute.xlu0 %1409
      %1411 = vrot.lane.b32.xlu0 %v370, 48
      %v1412 = vpop.permute.xlu0 %1411
      %1413 = vrot.lane.b32.xlu0 %v371, 48
      %v1414 = vpop.permute.xlu0 %1413
      %1415 = vrot.lane.b32.xlu0 %v372, 48
      %v1416 = vpop.permute.xlu0 %1415
      %1417 = vrot.lane.b32.xlu0 %v373, 48
      %v1418 = vpop.permute.xlu0 %1417
      %1419 = vrot.lane.b32.xlu0 %v374, 48
      %v1420 = vpop.permute.xlu0 %1419
      %1421 = vrot.lane.b32.xlu0 %v375, 48
      %v1422 = vpop.permute.xlu0 %1421
      %1423 = vrot.lane.b32.xlu0 %v376, 48
      %v1424 = vpop.permute.xlu0 %1423
      %1425 = vrot.lane.b32.xlu0 %v1158, 48
      %v1426 = vpop.permute.xlu0 %1425
      %1427 = vrot.lane.b32.xlu0 %v1396, 48
      %v1428 = vpop.permute.xlu0 %1427
      %vm1445 = vcmask 458112
      %1446 = vst.msk [vmem:[#allocation2] sm:$0xff] %vm1445, %v1398
      %1447 = vst.msk [vmem:[#allocation2 + $0x8] sm:$0xff] %vm1445, %v1400
      %1448 = vst.msk [vmem:[#allocation2 + $0x10] sm:$0xff] %vm1445, %v1402
      %1449 = vst.msk [vmem:[#allocation2 + $0x18] sm:$0xff] %vm1445, %v1404
      %1450 = vst.msk [vmem:[#allocation2 + $0x20] sm:$0xff] %vm1445, %v1406
      %1451 = vst.msk [vmem:[#allocation2 + $0x28] sm:$0xff] %vm1445, %v1408
      %1452 = vst.msk [vmem:[#allocation2 + $0x30] sm:$0xff] %vm1445, %v1410
      %1453 = vst.msk [vmem:[#allocation2 + $0x38] sm:$0xff] %vm1445, %v1412
      %1454 = vst.msk [vmem:[#allocation2 + $0x40] sm:$0xff] %vm1445, %v1414
      %1455 = vst.msk [vmem:[#allocation2 + $0x48] sm:$0xff] %vm1445, %v1416
      %1456 = vst.msk [vmem:[#allocation2 + $0x50] sm:$0xff] %vm1445, %v1418
      %1457 = vst.msk [vmem:[#allocation2 + $0x58] sm:$0xff] %vm1445, %v1420
      %1458 = vst.msk [vmem:[#allocation2 + $0x60] sm:$0xff] %vm1445, %v1422
      %1459 = vst.msk [vmem:[#allocation2 + $0x68] sm:$0xff] %vm1445, %v1424
      %1460 = vst.msk [vmem:[#allocation2 + $0x70] sm:$0xff] %vm1445, %v1426
      %1461 = vst.msk [vmem:[#allocation2 + $0x78] sm:$0xff] %vm1445, %v1428
      %v1463 = vshrl.u32 %v294, 16
      %v1465 = vrot.slane %v1463, 4
      %v1466 = vshll.u32 %v294, 16
      %v1468 = vrot.slane %v1466, 5
      %v1469 = vor.u32 %v1465, %v1468
      %v1470 = vrot.slane %v1469, 4
      %v1472 = vshll.u32 %v295, 16
      %v1474 = vrot.slane %v1472, 5
      %v1475 = vsel %vm412, %v1470, %v1474
      %v1476 = vshrl.u32 %v295, 16
      %v1478 = vrot.slane %v1476, 4
      %v1479 = vor.u32 %v1478, %v1474
      %v1480 = vrot.slane %v1479, 4
      %v1482 = vshll.u32 %v296, 16
      %v1484 = vrot.slane %v1482, 5
      %v1485 = vsel %vm412, %v1480, %v1484
      %v1486 = vunpack.c.l.b16 %v1475
      %v1487 = vunpack.c.l.b16 %v1485
      %v1488 = vpack.c.b16 %v1487, %v1486
      %1489 = vrot.lane.b32.xlu0 %v831, 56
      %v1490 = vpop.permute.xlu0 %1489
      %1491 = vrot.lane.b32.xlu0 %v832, 56
      %v1492 = vpop.permute.xlu0 %1491
      %1493 = vrot.lane.b32.xlu0 %v833, 56
      %v1494 = vpop.permute.xlu0 %1493
      %1495 = vrot.lane.b32.xlu0 %v834, 56
      %v1496 = vpop.permute.xlu0 %1495
      %1497 = vrot.lane.b32.xlu0 %v835, 56
      %v1498 = vpop.permute.xlu0 %1497
      %1499 = vrot.lane.b32.xlu0 %v836, 56
      %v1500 = vpop.permute.xlu0 %1499
      %1501 = vrot.lane.b32.xlu0 %v837, 56
      %v1502 = vpop.permute.xlu0 %1501
      %1503 = vrot.lane.b32.xlu0 %v838, 56
      %v1504 = vpop.permute.xlu0 %1503
      %1505 = vrot.lane.b32.xlu0 %v839, 56
      %v1506 = vpop.permute.xlu0 %1505
      %1507 = vrot.lane.b32.xlu0 %v840, 56
      %v1508 = vpop.permute.xlu0 %1507
      %1509 = vrot.lane.b32.xlu0 %v841, 56
      %v1510 = vpop.permute.xlu0 %1509
      %1511 = vrot.lane.b32.xlu0 %v842, 56
      %v1512 = vpop.permute.xlu0 %1511
      %1513 = vrot.lane.b32.xlu0 %v843, 56
      %v1514 = vpop.permute.xlu0 %1513
      %1515 = vrot.lane.b32.xlu0 %v844, 56
      %v1516 = vpop.permute.xlu0 %1515
      %1517 = vrot.lane.b32.xlu0 %v1250, 56
      %v1518 = vpop.permute.xlu0 %1517
      %1519 = vrot.lane.b32.xlu0 %v1488, 56
      %v1520 = vpop.permute.xlu0 %1519
      %vm1537 = vcmask 523712
      %1538 = vst.msk [vmem:[#allocation2] sm:$0xff] %vm1537, %v1490
      %1539 = vst.msk [vmem:[#allocation2 + $0x8] sm:$0xff] %vm1537, %v1492
      %1540 = vst.msk [vmem:[#allocation2 + $0x10] sm:$0xff] %vm1537, %v1494
      %1541 = vst.msk [vmem:[#allocation2 + $0x18] sm:$0xff] %vm1537, %v1496
      %1542 = vst.msk [vmem:[#allocation2 + $0x20] sm:$0xff] %vm1537, %v1498
      %1543 = vst.msk [vmem:[#allocation2 + $0x28] sm:$0xff] %vm1537, %v1500
      %1544 = vst.msk [vmem:[#allocation2 + $0x30] sm:$0xff] %vm1537, %v1502
      %1545 = vst.msk [vmem:[#allocation2 + $0x38] sm:$0xff] %vm1537, %v1504
      %1546 = vst.msk [vmem:[#allocation2 + $0x40] sm:$0xff] %vm1537, %v1506
      %1547 = vst.msk [vmem:[#allocation2 + $0x48] sm:$0xff] %vm1537, %v1508
      %1548 = vst.msk [vmem:[#allocation2 + $0x50] sm:$0xff] %vm1537, %v1510
      %1549 = vst.msk [vmem:[#allocation2 + $0x58] sm:$0xff] %vm1537, %v1512
      %1550 = vst.msk [vmem:[#allocation2 + $0x60] sm:$0xff] %vm1537, %v1514
      %1551 = vst.msk [vmem:[#allocation2 + $0x68] sm:$0xff] %vm1537, %v1516
      %1552 = vst.msk [vmem:[#allocation2 + $0x70] sm:$0xff] %vm1537, %v1518
      %1553 = vst.msk [vmem:[#allocation2 + $0x78] sm:$0xff] %vm1537, %v1520
      %v1555 = vrot.slane %v294, 5
      %v1556 = vrot.slane %v1555, 4
      %v1557 = vrot.slane %v295, 5
      %v1558 = vsel %vm928, %v1556, %v1557
      %v1559 = vrot.slane %v1557, 4
      %v1560 = vrot.slane %v296, 5
      %v1561 = vsel %vm928, %v1559, %v1560
      %v1562 = vunpack.c.l.b16 %v1558
      %v1563 = vunpack.c.l.b16 %v1561
      %v1564 = vpack.c.b16 %v1563, %v1562
      %1565 = vrot.lane.b32.xlu0 %v1075, 64
      %v1566 = vpop.permute.xlu0 %1565
      %1567 = vrot.lane.b32.xlu0 %v1076, 64
      %v1568 = vpop.permute.xlu0 %1567
      %1569 = vrot.lane.b32.xlu0 %v1077, 64
      %v1570 = vpop.permute.xlu0 %1569
      %1571 = vrot.lane.b32.xlu0 %v1078, 64
      %v1572 = vpop.permute.xlu0 %1571
      %1573 = vrot.lane.b32.xlu0 %v1079, 64
      %v1574 = vpop.permute.xlu0 %1573
      %1575 = vrot.lane.b32.xlu0 %v1080, 64
      %v1576 = vpop.permute.xlu0 %1575
      %1577 = vrot.lane.b32.xlu0 %v1081, 64
      %v1578 = vpop.permute.xlu0 %1577
      %1579 = vrot.lane.b32.xlu0 %v1082, 64
      %v1580 = vpop.permute.xlu0 %1579
      %1581 = vrot.lane.b32.xlu0 %v1083, 64
      %v1582 = vpop.permute.xlu0 %1581
      %1583 = vrot.lane.b32.xlu0 %v1084, 64
      %v1584 = vpop.permute.xlu0 %1583
      %1585 = vrot.lane.b32.xlu0 %v1085, 64
      %v1586 = vpop.permute.xlu0 %1585
      %1587 = vrot.lane.b32.xlu0 %v1086, 64
      %v1588 = vpop.permute.xlu0 %1587
      %1589 = vrot.lane.b32.xlu0 %v1087, 64
      %v1590 = vpop.permute.xlu0 %1589
      %1591 = vrot.lane.b32.xlu0 %v1088, 64
      %v1592 = vpop.permute.xlu0 %1591
      %1593 = vrot.lane.b32.xlu0 %v1326, 64
      %v1594 = vpop.permute.xlu0 %1593
      %1595 = vrot.lane.b32.xlu0 %v1564, 64
      %v1596 = vpop.permute.xlu0 %1595
      %vm1613 = vcmask 589312
      %1614 = vst.msk [vmem:[#allocation2] sm:$0xff] %vm1613, %v1566
      %1615 = vst.msk [vmem:[#allocation2 + $0x8] sm:$0xff] %vm1613, %v1568
      %1616 = vst.msk [vmem:[#allocation2 + $0x10] sm:$0xff] %vm1613, %v1570
      %1617 = vst.msk [vmem:[#allocation2 + $0x18] sm:$0xff] %vm1613, %v1572
      %1618 = vst.msk [vmem:[#allocation2 + $0x20] sm:$0xff] %vm1613, %v1574
      %1619 = vst.msk [vmem:[#allocation2 + $0x28] sm:$0xff] %vm1613, %v1576
      %1620 = vst.msk [vmem:[#allocation2 + $0x30] sm:$0xff] %vm1613, %v1578
      %1621 = vst.msk [vmem:[#allocation2 + $0x38] sm:$0xff] %vm1613, %v1580
      %1622 = vst.msk [vmem:[#allocation2 + $0x40] sm:$0xff] %vm1613, %v1582
      %1623 = vst.msk [vmem:[#allocation2 + $0x48] sm:$0xff] %vm1613, %v1584
      %1624 = vst.msk [vmem:[#allocation2 + $0x50] sm:$0xff] %vm1613, %v1586
      %1625 = vst.msk [vmem:[#allocation2 + $0x58] sm:$0xff] %vm1613, %v1588
      %1626 = vst.msk [vmem:[#allocation2 + $0x60] sm:$0xff] %vm1613, %v1590
      %1627 = vst.msk [vmem:[#allocation2 + $0x68] sm:$0xff] %vm1613, %v1592
      %1628 = vst.msk [vmem:[#allocation2 + $0x70] sm:$0xff] %vm1613, %v1594
      %1629 = vst.msk [vmem:[#allocation2 + $0x78] sm:$0xff] %vm1613, %v1596
      %v1630 = vld [vmem:[#allocation2] sm:$0xff]
      %v1631 = vld [vmem:[#allocation2 + $0x8] sm:$0xff]
      %v1632 = vld [vmem:[#allocation2 + $0x10] sm:$0xff]
      %v1633 = vld [vmem:[#allocation2 + $0x18] sm:$0xff]
      %v1634 = vld [vmem:[#allocation2 + $0x20] sm:$0xff]
      %v1635 = vld [vmem:[#allocation2 + $0x28] sm:$0xff]
      %v1636 = vld [vmem:[#allocation2 + $0x30] sm:$0xff]
      %v1637 = vld [vmem:[#allocation2 + $0x38] sm:$0xff]
      %v1638 = vld [vmem:[#allocation2 + $0x40] sm:$0xff]
      %v1639 = vld [vmem:[#allocation2 + $0x48] sm:$0xff]
      %v1640 = vld [vmem:[#allocation2 + $0x50] sm:$0xff]
      %v1641 = vld [vmem:[#allocation2 + $0x58] sm:$0xff]
      %v1642 = vld [vmem:[#allocation2 + $0x60] sm:$0xff]
      %v1643 = vld [vmem:[#allocation2 + $0x68] sm:$0xff]
      %v1644 = vld [vmem:[#allocation2 + $0x70] sm:$0xff]
      %v1645 = vld [vmem:[#allocation2 + $0x78] sm:$0xff]
      %v1646 = vld [vmem:[%s1] sm:$0xf]
      %v1647 = vld [vmem:[%s1 + $0x4] sm:$0xf]
      %v1648 = vld [vmem:[%s1 + $0x8] sm:$0xf]
      %v1649 = vld [vmem:[%s1 + $0xc] sm:$0xf]
      %v1650 = vld [vmem:[%s1 + $0x10] sm:$0xf]
      %v1651 = vld [vmem:[%s1 + $0x14] sm:$0xf]
      %v1652 = vld [vmem:[%s1 + $0x18] sm:$0xf]
      %v1653 = vld [vmem:[%s1 + $0x1c] sm:$0xf]
      %v1654 = vld [vmem:[%s1 + $0x20] sm:$0xf]
      %v1655 = vld [vmem:[%s2] sm:$0x1]
      %v1657 = vlaneseq
      %v1658 = vshrl.u32 %v1657, 7
      %v1659 = vsub.s32 0, %v1658
      %v1660 = vrot.slane %v1655, %v1659
      %v1671 = vunpack.c.l.b16 %v1646
      %v1672 = vunpack.c.l.b16 %v1647
      %v1673 = vunpack.c.l.b16 %v1648
      %v1674 = vunpack.c.l.b16 %v1649
      %v1675 = vunpack.c.l.b16 %v1650
      %v1676 = vunpack.c.l.b16 %v1651
      %v1677 = vunpack.c.l.b16 %v1652
      %v1678 = vunpack.c.l.b16 %v1653
      %v1679 = vunpack.c.l.b16 %v1654
      %v1680 = vpack.c.b16 %v1672, %v1671
      %v1681 = vpack.c.b16 %v1674, %v1673
      %v1682 = vpack.c.b16 %v1676, %v1675
      %v1683 = vpack.c.b16 %v1678, %v1677
      %v1684 = vpack.c.b16 %v1679, %v1679
      %vm1689 = vcmask 588800
      %v1691 = vsel %vm1689, %v1630, 0
      %v1694 = vsel %vm1689, %v1631, 0
      %v1697 = vsel %vm1689, %v1632, 0
      %v1700 = vsel %vm1689, %v1633, 0
      %v1703 = vsel %vm1689, %v1634, 0
      %v1706 = vsel %vm1689, %v1635, 0
      %v1709 = vsel %vm1689, %v1636, 0
      %v1712 = vsel %vm1689, %v1637, 0
      %v1715 = vsel %vm1689, %v1638, 0
      %v1718 = vsel %vm1689, %v1639, 0
      %v1721 = vsel %vm1689, %v1640, 0
      %v1724 = vsel %vm1689, %v1641, 0
      %v1727 = vsel %vm1689, %v1642, 0
      %v1730 = vsel %vm1689, %v1643, 0
      %v1733 = vsel %vm1689, %v1644, 0
      %v1736 = vsel %vm1689, %v1645, 0
      %vm1738 = vcmask 1043456
      %v1740 = vsel %vm1738, %v1684, 0
      %1742 = vmatprep.subr.bf16.mxu0 0
      %1743 = vmatpush1.bf16.msra.mxu0 %v1680
      %1744 = vmatprep.subr.bf16.mxu0 0
      %1745 = vmatpush1.bf16.msra.mxu0 %v1681
      %1746 = vmatprep.subr.bf16.mxu0 0
      %1747 = vmatpush1.bf16.msra.mxu0 %v1682
      %1748 = vmatprep.subr.bf16.mxu0 0
      %1749 = vmatpush1.bf16.msra.mxu0 %v1683
      %1750 = vmatprep.subr.bf16.mxu0 0
      %1751 = vmatpush1.bf16.msra.mxu0 %v1740
      %1752 = vmatprep.subr.bf16.mxu0 0
      %1753 = vmatpush1.bf16.msra.mxu0 0
      %1754 = vmatprep.subr.bf16.mxu0 0
      %1755 = vmatpush1.bf16.msra.mxu0 0
      %1756 = vmatprep.subr.bf16.mxu0 0
      %1757 = vmatpush1.bf16.msra.mxu0 0
      %1758 = vmatprep.subr.bf16.mxu0 0
      %1759 = vmatpush1.bf16.msra.mxu0 0
      %1760 = vmatprep.subr.bf16.mxu0 0
      %1761 = vmatpush1.bf16.msra.mxu0 0
      %1762 = vmatprep.subr.bf16.mxu0 0
      %1763 = vmatpush1.bf16.msra.mxu0 0
      %1764 = vmatprep.subr.bf16.mxu0 0
      %1765 = vmatpush1.bf16.msra.mxu0 0
      %1766 = vmatprep.subr.bf16.mxu0 0
      %1767 = vmatpush1.bf16.msra.mxu0 0
      %1768 = vmatprep.subr.bf16.mxu0 0
      %1769 = vmatpush1.bf16.msra.mxu0 0
      %1770 = vmatprep.subr.bf16.mxu0 0
      %1771 = vmatpush1.bf16.msra.mxu0 0
      %1772 = vmatprep.subr.bf16.mxu0 0
      %1773 = vmatpush1.bf16.msra.mxu0 0
      %1774 = vmatprep.mubr.bf16.mxu0 0
      %1775 = vmatmul.mubr.bf16.gmra.mrb[0].mxu0 %v1691
      %v1776 = vpop.f32.mrb[0].mxu0
      %v1777 = vadd.f32 %v1660, %v1776
      %v1778 = vpop.f32.mrb[0].mxu0
      %v1779 = vpop.f32.mrb[0].mxu0
      %v1780 = vadd.f32 %v1660, %v1779
      %v1781 = vpop.f32.mrb[0].mxu0
      %1782 = vmatprep.mubr.bf16.mxu0 0
      %1783 = vmatmul.mubr.bf16.gmra.mrb[0].mxu0 %v1694
      %v1784 = vpop.f32.mrb[0].mxu0
      %v1785 = vadd.f32 %v1660, %v1784
      %v1786 = vpop.f32.mrb[0].mxu0
      %v1787 = vpop.f32.mrb[0].mxu0
      %v1788 = vadd.f32 %v1660, %v1787
      %v1789 = vpop.f32.mrb[0].mxu0
      %1790 = vmatprep.mubr.bf16.mxu0 0
      %1791 = vmatmul.mubr.bf16.gmra.mrb[0].mxu0 %v1697
      %v1792 = vpop.f32.mrb[0].mxu0
      %v1793 = vadd.f32 %v1660, %v1792
      %v1794 = vpop.f32.mrb[0].mxu0
      %v1795 = vpop.f32.mrb[0].mxu0
      %v1796 = vadd.f32 %v1660, %v1795
      %v1797 = vpop.f32.mrb[0].mxu0
      %1798 = vmatprep.mubr.bf16.mxu0 0
      %1799 = vmatmul.mubr.bf16.gmra.mrb[0].mxu0 %v1700
      %v1800 = vpop.f32.mrb[0].mxu0
      %v1801 = vadd.f32 %v1660, %v1800
      %v1802 = vpop.f32.mrb[0].mxu0
      %v1803 = vpop.f32.mrb[0].mxu0
      %v1804 = vadd.f32 %v1660, %v1803
      %v1805 = vpop.f32.mrb[0].mxu0
      %1806 = vmatprep.mubr.bf16.mxu0 0
      %1807 = vmatmul.mubr.bf16.gmra.mrb[0].mxu0 %v1703
      %v1808 = vpop.f32.mrb[0].mxu0
      %v1809 = vadd.f32 %v1660, %v1808
      %v1810 = vpop.f32.mrb[0].mxu0
      %v1811 = vpop.f32.mrb[0].mxu0
      %v1812 = vadd.f32 %v1660, %v1811
      %v1813 = vpop.f32.mrb[0].mxu0
      %1814 = vmatprep.mubr.bf16.mxu0 0
      %1815 = vmatmul.mubr.bf16.gmra.mrb[0].mxu0 %v1706
      %v1816 = vpop.f32.mrb[0].mxu0
      %v1817 = vadd.f32 %v1660, %v1816
      %v1818 = vpop.f32.mrb[0].mxu0
      %v1819 = vpop.f32.mrb[0].mxu0
      %v1820 = vadd.f32 %v1660, %v1819
      %v1821 = vpop.f32.mrb[0].mxu0
      %1822 = vmatprep.mubr.bf16.mxu0 0
      %1823 = vmatmul.mubr.bf16.gmra.mrb[0].mxu0 %v1709
      %v1824 = vpop.f32.mrb[0].mxu0
      %v1825 = vadd.f32 %v1660, %v1824
      %v1826 = vpop.f32.mrb[0].mxu0
      %v1827 = vpop.f32.mrb[0].mxu0
      %v1828 = vadd.f32 %v1660, %v1827
      %v1829 = vpop.f32.mrb[0].mxu0
      %1830 = vmatprep.mubr.bf16.mxu0 0
      %1831 = vmatmul.mubr.bf16.gmra.mrb[0].mxu0 %v1712
      %v1832 = vpop.f32.mrb[0].mxu0
      %v1833 = vadd.f32 %v1660, %v1832
      %v1834 = vpop.f32.mrb[0].mxu0
      %v1835 = vpop.f32.mrb[0].mxu0
      %v1836 = vadd.f32 %v1660, %v1835
      %v1837 = vpop.f32.mrb[0].mxu0
      %1838 = vmatprep.mubr.bf16.mxu0 0
      %1839 = vmatmul.mubr.bf16.gmra.mrb[0].mxu0 %v1715
      %v1840 = vpop.f32.mrb[0].mxu0
      %v1841 = vadd.f32 %v1660, %v1840
      %v1842 = vpop.f32.mrb[0].mxu0
      %v1843 = vpop.f32.mrb[0].mxu0
      %v1844 = vadd.f32 %v1660, %v1843
      %v1845 = vpop.f32.mrb[0].mxu0
      %1846 = vmatprep.mubr.bf16.mxu0 0
      %1847 = vmatmul.mubr.bf16.gmra.mrb[0].mxu0 %v1718
      %v1848 = vpop.f32.mrb[0].mxu0
      %v1849 = vadd.f32 %v1660, %v1848
      %v1850 = vpop.f32.mrb[0].mxu0
      %v1851 = vpop.f32.mrb[0].mxu0
      %v1852 = vadd.f32 %v1660, %v1851
      %v1853 = vpop.f32.mrb[0].mxu0
      %1854 = vmatprep.mubr.bf16.mxu0 0
      %1855 = vmatmul.mubr.bf16.gmra.mrb[0].mxu0 %v1721
      %v1856 = vpop.f32.mrb[0].mxu0
      %v1857 = vadd.f32 %v1660, %v1856
      %v1858 = vpop.f32.mrb[0].mxu0
      %v1859 = vpop.f32.mrb[0].mxu0
      %v1860 = vadd.f32 %v1660, %v1859
      %v1861 = vpop.f32.mrb[0].mxu0
      %1862 = vmatprep.mubr.bf16.mxu0 0
      %1863 = vmatmul.mubr.bf16.gmra.mrb[0].mxu0 %v1724
      %v1864 = vpop.f32.mrb[0].mxu0
      %v1865 = vadd.f32 %v1660, %v1864
      %v1866 = vpop.f32.mrb[0].mxu0
      %v1867 = vpop.f32.mrb[0].mxu0
      %v1868 = vadd.f32 %v1660, %v1867
      %v1869 = vpop.f32.mrb[0].mxu0
      %1870 = vmatprep.mubr.bf16.mxu0 0
      %1871 = vmatmul.mubr.bf16.gmra.mrb[0].mxu0 %v1727
      %v1872 = vpop.f32.mrb[0].mxu0
      %v1873 = vadd.f32 %v1660, %v1872
      %v1874 = vpop.f32.mrb[0].mxu0
      %v1875 = vpop.f32.mrb[0].mxu0
      %v1876 = vadd.f32 %v1660, %v1875
      %v1877 = vpop.f32.mrb[0].mxu0
      %1878 = vmatprep.mubr.bf16.mxu0 0
      %1879 = vmatmul.mubr.bf16.gmra.mrb[0].mxu0 %v1730
      %v1880 = vpop.f32.mrb[0].mxu0
      %v1881 = vadd.f32 %v1660, %v1880
      %v1882 = vpop.f32.mrb[0].mxu0
      %v1883 = vpop.f32.mrb[0].mxu0
      %v1884 = vadd.f32 %v1660, %v1883
      %v1885 = vpop.f32.mrb[0].mxu0
      %1886 = vmatprep.mubr.bf16.mxu0 0
      %1887 = vmatmul.mubr.bf16.gmra.mrb[0].mxu0 %v1733
      %v1888 = vpop.f32.mrb[0].mxu0
      %v1889 = vadd.f32 %v1660, %v1888
      %v1890 = vpop.f32.mrb[0].mxu0
      %v1891 = vpop.f32.mrb[0].mxu0
      %v1892 = vadd.f32 %v1660, %v1891
      %v1893 = vpop.f32.mrb[0].mxu0
      %1894 = vmatprep.mubr.bf16.mxu0 0
      %1895 = vmatmul.mubr.bf16.gmra.mrb[0].mxu0 %v1736
      %v1896 = vpop.f32.mrb[0].mxu0
      %v1897 = vadd.f32 %v1660, %v1896
      %v1898 = vpop.f32.mrb[0].mxu0
      %v1899 = vpop.f32.mrb[0].mxu0
      %v1900 = vadd.f32 %v1660, %v1899
      %v1901 = vpop.f32.mrb[0].mxu0
      %1902 = vdwg.mxu0
      %1903 = vst [vmem:[%s235] sm:$0xff] %v1777
      %1904 = vst [vmem:[%s235 + $0x8] sm:$0xff] %v1780
      %1905 = vst [vmem:[%s235 + $0x10] sm:$0xff] %v1785
      %1906 = vst [vmem:[%s235 + $0x18] sm:$0xff] %v1788
      %1907 = vst [vmem:[%s235 + $0x20] sm:$0xff] %v1793
      %1908 = vst [vmem:[%s235 + $0x28] sm:$0xff] %v1796
      %1909 = vst [vmem:[%s235 + $0x30] sm:$0xff] %v1801
      %1910 = vst [vmem:[%s235 + $0x38] sm:$0xff] %v1804
      %1911 = vst [vmem:[%s235 + $0x40] sm:$0xff] %v1809
      %1912 = vst [vmem:[%s235 + $0x48] sm:$0xff] %v1812
      %1913 = vst [vmem:[%s235 + $0x50] sm:$0xff] %v1817
      %1914 = vst [vmem:[%s235 + $0x58] sm:$0xff] %v1820
      %1915 = vst [vmem:[%s235 + $0x60] sm:$0xff] %v1825
      %1916 = vst [vmem:[%s235 + $0x68] sm:$0xff] %v1828
      %1917 = vst [vmem:[%s235 + $0x70] sm:$0xff] %v1833
      %1918 = vst [vmem:[%s235 + $0x78] sm:$0xff] %v1836
      %1919 = vst [vmem:[%s235 + $0x80] sm:$0xff] %v1841
      %1920 = vst [vmem:[%s235 + $0x88] sm:$0xff] %v1844
      %1921 = vst [vmem:[%s235 + $0x90] sm:$0xff] %v1849
      %1922 = vst [vmem:[%s235 + $0x98] sm:$0xff] %v1852
      %1923 = vst [vmem:[%s235 + $0xa0] sm:$0xff] %v1857
      %1924 = vst [vmem:[%s235 + $0xa8] sm:$0xff] %v1860
      %1925 = vst [vmem:[%s235 + $0xb0] sm:$0xff] %v1865
      %1926 = vst [vmem:[%s235 + $0xb8] sm:$0xff] %v1868
      %1927 = vst [vmem:[%s235 + $0xc0] sm:$0xff] %v1873
      %1928 = vst [vmem:[%s235 + $0xc8] sm:$0xff] %v1876
      %1929 = vst [vmem:[%s235 + $0xd0] sm:$0xff] %v1881
      %1930 = vst [vmem:[%s235 + $0xd8] sm:$0xff] %v1884
      %1931 = vst [vmem:[%s235 + $0xe0] sm:$0xff] %v1889
      %1932 = vst [vmem:[%s235 + $0xe8] sm:$0xff] %v1892
      %1933 = vst [vmem:[%s235 + $0xf0] sm:$0xff] %v1897
      %1934 = vst [vmem:[%s235 + $0xf8] sm:$0xff] %v1900
      %v1935 = vadd.f32 %v1777, %v1780
      %v1936 = vadd.f32 %v1935, %v1785
      %v1937 = vadd.f32 %v1936, %v1788
      %v1938 = vadd.f32 %v1937, %v1793
      %v1939 = vadd.f32 %v1938, %v1796
      %v1940 = vadd.f32 %v1939, %v1801
      %v1941 = vadd.f32 %v1940, %v1804
      %v1942 = vadd.f32 %v1941, %v1809
      %v1943 = vadd.f32 %v1942, %v1812
      %v1944 = vadd.f32 %v1943, %v1817
      %v1945 = vadd.f32 %v1944, %v1820
      %v1946 = vadd.f32 %v1945, %v1825
      %v1947 = vadd.f32 %v1946, %v1828
      %v1948 = vadd.f32 %v1947, %v1833
      %v1949 = vadd.f32 %v1948, %v1836
      %v1950 = vadd.f32 %v1949, %v1841
      %v1951 = vadd.f32 %v1950, %v1844
      %v1952 = vadd.f32 %v1951, %v1849
      %v1953 = vadd.f32 %v1952, %v1852
      %v1954 = vadd.f32 %v1953, %v1857
      %v1955 = vadd.f32 %v1954, %v1860
      %v1956 = vadd.f32 %v1955, %v1865
      %v1957 = vadd.f32 %v1956, %v1868
      %v1958 = vadd.f32 %v1957, %v1873
      %v1959 = vadd.f32 %v1958, %v1876
      %v1960 = vadd.f32 %v1959, %v1881
      %v1961 = vadd.f32 %v1960, %v1884
      %v1962 = vadd.f32 %v1961, %v1889
      %v1963 = vadd.f32 %v1962, %v1892
      %v1964 = vadd.f32 %v1963, %v1897
      %v1965 = vadd.f32 %v1964, %v1900
      %v1966 = vrot.slane %v1965, 4
      %v1967 = vadd.f32 %v1965, %v1966
      %v1968 = vrot.slane %v1967, 2
      %v1969 = vadd.f32 %v1967, %v1968
      %v1970 = vrot.slane %v1969, 1
      %v1971 = vadd.f32 %v1969, %v1970
      %1972 = vst [vmem:[%s238] sm:$0x1] %v1971
      %v1973 = vmul.f32 %v1777, %v1777
      %v1974 = vmul.f32 %v1780, %v1780
      %v1975 = vmul.f32 %v1785, %v1785
      %v1976 = vmul.f32 %v1788, %v1788
      %v1977 = vmul.f32 %v1793, %v1793
      %v1978 = vmul.f32 %v1796, %v1796
      %v1979 = vmul.f32 %v1801, %v1801
      %v1980 = vmul.f32 %v1804, %v1804
      %v1981 = vmul.f32 %v1809, %v1809
      %v1982 = vmul.f32 %v1812, %v1812
      %v1983 = vmul.f32 %v1817, %v1817
      %v1984 = vmul.f32 %v1820, %v1820
      %v1985 = vmul.f32 %v1825, %v1825
      %v1986 = vmul.f32 %v1828, %v1828
      %v1987 = vmul.f32 %v1833, %v1833
      %v1988 = vmul.f32 %v1836, %v1836
      %v1989 = vmul.f32 %v1841, %v1841
      %v1990 = vmul.f32 %v1844, %v1844
      %v1991 = vmul.f32 %v1849, %v1849
      %v1992 = vmul.f32 %v1852, %v1852
      %v1993 = vmul.f32 %v1857, %v1857
      %v1994 = vmul.f32 %v1860, %v1860
      %v1995 = vmul.f32 %v1865, %v1865
      %v1996 = vmul.f32 %v1868, %v1868
      %v1997 = vmul.f32 %v1873, %v1873
      %v1998 = vmul.f32 %v1876, %v1876
      %v1999 = vmul.f32 %v1881, %v1881
      %v2000 = vmul.f32 %v1884, %v1884
      %v2001 = vmul.f32 %v1889, %v1889
      %v2002 = vmul.f32 %v1892, %v1892
      %v2003 = vmul.f32 %v1897, %v1897
      %v2004 = vmul.f32 %v1900, %v1900
      %v2005 = vadd.f32 %v1973, %v1974
      %v2006 = vadd.f32 %v2005, %v1975
      %v2007 = vadd.f32 %v2006, %v1976
      %v2008 = vadd.f32 %v2007, %v1977
      %v2009 = vadd.f32 %v2008, %v1978
      %v2010 = vadd.f32 %v2009, %v1979
      %v2011 = vadd.f32 %v2010, %v1980
      %v2012 = vadd.f32 %v2011, %v1981
      %v2013 = vadd.f32 %v2012, %v1982
      %v2014 = vadd.f32 %v2013, %v1983
      %v2015 = vadd.f32 %v2014, %v1984
      %v2016 = vadd.f32 %v2015, %v1985
      %v2017 = vadd.f32 %v2016, %v1986
      %v2018 = vadd.f32 %v2017, %v1987
      %v2019 = vadd.f32 %v2018, %v1988
      %v2020 = vadd.f32 %v2019, %v1989
      %v2021 = vadd.f32 %v2020, %v1990
      %v2022 = vadd.f32 %v2021, %v1991
      %v2023 = vadd.f32 %v2022, %v1992
      %v2024 = vadd.f32 %v2023, %v1993
      %v2025 = vadd.f32 %v2024, %v1994
      %v2026 = vadd.f32 %v2025, %v1995
      %v2027 = vadd.f32 %v2026, %v1996
      %v2028 = vadd.f32 %v2027, %v1997
      %v2029 = vadd.f32 %v2028, %v1998
      %v2030 = vadd.f32 %v2029, %v1999
      %v2031 = vadd.f32 %v2030, %v2000
      %v2032 = vadd.f32 %v2031, %v2001
      %v2033 = vadd.f32 %v2032, %v2002
      %v2034 = vadd.f32 %v2033, %v2003
      %v2035 = vadd.f32 %v2034, %v2004
      %v2036 = vrot.slane %v2035, 4
      %v2037 = vadd.f32 %v2035, %v2036
      %v2038 = vrot.slane %v2037, 2
      %v2039 = vadd.f32 %v2037, %v2038
      %v2040 = vrot.slane %v2039, 1
      %v2041 = vadd.f32 %v2039, %v2040
      %2042 = vst [vmem:[%s241] sm:$0x1] %v2041
      %p2043 = scmp.lt.s32.totalorder %s17, 1
      %s2044 = scalar_select %p2043, %s17, 1
      %s2045 = smul.addr %s2044, 32
      %s2046 = smul.addr %s2045, 8
      %s2047 = scalar_lea.vmem %s3, %s2046
      %p2048 = scmp.lt.s32.totalorder %s17, 1
      %s2049 = scalar_select %p2048, %s17, 1
      %s2050 = scalar_lea.vmem %s4, %s2049
      %p2051 = scmp.lt.s32.totalorder %s17, 1
      %s2052 = scalar_select %p2051, %s17, 1
      %s2053 = scalar_lea.vmem %s5, %s2052
      // Predicated region
      $region33: #{upconv_forward.6} parent=31 // pred_check
        %p2054 = pneg %p103
      $region34: #{upconv_forward.6} parent=31 // pred_check_branch
        %2056 = sbr.rel (%p2054) target = $region36
      $region35: #{upconv_forward.6} parent=31 // pred_region
        _
      $region36: #{upconv_forward.6} parent=31 // pred_fallthru
        _
      // Predicated region
      $region37: #{upconv_forward.6} parent=31 // pred_check
        %p2057 = pneg %p129
      $region38: #{upconv_forward.6} parent=31 // pred_check_branch
        %2059 = sbr.rel (%p2057) target = $region40
      $region39: #{upconv_forward.6} parent=31 // pred_region
        _
      $region40: #{upconv_forward.6} parent=31 // pred_fallthru
        _
      // Predicated region
      $region41: #{upconv_forward.6} parent=31 // pred_check
        %p2060 = pneg %p155
      $region42: #{upconv_forward.6} parent=31 // pred_check_branch
        %2062 = sbr.rel (%p2060) target = $region44
      $region43: #{upconv_forward.6} parent=31 // pred_region
        _
      $region44: #{upconv_forward.6} parent=31 // pred_fallthru
        _
    $region32: #{upconv_forward.6} parent=5 // pred_fallthru
      _
    %p2063 = scmp.le.s32.totalorder 2, %s12
    // Predicated region
    $region45: #{upconv_forward.6} parent=5 // pred_check
      %p2064 = pneg %p2063
    $region46: #{upconv_forward.6} parent=5 // pred_check_branch
      %2066 = sbr.rel (%p2064) target = $region48
    $region47: #{upconv_forward.6} parent=5 // pred_region
      %s2067 = ssub.s32 %s12, 2
      // Predicated region
      $region49: #{upconv_forward.6} parent=47 // pred_check
        %p2068 = pneg %p109
      $region50: #{upconv_forward.6} parent=47 // pred_check_branch
        %2070 = sbr.rel (%p2068) target = $region52
      $region51: #{upconv_forward.6} parent=47 // pred_region
        %p2071 = scmp.lt.s32.totalorder %s18, 1
        %s2072 = scalar_select %p2071, %s18, 1
        %s2073 = smul.addr %s2072, 32
        %s2074 = smul.addr %s2073, 8
        %s2075 = scalar_lea.vmem %s3, %s2074
      $region52: #{upconv_forward.6} parent=47 // pred_fallthru
        _
      // Predicated region
      $region53: #{upconv_forward.6} parent=47 // pred_check
        %p2076 = pneg %p135
      $region54: #{upconv_forward.6} parent=47 // pred_check_branch
        %2078 = sbr.rel (%p2076) target = $region56
      $region55: #{upconv_forward.6} parent=47 // pred_region
        %p2079 = scmp.lt.s32.totalorder %s18, 1
        %s2080 = scalar_select %p2079, %s18, 1
        %s2081 = scalar_lea.vmem %s4, %s2080
      $region56: #{upconv_forward.6} parent=47 // pred_fallthru
        _
      // Predicated region
      $region57: #{upconv_forward.6} parent=47 // pred_check
        %p2082 = pneg %p161
      $region58: #{upconv_forward.6} parent=47 // pred_check_branch
        %2084 = sbr.rel (%p2082) target = $region60
      $region59: #{upconv_forward.6} parent=47 // pred_region
        %p2085 = scmp.lt.s32.totalorder %s18, 1
        %s2086 = scalar_select %p2085, %s18, 1
        %s2087 = scalar_lea.vmem %s5, %s2086
      $region60: #{upconv_forward.6} parent=47 // pred_fallthru
        _
    $region48: #{upconv_forward.6} parent=5 // pred_fallthru
      _
  $region6: #{upconv_forward.6} parent=0 // loop_footer
    %s16 = sadd.s32 1, %s12
  $region7: #{upconv_forward.6} parent=0 // loop_footer_branch
    %11 = sbr.rel target = $region3
  $region8: #{upconv_forward.6} parent=0 // loop_exit
    _

// kernel: upconv_forward.8
$region0: #{upconv_forward.8}
  #allocation0 [shape = 'u32[]', space=smem, size = 0x4, offset = 0x4, fixed_abs, tag = 'smem constant byte address 0x4 - core index']
  #allocation1 [shape = 'u32[144,128]{1,0:T(1,128)}', space=vmem, size = 0x12000, scoped, tag = 'internal scratch']
  #allocation2 [shape = 'bf16[256,36]{1,0:T(16,128)(2,1)}', space=vmem, size = 0x10000, scoped, tag = 'scratch operand']
  %s0 = inlined_call_operand.vmem [shape: bf16[2,18,18,4], index: 0, kind: input, shape index: {}]
  %s1 = inlined_call_operand.vmem [shape: bf16[36,128], index: 1, kind: input, shape index: {}]
  %s2 = inlined_call_operand.vmem [shape: f32[1,128], index: 2, kind: input, shape index: {}]
  %s3 = inlined_call_operand.vmem [shape: f32[2,256,128], index: 3, kind: output, shape index: {0}]
  %s4 = inlined_call_operand.vmem [shape: f32[2,1,128], index: 4, kind: output, shape index: {1}]
  %s5 = inlined_call_operand.vmem [shape: f32[2,1,128], index: 5, kind: output, shape index: {2}]
  %6 = xla_tuple %s3, %s4, %s5
  %s7 = sld [smem:[#allocation0]]
  $region61: #{upconv_forward.8} parent=0
    _
  %s9 = ssub.s32 1, %s7
  %s10 = scalar_select 0, %s9, %s7
  loop: start=0, step=1, limit=4
  $region2: #{upconv_forward.8} parent=0 // loop_pre_header
    _
  $region3: #{upconv_forward.8} parent=0 // loop_header
    %s12 = sphi 0, %s16
    %p13 = scmp.ge.s32.totalorder %s12, 4
    %s22 = sphi 0, %s24
    %s25 = sphi 0, %s22
    %s26 = sphi 0, %s25
    %s42 = sphi 0, %s26
    %s46 = sphi 0, %s46
    %s48 = sphi 0, %s46
    %s49 = sphi 0, %s48
    %s63 = sphi 0, %s49
    %s67 = sphi 0, %s67
    %s69 = sphi 0, %s67
    %s70 = sphi 0, %s69
    %s84 = sphi 0, %s70
    %s90 = sphi 0, %s92
    %s93 = sphi 0, %s90
    %s94 = sphi 0, %s93
    %s110 = sphi 0, %s94
    %s116 = sphi 0, %s118
    %s119 = sphi 0, %s116
    %s120 = sphi 0, %s119
    %s136 = sphi 0, %s120
    %s142 = sphi 0, %s144
    %s145 = sphi 0, %s142
    %s146 = sphi 0, %s145
    %s162 = sphi 0, %s146
  $region4: #{upconv_forward.8} parent=0 // loop_header_branch
    %15 = sbr.rel (%p13) target = $region8
  $region5: #{upconv_forward.8} parent=0 // loop_body
    %s17 = ssub.s32 %s12, 1
    %s18 = ssub.s32 %s12, 2
    %s19 = sadd.s32 %s12, 1
    %s20 = ssub.s32 %s12, %s19
    %p21 = scmp.eq.s32.totalorder %s20, 0
    %s23 = sadd.s32 %s22, 1
    %s24 = scalar_select %p21, %s22, %s23
    %p27 = pneg %p21
    %p28 = scmp.eq.s32.totalorder %s12, 1
    %p29 = por %p27, %p28
    %p30 = scmp.ne.s32.totalorder %s22, %s25
    %p31 = scmp.eq.s32.totalorder %s12, 0
    %p32 = por %p30, %p31
    %p33 = scmp.ne.s32.totalorder %s22, %s25
    %p34 = scmp.eq.s32.totalorder %s17, 1
    %p35 = por %p33, %p34
    %p36 = scmp.ne.s32.totalorder %s25, %s26
    %p37 = scmp.eq.s32.totalorder %s17, 0
    %p38 = por %p36, %p37
    %p39 = scmp.ne.s32.totalorder %s25, %s26
    %p40 = scmp.eq.s32.totalorder %s18, 1
    %p41 = por %p39, %p40
    %p43 = scmp.ne.s32.totalorder %s26, %s42
    %p44 = scmp.eq.s32.totalorder %s18, 0
    %p45 = por %p43, %p44
    %s47 = sadd.s32 %s46, 1
    %p50 = scmp.eq.s32.totalorder %s12, 1
    %p51 = scmp.ne.s32.totalorder %s46, %s48
    %p52 = scmp.eq.s32.totalorder %s12, 0
    %p53 = por %p51, %p52
    %p54 = scmp.ne.s32.totalorder %s46, %s48
    %p55 = scmp.eq.s32.totalorder %s17, 1
    %p56 = por %p54, %p55
    %p57 = scmp.ne.s32.totalorder %s48, %s49
    %p58 = scmp.eq.s32.totalorder %s17, 0
    %p59 = por %p57, %p58
    %p60 = scmp.ne.s32.totalorder %s48, %s49
    %p61 = scmp.eq.s32.totalorder %s18, 1
    %p62 = por %p60, %p61
    %p64 = scmp.ne.s32.totalorder %s49, %s63
    %p65 = scmp.eq.s32.totalorder %s18, 0
    %p66 = por %p64, %p65
    %s68 = sadd.s32 %s67, 1
    %p71 = scmp.eq.s32.totalorder %s12, 1
    %p72 = scmp.ne.s32.totalorder %s67, %s69
    %p73 = scmp.eq.s32.totalorder %s12, 0
    %p74 = por %p72, %p73
    %p75 = scmp.ne.s32.totalorder %s67, %s69
    %p76 = scmp.eq.s32.totalorder %s17, 1
    %p77 = por %p75, %p76
    %p78 = scmp.ne.s32.totalorder %s69, %s70
    %p79 = scmp.eq.s32.totalorder %s17, 0
    %p80 = por %p78, %p79
    %p81 = scmp.ne.s32.totalorder %s69, %s70
    %p82 = scmp.eq.s32.totalorder %s18, 1
    %p83 = por %p81, %p82
    %p85 = scmp.ne.s32.totalorder %s70, %s84
    %p86 = scmp.eq.s32.totalorder %s18, 0
    %p87 = por %p85, %p86
    %s88 = ssub.s32 %s12, %s19
    %p89 = scmp.eq.s32.totalorder %s88, 0
    %s91 = sadd.s32 %s90, 1
    %s92 = scalar_select %p89, %s90, %s91
    %p95 = pneg %p89
    %p96 = scmp.eq.s32.totalorder %s12, 1
    %p97 = por %p95, %p96
    %p98 = scmp.ne.s32.totalorder %s90, %s93
    %p99 = scmp.eq.s32.totalorder %s12, 0
    %p100 = por %p98, %p99
    %p101 = scmp.ne.s32.totalorder %s90, %s93
    %p102 = scmp.eq.s32.totalorder %s17, 1
    %p103 = por %p101, %p102
    %p104 = scmp.ne.s32.totalorder %s93, %s94
    %p105 = scmp.eq.s32.totalorder %s17, 0
    %p106 = por %p104, %p105
    %p107 = scmp.ne.s32.totalorder %s93, %s94
    %p108 = scmp.eq.s32.totalorder %s18, 1
    %p109 = por %p107, %p108
    %p111 = scmp.ne.s32.totalorder %s94, %s110
    %p112 = scmp.eq.s32.totalorder %s18, 0
    %p113 = por %p111, %p112
    %s114 = ssub.s32 %s12, %s19
    %p115 = scmp.eq.s32.totalorder %s114, 0
    %s117 = sadd.s32 %s116, 1
    %s118 = scalar_select %p115, %s116, %s117
    %p121 = pneg %p115
    %p122 = scmp.eq.s32.totalorder %s12, 1
    %p123 = por %p121, %p122
    %p124 = scmp.ne.s32.totalorder %s116, %s119
    %p125 = scmp.eq.s32.totalorder %s12, 0
    %p126 = por %p124, %p125
    %p127 = scmp.ne.s32.totalorder %s116, %s119
    %p128 = scmp.eq.s32.totalorder %s17, 1
    %p129 = por %p127, %p128
    %p130 = scmp.ne.s32.totalorder %s119, %s120
    %p131 = scmp.eq.s32.totalorder %s17, 0
    %p132 = por %p130, %p131
    %p133 = scmp.ne.s32.totalorder %s119, %s120
    %p134 = scmp.eq.s32.totalorder %s18, 1
    %p135 = por %p133, %p134
    %p137 = scmp.ne.s32.totalorder %s120, %s136
    %p138 = scmp.eq.s32.totalorder %s18, 0
    %p139 = por %p137, %p138
    %s140 = ssub.s32 %s12, %s19
    %p141 = scmp.eq.s32.totalorder %s140, 0
    %s143 = sadd.s32 %s142, 1
    %s144 = scalar_select %p141, %s142, %s143
    %p147 = pneg %p141
    %p148 = scmp.eq.s32.totalorder %s12, 1
    %p149 = por %p147, %p148
    %p150 = scmp.ne.s32.totalorder %s142, %s145
    %p151 = scmp.eq.s32.totalorder %s12, 0
    %p152 = por %p150, %p151
    %p153 = scmp.ne.s32.totalorder %s142, %s145
    %p154 = scmp.eq.s32.totalorder %s17, 1
    %p155 = por %p153, %p154
    %p156 = scmp.ne.s32.totalorder %s145, %s146
    %p157 = scmp.eq.s32.totalorder %s17, 0
    %p158 = por %p156, %p157
    %p159 = scmp.ne.s32.totalorder %s145, %s146
    %p160 = scmp.eq.s32.totalorder %s18, 1
    %p161 = por %p159, %p160
    %p163 = scmp.ne.s32.totalorder %s146, %s162
    %p164 = scmp.eq.s32.totalorder %s18, 0
    %p165 = por %p163, %p164
    %p166 = scmp.le.s32.totalorder 1, %s12
    %p167 = scmp.lt.s32.totalorder %s12, 3
    %p168 = pnand %p166, %p167
    %p169 = pneg %p168
    // Predicated region
    $region9: #{upconv_forward.8} parent=5 // pred_check
      _
    $region10: #{upconv_forward.8} parent=5 // pred_check_branch
      %171 = sbr.rel (%p168) target = $region12
    $region11: #{upconv_forward.8} parent=5 // pred_region
      %s172 = ssub.s32 %s12, 1
      // Predicated region
      $region13: #{upconv_forward.8} parent=11 // pred_check
        %p173 = pneg %p59
      $region14: #{upconv_forward.8} parent=11 // pred_check_branch
        %175 = sbr.rel (%p173) target = $region16
      $region15: #{upconv_forward.8} parent=11 // pred_region
        _
      $region16: #{upconv_forward.8} parent=11 // pred_fallthru
        _
      // Predicated region
      $region17: #{upconv_forward.8} parent=11 // pred_check
        %p176 = pneg %p80
      $region18: #{upconv_forward.8} parent=11 // pred_check_branch
        %178 = sbr.rel (%p176) target = $region20
      $region19: #{upconv_forward.8} parent=11 // pred_region
        _
      $region20: #{upconv_forward.8} parent=11 // pred_fallthru
        _
    $region12: #{upconv_forward.8} parent=5 // pred_fallthru
      _
    %p179 = scmp.lt.s32.totalorder %s12, 2
    // Predicated region
    $region21: #{upconv_forward.8} parent=5 // pred_check
      %p180 = pneg %p179
    $region22: #{upconv_forward.8} parent=5 // pred_check_branch
      %182 = sbr.rel (%p180) target = $region24
    $region23: #{upconv_forward.8} parent=5 // pred_region
      // Predicated region
      $region25: #{upconv_forward.8} parent=23 // pred_check
        %p183 = pneg %p32
      $region26: #{upconv_forward.8} parent=23 // pred_check_branch
        %185 = sbr.rel (%p183) target = $region28
      $region27: #{upconv_forward.8} parent=23 // pred_region
        %p186 = scmp.lt.s32.totalorder %s12, 1
        %s187 = scalar_select %p186, %s12, 1
        %s188 = smul.addr %s187, 54
        %s189 = smul.addr %s188, 4
        %s190 = scalar_lea.vmem %s0, %s189
      $region28: #{upconv_forward.8} parent=23 // pred_fallthru
        _
    $region24: #{upconv_forward.8} parent=5 // pred_fallthru
      _
    %p191 = scmp.le.s32.totalorder 1, %s12
    %p192 = scmp.lt.s32.totalorder %s12, 3
    %p193 = pnand %p191, %p192
    %p194 = pneg %p193
    // Predicated region
    $region29: #{upconv_forward.8} parent=5 // pred_check
      _
    $region30: #{upconv_forward.8} parent=5 // pred_check_branch
      %196 = sbr.rel (%p193) target = $region32
    $region31: #{upconv_forward.8} parent=5 // pred_region
      %s197 = ssub.s32 %s12, 1
      %p198 = scmp.lt.s32.totalorder %s17, 1
      %s199 = scalar_select %p198, %s17, 1
      %s200 = smul.addr %s199, 54
      %s201 = smul.addr %s200, 4
      %s202 = scalar_lea.vmem %s0, %s201
      %p203 = pneg %p38
      %p204 = pneg %p35
      %p205 = pneg %p59
      %p206 = pneg %p56
      %p207 = pneg %p80
      %p208 = pneg %p77
      %p209 = pneg %p106
      %p210 = pneg %p103
      %p211 = scmp.lt.s32.totalorder %s17, 1
      %s212 = scalar_select %p211, %s17, 1
      %s213 = smul.addr %s212, 32
      %s214 = smul.addr %s213, 8
      %s215 = scalar_lea.vmem %s3, %s214
      %p216 = pneg %p132
      %p217 = pneg %p129
      %p218 = scmp.lt.s32.totalorder %s17, 1
      %s219 = scalar_select %p218, %s17, 1
      %s220 = scalar_lea.vmem %s4, %s219
      %p221 = pneg %p158
      %p222 = pneg %p155
      %p223 = scmp.lt.s32.totalorder %s17, 1
      %s224 = scalar_select %p223, %s17, 1
      %s225 = scalar_lea.vmem %s5, %s224
      %p226 = scmp.lt.s32.totalorder %s17, 1
      %s227 = scalar_select %p226, %s17, 1
      %s228 = smul.addr %s227, 54
      %s229 = smul.addr %s228, 4
      %s230 = scalar_lea.vmem %s0, %s229
      %p231 = scmp.lt.s32.totalorder %s17, 1
      %s232 = scalar_select %p231, %s17, 1
      %s233 = smul.addr %s232, 32
      %s234 = smul.addr %s233, 8
      %s235 = scalar_lea.vmem %s3, %s234
      %p236 = scmp.lt.s32.totalorder %s17, 1
      %s237 = scalar_select %p236, %s17, 1
      %s238 = scalar_lea.vmem %s4, %s237
      %p239 = scmp.lt.s32.totalorder %s17, 1
      %s240 = scalar_select %p239, %s17, 1
      %s241 = scalar_lea.vmem %s5, %s240
      %v243 = vld [vmem:[%s230] sm:$0xf]
      %v244 = vld [vmem:[%s230 + $0x4] sm:$0xf]
      %v245 = vld [vmem:[%s230 + $0x8] sm:$0x1]
      %v246 = vld [vmem:[%s230 + $0xc] sm:$0xf]
      %v247 = vld [vmem:[%s230 + $0x10] sm:$0xf]
      %v248 = vld [vmem:[%s230 + $0x14] sm:$0x1]
      %v249 = vld [vmem:[%s230 + $0x18] sm:$0xf]
      %v250 = vld [vmem:[%s230 + $0x1c] sm:$0xf]
      %v251 = vld [vmem:[%s230 + $0x20] sm:$0x1]
      %v252 = vld [vmem:[%s230 + $0x24] sm:$0xf]
      %v253 = vld [vmem:[%s230 + $0x28] sm:$0xf]
      %v254 = vld [vmem:[%s230 + $0x2c] sm:$0x1]
      %v255 = vld [vmem:[%s230 + $0x30] sm:$0xf]
      %v256 = vld [vmem:[%s230 + $0x34] sm:$0xf]
      %v257 = vld [vmem:[%s230 + $0x38] sm:$0x1]
      %v258 = vld [vmem:[%s230 + $0x3c] sm:$0xf]
      %v259 = vld [vmem:[%s230 + $0x40] sm:$0xf]
      %v260 = vld [vmem:[%s230 + $0x44] sm:$0x1]
      %v261 = vld [vmem:[%s230 + $0x48] sm:$0xf]
      %v262 = vld [vmem:[%s230 + $0x4c] sm:$0xf]
      %v263 = vld [vmem:[%s230 + $0x50] sm:$0x1]
      %v264 = vld [vmem:[%s230 + $0x54] sm:$0xf]
      %v265 = vld [vmem:[%s230 + $0x58] sm:$0xf]
      %v266 = vld [vmem:[%s230 + $0x5c] sm:$0x1]
      %v267 = vld [vmem:[%s230 + $0x60] sm:$0xf]
      %v268 = vld [vmem:[%s230 + $0x64] sm:$0xf]
      %v269 = vld [vmem:[%s230 + $0x68] sm:$0x1]
      %v270 = vld [vmem:[%s230 + $0x6c] sm:$0xf]
      %v271 = vld [vmem:[%s230 + $0x70] sm:$0xf]
      %v272 = vld [vmem:[%s230 + $0x74] sm:$0x1]
      %v273 = vld [vmem:[%s230 + $0x78] sm:$0xf]
      %v274 = vld [vmem:[%s230 + $0x7c] sm:$0xf]
      %v275 = vld [vmem:[%s230 + $0x80] sm:$0x1]
      %v276 = vld [vmem:[%s230 + $0x84] sm:$0xf]
      %v277 = vld [vmem:[%s230 + $0x88] sm:$0xf]
      %v278 = vld [vmem:[%s230 + $0x8c] sm:$0x1]
      %v279 = vld [vmem:[%s230 + $0x90] sm:$0xf]
      %v280 = vld [vmem:[%s230 + $0x94] sm:$0xf]
      %v281 = vld [vmem:[%s230 + $0x98] sm:$0x1]
      %v282 = vld [vmem:[%s230 + $0x9c] sm:$0xf]
      %v283 = vld [vmem:[%s230 + $0xa0] sm:$0xf]
      %v284 = vld [vmem:[%s230 + $0xa4] sm:$0x1]
      %v285 = vld [vmem:[%s230 + $0xa8] sm:$0xf]
      %v286 = vld [vmem:[%s230 + $0xac] sm:$0xf]
      %v287 = vld [vmem:[%s230 + $0xb0] sm:$0x1]
      %v288 = vld [vmem:[%s230 + $0xb4] sm:$0xf]
      %v289 = vld [vmem:[%s230 + $0xb8] sm:$0xf]
      %v290 = vld [vmem:[%s230 + $0xbc] sm:$0x1]
      %v291 = vld [vmem:[%s230 + $0xc0] sm:$0xf]
      %v292 = vld [vmem:[%s230 + $0xc4] sm:$0xf]
      %v293 = vld [vmem:[%s230 + $0xc8] sm:$0x1]
      %v294 = vld [vmem:[%s230 + $0xcc] sm:$0xf]
      %v295 = vld [vmem:[%s230 + $0xd0] sm:$0xf]
      %v296 = vld [vmem:[%s230 + $0xd4] sm:$0x1]
      %v329 = vunpack.c.l.b16 %v243
      %v330 = vunpack.c.l.b16 %v244
      %v331 = vunpack.c.l.b16 %v246
      %v332 = vunpack.c.l.b16 %v247
      %v333 = vunpack.c.l.b16 %v249
      %v334 = vunpack.c.l.b16 %v250
      %v335 = vunpack.c.l.b16 %v252
      %v336 = vunpack.c.l.b16 %v253
      %v337 = vunpack.c.l.b16 %v255
      %v338 = vunpack.c.l.b16 %v256
      %v339 = vunpack.c.l.b16 %v258
      %v340 = vunpack.c.l.b16 %v259
      %v341 = vunpack.c.l.b16 %v261
      %v342 = vunpack.c.l.b16 %v262
      %v343 = vunpack.c.l.b16 %v264
      %v344 = vunpack.c.l.b16 %v265
      %v345 = vunpack.c.l.b16 %v267
      %v346 = vunpack.c.l.b16 %v268
      %v347 = vunpack.c.l.b16 %v270
      %v348 = vunpack.c.l.b16 %v271
      %v349 = vunpack.c.l.b16 %v273
      %v350 = vunpack.c.l.b16 %v274
      %v351 = vunpack.c.l.b16 %v276
      %v352 = vunpack.c.l.b16 %v277
      %v353 = vunpack.c.l.b16 %v279
      %v354 = vunpack.c.l.b16 %v280
      %v355 = vunpack.c.l.b16 %v282
      %v356 = vunpack.c.l.b16 %v283
      %v357 = vunpack.c.l.b16 %v285
      %v358 = vunpack.c.l.b16 %v286
      %v359 = vunpack.c.l.b16 %v288
      %v360 = vunpack.c.l.b16 %v289
      %v361 = vpack.c.b16 %v330, %v329
      %v362 = vpack.c.b16 %v332, %v331
      %v363 = vpack.c.b16 %v334, %v333
      %v364 = vpack.c.b16 %v336, %v335
      %v365 = vpack.c.b16 %v338, %v337
      %v366 = vpack.c.b16 %v340, %v339
      %v367 = vpack.c.b16 %v342, %v341
      %v368 = vpack.c.b16 %v344, %v343
      %v369 = vpack.c.b16 %v346, %v345
      %v370 = vpack.c.b16 %v348, %v347
      %v371 = vpack.c.b16 %v350, %v349
      %v372 = vpack.c.b16 %v352, %v351
      %v373 = vpack.c.b16 %v354, %v353
      %v374 = vpack.c.b16 %v356, %v355
      %v375 = vpack.c.b16 %v358, %v357
      %v376 = vpack.c.b16 %v360, %v359
      %vm393 = vcmask 31744
      %394 = vst.msk [vmem:[#allocation2] sm:$0xff] %vm393, %v361
      %395 = vst.msk [vmem:[#allocation2 + $0x8] sm:$0xff] %vm393, %v362
      %396 = vst.msk [vmem:[#allocation2 + $0x10] sm:$0xff] %vm393, %v363
      %397 = vst.msk [vmem:[#allocation2 + $0x18] sm:$0xff] %vm393, %v364
      %398 = vst.msk [vmem:[#allocation2 + $0x20] sm:$0xff] %vm393, %v365
      %399 = vst.msk [vmem:[#allocation2 + $0x28] sm:$0xff] %vm393, %v366
      %400 = vst.msk [vmem:[#allocation2 + $0x30] sm:$0xff] %vm393, %v367
      %401 = vst.msk [vmem:[#allocation2 + $0x38] sm:$0xff] %vm393, %v368
      %402 = vst.msk [vmem:[#allocation2 + $0x40] sm:$0xff] %vm393, %v369
      %403 = vst.msk [vmem:[#allocation2 + $0x48] sm:$0xff] %vm393, %v370
      %404 = vst.msk [vmem:[#allocation2 + $0x50] sm:$0xff] %vm393, %v371
      %405 = vst.msk [vmem:[#allocation2 + $0x58] sm:$0xff] %vm393, %v372
      %406 = vst.msk [vmem:[#allocation2 + $0x60] sm:$0xff] %vm393, %v373
      %407 = vst.msk [vmem:[#allocation2 + $0x68] sm:$0xff] %vm393, %v374
      %408 = vst.msk [vmem:[#allocation2 + $0x70] sm:$0xff] %vm393, %v375
      %409 = vst.msk [vmem:[#allocation2 + $0x78] sm:$0xff] %vm393, %v376
      %vm410 = vsmask.f32 3328
      %vm411 = vsmask.f32 7440
      %vm412 = vmor %vm410, %vm411
      %v414 = vshrl.u32 %v243, 16
      %v416 = vrot.slane %v414, 4
      %v417 = vshll.u32 %v243, 16
      %v419 = vrot.slane %v417, 5
      %v420 = vor.u32 %v416, %v419
      %v421 = vrot.slane %v420, 4
      %v423 = vshll.u32 %v244, 16
      %v425 = vrot.slane %v423, 5
      %v426 = vsel %vm412, %v421, %v425
      %v427 = vshrl.u32 %v244, 16
      %v429 = vrot.slane %v427, 4
      %v430 = vor.u32 %v429, %v425
      %v431 = vrot.slane %v430, 4
      %v433 = vshll.u32 %v245, 16
      %v435 = vrot.slane %v433, 5
      %v436 = vsel %vm412, %v431, %v435
      %v438 = vshrl.u32 %v246, 16
      %v440 = vrot.slane %v438, 4
      %v441 = vshll.u32 %v246, 16
      %v443 = vrot.slane %v441, 5
      %v444 = vor.u32 %v440, %v443
      %v445 = vrot.slane %v444, 4
      %v447 = vshll.u32 %v247, 16
      %v449 = vrot.slane %v447, 5
      %v450 = vsel %vm412, %v445, %v449
      %v451 = vshrl.u32 %v247, 16
      %v453 = vrot.slane %v451, 4
      %v454 = vor.u32 %v453, %v449
      %v455 = vrot.slane %v454, 4
      %v457 = vshll.u32 %v248, 16
      %v459 = vrot.slane %v457, 5
      %v460 = vsel %vm412, %v455, %v459
      %v462 = vshrl.u32 %v249, 16
      %v464 = vrot.slane %v462, 4
      %v465 = vshll.u32 %v249, 16
      %v467 = vrot.slane %v465, 5
      %v468 = vor.u32 %v464, %v467
      %v469 = vrot.slane %v468, 4
      %v471 = vshll.u32 %v250, 16
      %v473 = vrot.slane %v471, 5
      %v474 = vsel %vm412, %v469, %v473
      %v475 = vshrl.u32 %v250, 16
      %v477 = vrot.slane %v475, 4
      %v478 = vor.u32 %v477, %v473
      %v479 = vrot.slane %v478, 4
      %v481 = vshll.u32 %v251, 16
      %v483 = vrot.slane %v481, 5
      %v484 = vsel %vm412, %v479, %v483
      %v486 = vshrl.u32 %v252, 16
      %v488 = vrot.slane %v486, 4
      %v489 = vshll.u32 %v252, 16
      %v491 = vrot.slane %v489, 5
      %v492 = vor.u32 %v488, %v491
      %v493 = vrot.slane %v492, 4
      %v495 = vshll.u32 %v253, 16
      %v497 = vrot.slane %v495, 5
      %v498 = vsel %vm412, %v493, %v497
      %v499 = vshrl.u32 %v253, 16
      %v501 = vrot.slane %v499, 4
      %v502 = vor.u32 %v501, %v497
      %v503 = vrot.slane %v502, 4
      %v505 = vshll.u32 %v254, 16
      %v507 = vrot.slane %v505, 5
      %v508 = vsel %vm412, %v503, %v507
      %v510 = vshrl.u32 %v255, 16
      %v512 = vrot.slane %v510, 4
      %v513 = vshll.u32 %v255, 16
      %v515 = vrot.slane %v513, 5
      %v516 = vor.u32 %v512, %v515
      %v517 = vrot.slane %v516, 4
      %v519 = vshll.u32 %v256, 16
      %v521 = vrot.slane %v519, 5
      %v522 = vsel %vm412, %v517, %v521
      %v523 = vshrl.u32 %v256, 16
      %v525 = vrot.slane %v523, 4
      %v526 = vor.u32 %v525, %v521
      %v527 = vrot.slane %v526, 4
      %v529 = vshll.u32 %v257, 16
      %v531 = vrot.slane %v529, 5
      %v532 = vsel %vm412, %v527, %v531
      %v534 = vshrl.u32 %v258, 16
      %v536 = vrot.slane %v534, 4
      %v537 = vshll.u32 %v258, 16
      %v539 = vrot.slane %v537, 5
      %v540 = vor.u32 %v536, %v539
      %v541 = vrot.slane %v540, 4
      %v543 = vshll.u32 %v259, 16
      %v545 = vrot.slane %v543, 5
      %v546 = vsel %vm412, %v541, %v545
      %v547 = vshrl.u32 %v259, 16
      %v549 = vrot.slane %v547, 4
      %v550 = vor.u32 %v549, %v545
      %v551 = vrot.slane %v550, 4
      %v553 = vshll.u32 %v260, 16
      %v555 = vrot.slane %v553, 5
      %v556 = vsel %vm412, %v551, %v555
      %v558 = vshrl.u32 %v261, 16
      %v560 = vrot.slane %v558, 4
      %v561 = vshll.u32 %v261, 16
      %v563 = vrot.slane %v561, 5
      %v564 = vor.u32 %v560, %v563
      %v565 = vrot.slane %v564, 4
      %v567 = vshll.u32 %v262, 16
      %v569 = vrot.slane %v567, 5
      %v570 = vsel %vm412, %v565, %v569
      %v571 = vshrl.u32 %v262, 16
      %v573 = vrot.slane %v571, 4
      %v574 = vor.u32 %v573, %v569
      %v575 = vrot.slane %v574, 4
      %v577 = vshll.u32 %v263, 16
      %v579 = vrot.slane %v577, 5
      %v580 = vsel %vm412, %v575, %v579
      %v582 = vshrl.u32 %v264, 16
      %v584 = vrot.slane %v582, 4
      %v585 = vshll.u32 %v264, 16
      %v587 = vrot.slane %v585, 5
      %v588 = vor.u32 %v584, %v587
      %v589 = vrot.slane %v588, 4
      %v591 = vshll.u32 %v265, 16
      %v593 = vrot.slane %v591, 5
      %v594 = vsel %vm412, %v589, %v593
      %v595 = vshrl.u32 %v265, 16
      %v597 = vrot.slane %v595, 4
      %v598 = vor.u32 %v597, %v593
      %v599 = vrot.slane %v598, 4
      %v601 = vshll.u32 %v266, 16
      %v603 = vrot.slane %v601, 5
      %v604 = vsel %vm412, %v599, %v603
      %v606 = vshrl.u32 %v267, 16
      %v608 = vrot.slane %v606, 4
      %v609 = vshll.u32 %v267, 16
      %v611 = vrot.slane %v609, 5
      %v612 = vor.u32 %v608, %v611
      %v613 = vrot.slane %v612, 4
      %v615 = vshll.u32 %v268, 16
      %v617 = vrot.slane %v615, 5
      %v618 = vsel %vm412, %v613, %v617
      %v619 = vshrl.u32 %v268, 16
      %v621 = vrot.slane %v619, 4
      %v622 = vor.u32 %v621, %v617
      %v623 = vrot.slane %v622, 4
      %v625 = vshll.u32 %v269, 16
      %v627 = vrot.slane %v625, 5
      %v628 = vsel %vm412, %v623, %v627
      %v630 = vshrl.u32 %v270, 16
      %v632 = vrot.slane %v630, 4
      %v633 = vshll.u32 %v270, 16
      %v635 = vrot.slane %v633, 5
      %v636 = vor.u32 %v632, %v635
      %v637 = vrot.slane %v636, 4
      %v639 = vshll.u32 %v271, 16
      %v641 = vrot.slane %v639, 5
      %v642 = vsel %vm412, %v637, %v641
      %v643 = vshrl.u32 %v271, 16
      %v645 = vrot.slane %v643, 4
      %v646 = vor.u32 %v645, %v641
      %v647 = vrot.slane %v646, 4
      %v649 = vshll.u32 %v272, 16
      %v651 = vrot.slane %v649, 5
      %v652 = vsel %vm412, %v647, %v651
      %v654 = vshrl.u32 %v273, 16
      %v656 = vrot.slane %v654, 4
      %v657 = vshll.u32 %v273, 16
      %v659 = vrot.slane %v657, 5
      %v660 = vor.u32 %v656, %v659
      %v661 = vrot.slane %v660, 4
      %v663 = vshll.u32 %v274, 16
      %v665 = vrot.slane %v663, 5
      %v666 = vsel %vm412, %v661, %v665
      %v667 = vshrl.u32 %v274, 16
      %v669 = vrot.slane %v667, 4
      %v670 = vor.u32 %v669, %v665
      %v671 = vrot.slane %v670, 4
      %v673 = vshll.u32 %v275, 16
      %v675 = vrot.slane %v673, 5
      %v676 = vsel %vm412, %v671, %v675
      %v678 = vshrl.u32 %v276, 16
      %v680 = vrot.slane %v678, 4
      %v681 = vshll.u32 %v276, 16
      %v683 = vrot.slane %v681, 5
      %v684 = vor.u32 %v680, %v683
      %v685 = vrot.slane %v684, 4
      %v687 = vshll.u32 %v277, 16
      %v689 = vrot.slane %v687, 5
      %v690 = vsel %vm412, %v685, %v689
      %v691 = vshrl.u32 %v277, 16
      %v693 = vrot.slane %v691, 4
      %v694 = vor.u32 %v693, %v689
      %v695 = vrot.slane %v694, 4
      %v697 = vshll.u32 %v278, 16
      %v699 = vrot.slane %v697, 5
      %v700 = vsel %vm412, %v695, %v699
      %v702 = vshrl.u32 %v279, 16
      %v704 = vrot.slane %v702, 4
      %v705 = vshll.u32 %v279, 16
      %v707 = vrot.slane %v705, 5
      %v708 = vor.u32 %v704, %v707
      %v709 = vrot.slane %v708, 4
      %v711 = vshll.u32 %v280, 16
      %v713 = vrot.slane %v711, 5
      %v714 = vsel %vm412, %v709, %v713
      %v715 = vshrl.u32 %v280, 16
      %v717 = vrot.slane %v715, 4
      %v718 = vor.u32 %v717, %v713
      %v719 = vrot.slane %v718, 4
      %v721 = vshll.u32 %v281, 16
      %v723 = vrot.slane %v721, 5
      %v724 = vsel %vm412, %v719, %v723
      %v726 = vshrl.u32 %v282, 16
      %v728 = vrot.slane %v726, 4
      %v729 = vshll.u32 %v282, 16
      %v731 = vrot.slane %v729, 5
      %v732 = vor.u32 %v728, %v731
      %v733 = vrot.slane %v732, 4
      %v735 = vshll.u32 %v283, 16
      %v737 = vrot.slane %v735, 5
      %v738 = vsel %vm412, %v733, %v737
      %v739 = vshrl.u32 %v283, 16
      %v741 = vrot.slane %v739, 4
      %v742 = vor.u32 %v741, %v737
      %v743 = vrot.slane %v742, 4
      %v745 = vshll.u32 %v284, 16
      %v747 = vrot.slane %v745, 5
      %v748 = vsel %vm412, %v743, %v747
      %v750 = vshrl.u32 %v285, 16
      %v752 = vrot.slane %v750, 4
      %v753 = vshll.u32 %v285, 16
      %v755 = vrot.slane %v753, 5
      %v756 = vor.u32 %v752, %v755
      %v757 = vrot.slane %v756, 4
      %v759 = vshll.u32 %v286, 16
      %v761 = vrot.slane %v759, 5
      %v762 = vsel %vm412, %v757, %v761
      %v763 = vshrl.u32 %v286, 16
      %v765 = vrot.slane %v763, 4
      %v766 = vor.u32 %v765, %v761
      %v767 = vrot.slane %v766, 4
      %v769 = vshll.u32 %v287, 16
      %v771 = vrot.slane %v769, 5
      %v772 = vsel %vm412, %v767, %v771
      %v774 = vshrl.u32 %v288, 16
      %v776 = vrot.slane %v774, 4
      %v777 = vshll.u32 %v288, 16
      %v779 = vrot.slane %v777, 5
      %v780 = vor.u32 %v776, %v779
      %v781 = vrot.slane %v780, 4
      %v783 = vshll.u32 %v289, 16
      %v785 = vrot.slane %v783, 5
      %v786 = vsel %vm412, %v781, %v785
      %v787 = vshrl.u32 %v289, 16
      %v789 = vrot.slane %v787, 4
      %v790 = vor.u32 %v789, %v785
      %v791 = vrot.slane %v790, 4
      %v793 = vshll.u32 %v290, 16
      %v795 = vrot.slane %v793, 5
      %v796 = vsel %vm412, %v791, %v795
      %v797 = vunpack.c.l.b16 %v426
      %v798 = vunpack.c.l.b16 %v436
      %v799 = vunpack.c.l.b16 %v450
      %v800 = vunpack.c.l.b16 %v460
      %v801 = vunpack.c.l.b16 %v474
      %v802 = vunpack.c.l.b16 %v484
      %v803 = vunpack.c.l.b16 %v498
      %v804 = vunpack.c.l.b16 %v508
      %v805 = vunpack.c.l.b16 %v522
      %v806 = vunpack.c.l.b16 %v532
      %v807 = vunpack.c.l.b16 %v546
      %v808 = vunpack.c.l.b16 %v556
      %v809 = vunpack.c.l.b16 %v570
      %v810 = vunpack.c.l.b16 %v580
      %v811 = vunpack.c.l.b16 %v594
      %v812 = vunpack.c.l.b16 %v604
      %v813 = vunpack.c.l.b16 %v618
      %v814 = vunpack.c.l.b16 %v628
      %v815 = vunpack.c.l.b16 %v642
      %v816 = vunpack.c.l.b16 %v652
      %v817 = vunpack.c.l.b16 %v666
      %v818 = vunpack.c.l.b16 %v676
      %v819 = vunpack.c.l.b16 %v690
      %v820 = vunpack.c.l.b16 %v700
      %v821 = vunpack.c.l.b16 %v714
      %v822 = vunpack.c.l.b16 %v724
      %v823 = vunpack.c.l.b16 %v738
      %v824 = vunpack.c.l.b16 %v748
      %v825 = vunpack.c.l.b16 %v762
      %v826 = vunpack.c.l.b16 %v772
      %v827 = vunpack.c.l.b16 %v786
      %v828 = vunpack.c.l.b16 %v796
      %v829 = vpack.c.b16 %v798, %v797
      %v830 = vpack.c.b16 %v800, %v799
      %v831 = vpack.c.b16 %v802, %v801
      %v832 = vpack.c.b16 %v804, %v803
      %v833 = vpack.c.b16 %v806, %v805
      %v834 = vpack.c.b16 %v808, %v807
      %v835 = vpack.c.b16 %v810, %v809
      %v836 = vpack.c.b16 %v812, %v811
      %v837 = vpack.c.b16 %v814, %v813
      %v838 = vpack.c.b16 %v816, %v815
      %v839 = vpack.c.b16 %v818, %v817
      %v840 = vpack.c.b16 %v820, %v819
      %v841 = vpack.c.b16 %v822, %v821
      %v842 = vpack.c.b16 %v824, %v823
      %v843 = vpack.c.b16 %v826, %v825
      %v844 = vpack.c.b16 %v828, %v827
      %845 = vrot.lane.b32.xlu0 %v829, 4
      %v846 = vpop.permute.xlu0 %845
      %847 = vrot.lane.b32.xlu0 %v830, 4
      %v848 = vpop.permute.xlu0 %847
      %849 = vrot.lane.b32.xlu0 %v831, 4
      %v850 = vpop.permute.xlu0 %849
      %851 = vrot.lane.b32.xlu0 %v832, 4
      %v852 = vpop.permute.xlu0 %851
      %853 = vrot.lane.b32.xlu0 %v833, 4
      %v854 = vpop.permute.xlu0 %853
      %855 = vrot.lane.b32.xlu0 %v834, 4
      %v856 = vpop.permute.xlu0 %855
      %857 = vrot.lane.b32.xlu0 %v835, 4
      %v858 = vpop.permute.xlu0 %857
      %859 = vrot.lane.b32.xlu0 %v836, 4
      %v860 = vpop.permute.xlu0 %859
      %861 = vrot.lane.b32.xlu0 %v837, 4
      %v862 = vpop.permute.xlu0 %861
      %863 = vrot.lane.b32.xlu0 %v838, 4
      %v864 = vpop.permute.xlu0 %863
      %865 = vrot.lane.b32.xlu0 %v839, 4
      %v866 = vpop.permute.xlu0 %865
      %867 = vrot.lane.b32.xlu0 %v840, 4
      %v868 = vpop.permute.xlu0 %867
      %869 = vrot.lane.b32.xlu0 %v841, 4
      %v870 = vpop.permute.xlu0 %869
      %871 = vrot.lane.b32.xlu0 %v842, 4
      %v872 = vpop.permute.xlu0 %871
      %873 = vrot.lane.b32.xlu0 %v843, 4
      %v874 = vpop.permute.xlu0 %873
      %875 = vrot.lane.b32.xlu0 %v844, 4
      %v876 = vpop.permute.xlu0 %875
      %vm893 = vcmask 64544
      %894 = vst.msk [vmem:[#allocation2] sm:$0xff] %vm893, %v846
      %895 = vst.msk [vmem:[#allocation2 + $0x8] sm:$0xff] %vm893, %v848
      %896 = vst.msk [vmem:[#allocation2 + $0x10] sm:$0xff] %vm893, %v850
      %897 = vst.msk [vmem:[#allocation2 + $0x18] sm:$0xff] %vm893, %v852
      %898 = vst.msk [vmem:[#allocation2 + $0x20] sm:$0xff] %vm893, %v854
      %899 = vst.msk [vmem:[#allocation2 + $0x28] sm:$0xff] %vm893, %v856
      %900 = vst.msk [vmem:[#allocation2 + $0x30] sm:$0xff] %vm893, %v858
      %901 = vst.msk [vmem:[#allocation2 + $0x38] sm:$0xff] %vm893, %v860
      %902 = vst.msk [vmem:[#allocation2 + $0x40] sm:$0xff] %vm893, %v862
      %903 = vst.msk [vmem:[#allocation2 + $0x48] sm:$0xff] %vm893, %v864
      %904 = vst.msk [vmem:[#allocation2 + $0x50] sm:$0xff] %vm893, %v866
      %905 = vst.msk [vmem:[#allocation2 + $0x58] sm:$0xff] %vm893, %v868
      %906 = vst.msk [vmem:[#allocation2 + $0x60] sm:$0xff] %vm893, %v870
      %907 = vst.msk [vmem:[#allocation2 + $0x68] sm:$0xff] %vm893, %v872
      %908 = vst.msk [vmem:[#allocation2 + $0x70] sm:$0xff] %vm893, %v874
      %909 = vst.msk [vmem:[#allocation2 + $0x78] sm:$0xff] %vm893, %v876
      %vm926 = vcmask 1042432
      %vm927 = vcmask 1046532
      %vm928 = vmor %vm926, %vm927
      %v929 = vrot.slane %v243, 5
      %v930 = vrot.slane %v929, 4
      %v931 = vrot.slane %v244, 5
      %v932 = vsel %vm928, %v930, %v931
      %v933 = vrot.slane %v931, 4
      %v934 = vrot.slane %v245, 5
      %v935 = vsel %vm928, %v933, %v934
      %v936 = vrot.slane %v246, 5
      %v937 = vrot.slane %v936, 4
      %v938 = vrot.slane %v247, 5
      %v939 = vsel %vm928, %v937, %v938
      %v940 = vrot.slane %v938, 4
      %v941 = vrot.slane %v248, 5
      %v942 = vsel %vm928, %v940, %v941
      %v943 = vrot.slane %v249, 5
      %v944 = vrot.slane %v943, 4
      %v945 = vrot.slane %v250, 5
      %v946 = vsel %vm928, %v944, %v945
      %v947 = vrot.slane %v945, 4
      %v948 = vrot.slane %v251, 5
      %v949 = vsel %vm928, %v947, %v948
      %v950 = vrot.slane %v252, 5
      %v951 = vrot.slane %v950, 4
      %v952 = vrot.slane %v253, 5
      %v953 = vsel %vm928, %v951, %v952
      %v954 = vrot.slane %v952, 4
      %v955 = vrot.slane %v254, 5
      %v956 = vsel %vm928, %v954, %v955
      %v957 = vrot.slane %v255, 5
      %v958 = vrot.slane %v957, 4
      %v959 = vrot.slane %v256, 5
      %v960 = vsel %vm928, %v958, %v959
      %v961 = vrot.slane %v959, 4
      %v962 = vrot.slane %v257, 5
      %v963 = vsel %vm928, %v961, %v962
      %v964 = vrot.slane %v258, 5
      %v965 = vrot.slane %v964, 4
      %v966 = vrot.slane %v259, 5
      %v967 = vsel %vm928, %v965, %v966
      %v968 = vrot.slane %v966, 4
      %v969 = vrot.slane %v260, 5
      %v970 = vsel %vm928, %v968, %v969
      %v971 = vrot.slane %v261, 5
      %v972 = vrot.slane %v971, 4
      %v973 = vrot.slane %v262, 5
      %v974 = vsel %vm928, %v972, %v973
      %v975 = vrot.slane %v973, 4
      %v976 = vrot.slane %v263, 5
      %v977 = vsel %vm928, %v975, %v976
      %v978 = vrot.slane %v264, 5
      %v979 = vrot.slane %v978, 4
      %v980 = vrot.slane %v265, 5
      %v981 = vsel %vm928, %v979, %v980
      %v982 = vrot.slane %v980, 4
      %v983 = vrot.slane %v266, 5
      %v984 = vsel %vm928, %v982, %v983
      %v985 = vrot.slane %v267, 5
      %v986 = vrot.slane %v985, 4
      %v987 = vrot.slane %v268, 5
      %v988 = vsel %vm928, %v986, %v987
      %v989 = vrot.slane %v987, 4
      %v990 = vrot.slane %v269, 5
      %v991 = vsel %vm928, %v989, %v990
      %v992 = vrot.slane %v270, 5
      %v993 = vrot.slane %v992, 4
      %v994 = vrot.slane %v271, 5
      %v995 = vsel %vm928, %v993, %v994
      %v996 = vrot.slane %v994, 4
      %v997 = vrot.slane %v272, 5
      %v998 = vsel %vm928, %v996, %v997
      %v999 = vrot.slane %v273, 5
      %v1000 = vrot.slane %v999, 4
      %v1001 = vrot.slane %v274, 5
      %v1002 = vsel %vm928, %v1000, %v1001
      %v1003 = vrot.slane %v1001, 4
      %v1004 = vrot.slane %v275, 5
      %v1005 = vsel %vm928, %v1003, %v1004
      %v1006 = vrot.slane %v276, 5
      %v1007 = vrot.slane %v1006, 4
      %v1008 = vrot.slane %v277, 5
      %v1009 = vsel %vm928, %v1007, %v1008
      %v1010 = vrot.slane %v1008, 4
      %v1011 = vrot.slane %v278, 5
      %v1012 = vsel %vm928, %v1010, %v1011
      %v1013 = vrot.slane %v279, 5
      %v1014 = vrot.slane %v1013, 4
      %v1015 = vrot.slane %v280, 5
      %v1016 = vsel %vm928, %v1014, %v1015
      %v1017 = vrot.slane %v1015, 4
      %v1018 = vrot.slane %v281, 5
      %v1019 = vsel %vm928, %v1017, %v1018
      %v1020 = vrot.slane %v282, 5
      %v1021 = vrot.slane %v1020, 4
      %v1022 = vrot.slane %v283, 5
      %v1023 = vsel %vm928, %v1021, %v1022
      %v1024 = vrot.slane %v1022, 4
      %v1025 = vrot.slane %v284, 5
      %v1026 = vsel %vm928, %v1024, %v1025
      %v1027 = vrot.slane %v285, 5
      %v1028 = vrot.slane %v1027, 4
      %v1029 = vrot.slane %v286, 5
      %v1030 = vsel %vm928, %v1028, %v1029
      %v1031 = vrot.slane %v1029, 4
      %v1032 = vrot.slane %v287, 5
      %v1033 = vsel %vm928, %v1031, %v1032
      %v1034 = vrot.slane %v288, 5
      %v1035 = vrot.slane %v1034, 4
      %v1036 = vrot.slane %v289, 5
      %v1037 = vsel %vm928, %v1035, %v1036
      %v1038 = vrot.slane %v1036, 4
      %v1039 = vrot.slane %v290, 5
      %v1040 = vsel %vm928, %v1038, %v1039
      %v1041 = vunpack.c.l.b16 %v932
      %v1042 = vunpack.c.l.b16 %v935
      %v1043 = vunpack.c.l.b16 %v939
      %v1044 = vunpack.c.l.b16 %v942
      %v1045 = vunpack.c.l.b16 %v946
      %v1046 = vunpack.c.l.b16 %v949
      %v1047 = vunpack.c.l.b16 %v953
      %v1048 = vunpack.c.l.b16 %v956
      %v1049 = vunpack.c.l.b16 %v960
      %v1050 = vunpack.c.l.b16 %v963
      %v1051 = vunpack.c.l.b16 %v967
      %v1052 = vunpack.c.l.b16 %v970
      %v1053 = vunpack.c.l.b16 %v974
      %v1054 = vunpack.c.l.b16 %v977
      %v1055 = vunpack.c.l.b16 %v981
      %v1056 = vunpack.c.l.b16 %v984
      %v1057 = vunpack.c.l.b16 %v988
      %v1058 = vunpack.c.l.b16 %v991
      %v1059 = vunpack.c.l.b16 %v995
      %v1060 = vunpack.c.l.b16 %v998
      %v1061 = vunpack.c.l.b16 %v1002
      %v1062 = vunpack.c.l.b16 %v1005
      %v1063 = vunpack.c.l.b16 %v1009
      %v1064 = vunpack.c.l.b16 %v1012
      %v1065 = vunpack.c.l.b16 %v1016
      %v1066 = vunpack.c.l.b16 %v1019
      %v1067 = vunpack.c.l.b16 %v1023
      %v1068 = vunpack.c.l.b16 %v1026
      %v1069 = vunpack.c.l.b16 %v1030
      %v1070 = vunpack.c.l.b16 %v1033
      %v1071 = vunpack.c.l.b16 %v1037
      %v1072 = vunpack.c.l.b16 %v1040
      %v1073 = vpack.c.b16 %v1042, %v1041
      %v1074 = vpack.c.b16 %v1044, %v1043
      %v1075 = vpack.c.b16 %v1046, %v1045
      %v1076 = vpack.c.b16 %v1048, %v1047
      %v1077 = vpack.c.b16 %v1050, %v1049
      %v1078 = vpack.c.b16 %v1052, %v1051
      %v1079 = vpack.c.b16 %v1054, %v1053
      %v1080 = vpack.c.b16 %v1056, %v1055
      %v1081 = vpack.c.b16 %v1058, %v1057
      %v1082 = vpack.c.b16 %v1060, %v1059
      %v1083 = vpack.c.b16 %v1062, %v1061
      %v1084 = vpack.c.b16 %v1064, %v1063
      %v1085 = vpack.c.b16 %v1066, %v1065
      %v1086 = vpack.c.b16 %v1068, %v1067
      %v1087 = vpack.c.b16 %v1070, %v1069
      %v1088 = vpack.c.b16 %v1072, %v1071
      %1089 = vrot.lane.b32.xlu0 %v1073, 8
      %v1090 = vpop.permute.xlu0 %1089
      %1091 = vrot.lane.b32.xlu0 %v1074, 8
      %v1092 = vpop.permute.xlu0 %1091
      %1093 = vrot.lane.b32.xlu0 %v1075, 8
      %v1094 = vpop.permute.xlu0 %1093
      %1095 = vrot.lane.b32.xlu0 %v1076, 8
      %v1096 = vpop.permute.xlu0 %1095
      %1097 = vrot.lane.b32.xlu0 %v1077, 8
      %v1098 = vpop.permute.xlu0 %1097
      %1099 = vrot.lane.b32.xlu0 %v1078, 8
      %v1100 = vpop.permute.xlu0 %1099
      %1101 = vrot.lane.b32.xlu0 %v1079, 8
      %v1102 = vpop.permute.xlu0 %1101
      %1103 = vrot.lane.b32.xlu0 %v1080, 8
      %v1104 = vpop.permute.xlu0 %1103
      %1105 = vrot.lane.b32.xlu0 %v1081, 8
      %v1106 = vpop.permute.xlu0 %1105
      %1107 = vrot.lane.b32.xlu0 %v1082, 8
      %v1108 = vpop.permute.xlu0 %1107
      %1109 = vrot.lane.b32.xlu0 %v1083, 8
      %v1110 = vpop.permute.xlu0 %1109
      %1111 = vrot.lane.b32.xlu0 %v1084, 8
      %v1112 = vpop.permute.xlu0 %1111
      %1113 = vrot.lane.b32.xlu0 %v1085, 8
      %v1114 = vpop.permute.xlu0 %1113
      %1115 = vrot.lane.b32.xlu0 %v1086, 8
      %v1116 = vpop.permute.xlu0 %1115
      %1117 = vrot.lane.b32.xlu0 %v1087, 8
      %v1118 = vpop.permute.xlu0 %1117
      %1119 = vrot.lane.b32.xlu0 %v1088, 8
      %v1120 = vpop.permute.xlu0 %1119
      %vm1137 = vcmask 97344
      %1138 = vst.msk [vmem:[#allocation2] sm:$0xff] %vm1137, %v1090
      %1139 = vst.msk [vmem:[#allocation2 + $0x8] sm:$0xff] %vm1137, %v1092
      %1140 = vst.msk [vmem:[#allocation2 + $0x10] sm:$0xff] %vm1137, %v1094
      %1141 = vst.msk [vmem:[#allocation2 + $0x18] sm:$0xff] %vm1137, %v1096
      %1142 = vst.msk [vmem:[#allocation2 + $0x20] sm:$0xff] %vm1137, %v1098
      %1143 = vst.msk [vmem:[#allocation2 + $0x28] sm:$0xff] %vm1137, %v1100
      %1144 = vst.msk [vmem:[#allocation2 + $0x30] sm:$0xff] %vm1137, %v1102
      %1145 = vst.msk [vmem:[#allocation2 + $0x38] sm:$0xff] %vm1137, %v1104
      %1146 = vst.msk [vmem:[#allocation2 + $0x40] sm:$0xff] %vm1137, %v1106
      %1147 = vst.msk [vmem:[#allocation2 + $0x48] sm:$0xff] %vm1137, %v1108
      %1148 = vst.msk [vmem:[#allocation2 + $0x50] sm:$0xff] %vm1137, %v1110
      %1149 = vst.msk [vmem:[#allocation2 + $0x58] sm:$0xff] %vm1137, %v1112
      %1150 = vst.msk [vmem:[#allocation2 + $0x60] sm:$0xff] %vm1137, %v1114
      %1151 = vst.msk [vmem:[#allocation2 + $0x68] sm:$0xff] %vm1137, %v1116
      %1152 = vst.msk [vmem:[#allocation2 + $0x70] sm:$0xff] %vm1137, %v1118
      %1153 = vst.msk [vmem:[#allocation2 + $0x78] sm:$0xff] %vm1137, %v1120
      %v1156 = vunpack.c.l.b16 %v291
      %v1157 = vunpack.c.l.b16 %v292
      %v1158 = vpack.c.b16 %v1157, %v1156
      %1159 = vrot.lane.b32.xlu0 %v362, 12
      %v1160 = vpop.permute.xlu0 %1159
      %1161 = vrot.lane.b32.xlu0 %v363, 12
      %v1162 = vpop.permute.xlu0 %1161
      %1163 = vrot.lane.b32.xlu0 %v364, 12
      %v1164 = vpop.permute.xlu0 %1163
      %1165 = vrot.lane.b32.xlu0 %v365, 12
      %v1166 = vpop.permute.xlu0 %1165
      %1167 = vrot.lane.b32.xlu0 %v366, 12
      %v1168 = vpop.permute.xlu0 %1167
      %1169 = vrot.lane.b32.xlu0 %v367, 12
      %v1170 = vpop.permute.xlu0 %1169
      %1171 = vrot.lane.b32.xlu0 %v368, 12
      %v1172 = vpop.permute.xlu0 %1171
      %1173 = vrot.lane.b32.xlu0 %v369, 12
      %v1174 = vpop.permute.xlu0 %1173
      %1175 = vrot.lane.b32.xlu0 %v370, 12
      %v1176 = vpop.permute.xlu0 %1175
      %1177 = vrot.lane.b32.xlu0 %v371, 12
      %v1178 = vpop.permute.xlu0 %1177
      %1179 = vrot.lane.b32.xlu0 %v372, 12
      %v1180 = vpop.permute.xlu0 %1179
      %1181 = vrot.lane.b32.xlu0 %v373, 12
      %v1182 = vpop.permute.xlu0 %1181
      %1183 = vrot.lane.b32.xlu0 %v374, 12
      %v1184 = vpop.permute.xlu0 %1183
      %1185 = vrot.lane.b32.xlu0 %v375, 12
      %v1186 = vpop.permute.xlu0 %1185
      %1187 = vrot.lane.b32.xlu0 %v376, 12
      %v1188 = vpop.permute.xlu0 %1187
      %1189 = vrot.lane.b32.xlu0 %v1158, 12
      %v1190 = vpop.permute.xlu0 %1189
      %vm1207 = vcmask 130144
      %1208 = vst.msk [vmem:[#allocation2] sm:$0xff] %vm1207, %v1160
      %1209 = vst.msk [vmem:[#allocation2 + $0x8] sm:$0xff] %vm1207, %v1162
      %1210 = vst.msk [vmem:[#allocation2 + $0x10] sm:$0xff] %vm1207, %v1164
      %1211 = vst.msk [vmem:[#allocation2 + $0x18] sm:$0xff] %vm1207, %v1166
      %1212 = vst.msk [vmem:[#allocation2 + $0x20] sm:$0xff] %vm1207, %v1168
      %1213 = vst.msk [vmem:[#allocation2 + $0x28] sm:$0xff] %vm1207, %v1170
      %1214 = vst.msk [vmem:[#allocation2 + $0x30] sm:$0xff] %vm1207, %v1172
      %1215 = vst.msk [vmem:[#allocation2 + $0x38] sm:$0xff] %vm1207, %v1174
      %1216 = vst.msk [vmem:[#allocation2 + $0x40] sm:$0xff] %vm1207, %v1176
      %1217 = vst.msk [vmem:[#allocation2 + $0x48] sm:$0xff] %vm1207, %v1178
      %1218 = vst.msk [vmem:[#allocation2 + $0x50] sm:$0xff] %vm1207, %v1180
      %1219 = vst.msk [vmem:[#allocation2 + $0x58] sm:$0xff] %vm1207, %v1182
      %1220 = vst.msk [vmem:[#allocation2 + $0x60] sm:$0xff] %vm1207, %v1184
      %1221 = vst.msk [vmem:[#allocation2 + $0x68] sm:$0xff] %vm1207, %v1186
      %1222 = vst.msk [vmem:[#allocation2 + $0x70] sm:$0xff] %vm1207, %v1188
      %1223 = vst.msk [vmem:[#allocation2 + $0x78] sm:$0xff] %vm1207, %v1190
      %v1225 = vshrl.u32 %v291, 16
      %v1227 = vrot.slane %v1225, 4
      %v1228 = vshll.u32 %v291, 16
      %v1230 = vrot.slane %v1228, 5
      %v1231 = vor.u32 %v1227, %v1230
      %v1232 = vrot.slane %v1231, 4
      %v1234 = vshll.u32 %v292, 16
      %v1236 = vrot.slane %v1234, 5
      %v1237 = vsel %vm412, %v1232, %v1236
      %v1238 = vshrl.u32 %v292, 16
      %v1240 = vrot.slane %v1238, 4
      %v1241 = vor.u32 %v1240, %v1236
      %v1242 = vrot.slane %v1241, 4
      %v1244 = vshll.u32 %v293, 16
      %v1246 = vrot.slane %v1244, 5
      %v1247 = vsel %vm412, %v1242, %v1246
      %v1248 = vunpack.c.l.b16 %v1237
      %v1249 = vunpack.c.l.b16 %v1247
      %v1250 = vpack.c.b16 %v1249, %v1248
      %1251 = vrot.lane.b32.xlu0 %v830, 16
      %v1252 = vpop.permute.xlu0 %1251
      %1253 = vrot.lane.b32.xlu0 %v831, 16
      %v1254 = vpop.permute.xlu0 %1253
      %1255 = vrot.lane.b32.xlu0 %v832, 16
      %v1256 = vpop.permute.xlu0 %1255
      %1257 = vrot.lane.b32.xlu0 %v833, 16
      %v1258 = vpop.permute.xlu0 %1257
      %1259 = vrot.lane.b32.xlu0 %v834, 16
      %v1260 = vpop.permute.xlu0 %1259
      %1261 = vrot.lane.b32.xlu0 %v835, 16
      %v1262 = vpop.permute.xlu0 %1261
      %1263 = vrot.lane.b32.xlu0 %v836, 16
      %v1264 = vpop.permute.xlu0 %1263
      %1265 = vrot.lane.b32.xlu0 %v837, 16
      %v1266 = vpop.permute.xlu0 %1265
      %1267 = vrot.lane.b32.xlu0 %v838, 16
      %v1268 = vpop.permute.xlu0 %1267
      %1269 = vrot.lane.b32.xlu0 %v839, 16
      %v1270 = vpop.permute.xlu0 %1269
      %1271 = vrot.lane.b32.xlu0 %v840, 16
      %v1272 = vpop.permute.xlu0 %1271
      %1273 = vrot.lane.b32.xlu0 %v841, 16
      %v1274 = vpop.permute.xlu0 %1273
      %1275 = vrot.lane.b32.xlu0 %v842, 16
      %v1276 = vpop.permute.xlu0 %1275
      %1277 = vrot.lane.b32.xlu0 %v843, 16
      %v1278 = vpop.permute.xlu0 %1277
      %1279 = vrot.lane.b32.xlu0 %v844, 16
      %v1280 = vpop.permute.xlu0 %1279
      %1281 = vrot.lane.b32.xlu0 %v1250, 16
      %v1282 = vpop.permute.xlu0 %1281
      %vm1299 = vcmask 162944
      %1300 = vst.msk [vmem:[#allocation2] sm:$0xff] %vm1299, %v1252
      %1301 = vst.msk [vmem:[#allocation2 + $0x8] sm:$0xff] %vm1299, %v1254
      %1302 = vst.msk [vmem:[#allocation2 + $0x10] sm:$0xff] %vm1299, %v1256
      %1303 = vst.msk [vmem:[#allocation2 + $0x18] sm:$0xff] %vm1299, %v1258
      %1304 = vst.msk [vmem:[#allocation2 + $0x20] sm:$0xff] %vm1299, %v1260
      %1305 = vst.msk [vmem:[#allocation2 + $0x28] sm:$0xff] %vm1299, %v1262
      %1306 = vst.msk [vmem:[#allocation2 + $0x30] sm:$0xff] %vm1299, %v1264
      %1307 = vst.msk [vmem:[#allocation2 + $0x38] sm:$0xff] %vm1299, %v1266
      %1308 = vst.msk [vmem:[#allocation2 + $0x40] sm:$0xff] %vm1299, %v1268
      %1309 = vst.msk [vmem:[#allocation2 + $0x48] sm:$0xff] %vm1299, %v1270
      %1310 = vst.msk [vmem:[#allocation2 + $0x50] sm:$0xff] %vm1299, %v1272
      %1311 = vst.msk [vmem:[#allocation2 + $0x58] sm:$0xff] %vm1299, %v1274
      %1312 = vst.msk [vmem:[#allocation2 + $0x60] sm:$0xff] %vm1299, %v1276
      %1313 = vst.msk [vmem:[#allocation2 + $0x68] sm:$0xff] %vm1299, %v1278
      %1314 = vst.msk [vmem:[#allocation2 + $0x70] sm:$0xff] %vm1299, %v1280
      %1315 = vst.msk [vmem:[#allocation2 + $0x78] sm:$0xff] %vm1299, %v1282
      %v1317 = vrot.slane %v291, 5
      %v1318 = vrot.slane %v1317, 4
      %v1319 = vrot.slane %v292, 5
      %v1320 = vsel %vm928, %v1318, %v1319
      %v1321 = vrot.slane %v1319, 4
      %v1322 = vrot.slane %v293, 5
      %v1323 = vsel %vm928, %v1321, %v1322
      %v1324 = vunpack.c.l.b16 %v1320
      %v1325 = vunpack.c.l.b16 %v1323
      %v1326 = vpack.c.b16 %v1325, %v1324
      %1327 = vrot.lane.b32.xlu0 %v1074, 20
      %v1328 = vpop.permute.xlu0 %1327
      %1329 = vrot.lane.b32.xlu0 %v1075, 20
      %v1330 = vpop.permute.xlu0 %1329
      %1331 = vrot.lane.b32.xlu0 %v1076, 20
      %v1332 = vpop.permute.xlu0 %1331
      %1333 = vrot.lane.b32.xlu0 %v1077, 20
      %v1334 = vpop.permute.xlu0 %1333
      %1335 = vrot.lane.b32.xlu0 %v1078, 20
      %v1336 = vpop.permute.xlu0 %1335
      %1337 = vrot.lane.b32.xlu0 %v1079, 20
      %v1338 = vpop.permute.xlu0 %1337
      %1339 = vrot.lane.b32.xlu0 %v1080, 20
      %v1340 = vpop.permute.xlu0 %1339
      %1341 = vrot.lane.b32.xlu0 %v1081, 20
      %v1342 = vpop.permute.xlu0 %1341
      %1343 = vrot.lane.b32.xlu0 %v1082, 20
      %v1344 = vpop.permute.xlu0 %1343
      %1345 = vrot.lane.b32.xlu0 %v1083, 20
      %v1346 = vpop.permute.xlu0 %1345
      %1347 = vrot.lane.b32.xlu0 %v1084, 20
      %v1348 = vpop.permute.xlu0 %1347
      %1349 = vrot.lane.b32.xlu0 %v1085, 20
      %v1350 = vpop.permute.xlu0 %1349
      %1351 = vrot.lane.b32.xlu0 %v1086, 20
      %v1352 = vpop.permute.xlu0 %1351
      %1353 = vrot.lane.b32.xlu0 %v1087, 20
      %v1354 = vpop.permute.xlu0 %1353
      %1355 = vrot.lane.b32.xlu0 %v1088, 20
      %v1356 = vpop.permute.xlu0 %1355
      %1357 = vrot.lane.b32.xlu0 %v1326, 20
      %v1358 = vpop.permute.xlu0 %1357
      %vm1375 = vcmask 195744
      %1376 = vst.msk [vmem:[#allocation2] sm:$0xff] %vm1375, %v1328
      %1377 = vst.msk [vmem:[#allocation2 + $0x8] sm:$0xff] %vm1375, %v1330
      %1378 = vst.msk [vmem:[#allocation2 + $0x10] sm:$0xff] %vm1375, %v1332
      %1379 = vst.msk [vmem:[#allocation2 + $0x18] sm:$0xff] %vm1375, %v1334
      %1380 = vst.msk [vmem:[#allocation2 + $0x20] sm:$0xff] %vm1375, %v1336
      %1381 = vst.msk [vmem:[#allocation2 + $0x28] sm:$0xff] %vm1375, %v1338
      %1382 = vst.msk [vmem:[#allocation2 + $0x30] sm:$0xff] %vm1375, %v1340
      %1383 = vst.msk [vmem:[#allocation2 + $0x38] sm:$0xff] %vm1375, %v1342
      %1384 = vst.msk [vmem:[#allocation2 + $0x40] sm:$0xff] %vm1375, %v1344
      %1385 = vst.msk [vmem:[#allocation2 + $0x48] sm:$0xff] %vm1375, %v1346
      %1386 = vst.msk [vmem:[#allocation2 + $0x50] sm:$0xff] %vm1375, %v1348
      %1387 = vst.msk [vmem:[#allocation2 + $0x58] sm:$0xff] %vm1375, %v1350
      %1388 = vst.msk [vmem:[#allocation2 + $0x60] sm:$0xff] %vm1375, %v1352
      %1389 = vst.msk [vmem:[#allocation2 + $0x68] sm:$0xff] %vm1375, %v1354
      %1390 = vst.msk [vmem:[#allocation2 + $0x70] sm:$0xff] %vm1375, %v1356
      %1391 = vst.msk [vmem:[#allocation2 + $0x78] sm:$0xff] %vm1375, %v1358
      %v1394 = vunpack.c.l.b16 %v294
      %v1395 = vunpack.c.l.b16 %v295
      %v1396 = vpack.c.b16 %v1395, %v1394
      %1397 = vrot.lane.b32.xlu0 %v363, 24
      %v1398 = vpop.permute.xlu0 %1397
      %1399 = vrot.lane.b32.xlu0 %v364, 24
      %v1400 = vpop.permute.xlu0 %1399
      %1401 = vrot.lane.b32.xlu0 %v365, 24
      %v1402 = vpop.permute.xlu0 %1401
      %1403 = vrot.lane.b32.xlu0 %v366, 24
      %v1404 = vpop.permute.xlu0 %1403
      %1405 = vrot.lane.b32.xlu0 %v367, 24
      %v1406 = vpop.permute.xlu0 %1405
      %1407 = vrot.lane.b32.xlu0 %v368, 24
      %v1408 = vpop.permute.xlu0 %1407
      %1409 = vrot.lane.b32.xlu0 %v369, 24
      %v1410 = vpop.permute.xlu0 %1409
      %1411 = vrot.lane.b32.xlu0 %v370, 24
      %v1412 = vpop.permute.xlu0 %1411
      %1413 = vrot.lane.b32.xlu0 %v371, 24
      %v1414 = vpop.permute.xlu0 %1413
      %1415 = vrot.lane.b32.xlu0 %v372, 24
      %v1416 = vpop.permute.xlu0 %1415
      %1417 = vrot.lane.b32.xlu0 %v373, 24
      %v1418 = vpop.permute.xlu0 %1417
      %1419 = vrot.lane.b32.xlu0 %v374, 24
      %v1420 = vpop.permute.xlu0 %1419
      %1421 = vrot.lane.b32.xlu0 %v375, 24
      %v1422 = vpop.permute.xlu0 %1421
      %1423 = vrot.lane.b32.xlu0 %v376, 24
      %v1424 = vpop.permute.xlu0 %1423
      %1425 = vrot.lane.b32.xlu0 %v1158, 24
      %v1426 = vpop.permute.xlu0 %1425
      %1427 = vrot.lane.b32.xlu0 %v1396, 24
      %v1428 = vpop.permute.xlu0 %1427
      %vm1445 = vcmask 228544
      %1446 = vst.msk [vmem:[#allocation2] sm:$0xff] %vm1445, %v1398
      %1447 = vst.msk [vmem:[#allocation2 + $0x8] sm:$0xff] %vm1445, %v1400
      %1448 = vst.msk [vmem:[#allocation2 + $0x10] sm:$0xff] %vm1445, %v1402
      %1449 = vst.msk [vmem:[#allocation2 + $0x18] sm:$0xff] %vm1445, %v1404
      %1450 = vst.msk [vmem:[#allocation2 + $0x20] sm:$0xff] %vm1445, %v1406
      %1451 = vst.msk [vmem:[#allocation2 + $0x28] sm:$0xff] %vm1445, %v1408
      %1452 = vst.msk [vmem:[#allocation2 + $0x30] sm:$0xff] %vm1445, %v1410
      %1453 = vst.msk [vmem:[#allocation2 + $0x38] sm:$0xff] %vm1445, %v1412
      %1454 = vst.msk [vmem:[#allocation2 + $0x40] sm:$0xff] %vm1445, %v1414
      %1455 = vst.msk [vmem:[#allocation2 + $0x48] sm:$0xff] %vm1445, %v1416
      %1456 = vst.msk [vmem:[#allocation2 + $0x50] sm:$0xff] %vm1445, %v1418
      %1457 = vst.msk [vmem:[#allocation2 + $0x58] sm:$0xff] %vm1445, %v1420
      %1458 = vst.msk [vmem:[#allocation2 + $0x60] sm:$0xff] %vm1445, %v1422
      %1459 = vst.msk [vmem:[#allocation2 + $0x68] sm:$0xff] %vm1445, %v1424
      %1460 = vst.msk [vmem:[#allocation2 + $0x70] sm:$0xff] %vm1445, %v1426
      %1461 = vst.msk [vmem:[#allocation2 + $0x78] sm:$0xff] %vm1445, %v1428
      %v1463 = vshrl.u32 %v294, 16
      %v1465 = vrot.slane %v1463, 4
      %v1466 = vshll.u32 %v294, 16
      %v1468 = vrot.slane %v1466, 5
      %v1469 = vor.u32 %v1465, %v1468
      %v1470 = vrot.slane %v1469, 4
      %v1472 = vshll.u32 %v295, 16
      %v1474 = vrot.slane %v1472, 5
      %v1475 = vsel %vm412, %v1470, %v1474
      %v1476 = vshrl.u32 %v295, 16
      %v1478 = vrot.slane %v1476, 4
      %v1479 = vor.u32 %v1478, %v1474
      %v1480 = vrot.slane %v1479, 4
      %v1482 = vshll.u32 %v296, 16
      %v1484 = vrot.slane %v1482, 5
      %v1485 = vsel %vm412, %v1480, %v1484
      %v1486 = vunpack.c.l.b16 %v1475
      %v1487 = vunpack.c.l.b16 %v1485
      %v1488 = vpack.c.b16 %v1487, %v1486
      %1489 = vrot.lane.b32.xlu0 %v831, 28
      %v1490 = vpop.permute.xlu0 %1489
      %1491 = vrot.lane.b32.xlu0 %v832, 28
      %v1492 = vpop.permute.xlu0 %1491
      %1493 = vrot.lane.b32.xlu0 %v833, 28
      %v1494 = vpop.permute.xlu0 %1493
      %1495 = vrot.lane.b32.xlu0 %v834, 28
      %v1496 = vpop.permute.xlu0 %1495
      %1497 = vrot.lane.b32.xlu0 %v835, 28
      %v1498 = vpop.permute.xlu0 %1497
      %1499 = vrot.lane.b32.xlu0 %v836, 28
      %v1500 = vpop.permute.xlu0 %1499
      %1501 = vrot.lane.b32.xlu0 %v837, 28
      %v1502 = vpop.permute.xlu0 %1501
      %1503 = vrot.lane.b32.xlu0 %v838, 28
      %v1504 = vpop.permute.xlu0 %1503
      %1505 = vrot.lane.b32.xlu0 %v839, 28
      %v1506 = vpop.permute.xlu0 %1505
      %1507 = vrot.lane.b32.xlu0 %v840, 28
      %v1508 = vpop.permute.xlu0 %1507
      %1509 = vrot.lane.b32.xlu0 %v841, 28
      %v1510 = vpop.permute.xlu0 %1509
      %1511 = vrot.lane.b32.xlu0 %v842, 28
      %v1512 = vpop.permute.xlu0 %1511
      %1513 = vrot.lane.b32.xlu0 %v843, 28
      %v1514 = vpop.permute.xlu0 %1513
      %1515 = vrot.lane.b32.xlu0 %v844, 28
      %v1516 = vpop.permute.xlu0 %1515
      %1517 = vrot.lane.b32.xlu0 %v1250, 28
      %v1518 = vpop.permute.xlu0 %1517
      %1519 = vrot.lane.b32.xlu0 %v1488, 28
      %v1520 = vpop.permute.xlu0 %1519
      %vm1537 = vcmask 261344
      %1538 = vst.msk [vmem:[#allocation2] sm:$0xff] %vm1537, %v1490
      %1539 = vst.msk [vmem:[#allocation2 + $0x8] sm:$0xff] %vm1537, %v1492
      %1540 = vst.msk [vmem:[#allocation2 + $0x10] sm:$0xff] %vm1537, %v1494
      %1541 = vst.msk [vmem:[#allocation2 + $0x18] sm:$0xff] %vm1537, %v1496
      %1542 = vst.msk [vmem:[#allocation2 + $0x20] sm:$0xff] %vm1537, %v1498
      %1543 = vst.msk [vmem:[#allocation2 + $0x28] sm:$0xff] %vm1537, %v1500
      %1544 = vst.msk [vmem:[#allocation2 + $0x30] sm:$0xff] %vm1537, %v1502
      %1545 = vst.msk [vmem:[#allocation2 + $0x38] sm:$0xff] %vm1537, %v1504
      %1546 = vst.msk [vmem:[#allocation2 + $0x40] sm:$0xff] %vm1537, %v1506
      %1547 = vst.msk [vmem:[#allocation2 + $0x48] sm:$0xff] %vm1537, %v1508
      %1548 = vst.msk [vmem:[#allocation2 + $0x50] sm:$0xff] %vm1537, %v1510
      %1549 = vst.msk [vmem:[#allocation2 + $0x58] sm:$0xff] %vm1537, %v1512
      %1550 = vst.msk [vmem:[#allocation2 + $0x60] sm:$0xff] %vm1537, %v1514
      %1551 = vst.msk [vmem:[#allocation2 + $0x68] sm:$0xff] %vm1537, %v1516
      %1552 = vst.msk [vmem:[#allocation2 + $0x70] sm:$0xff] %vm1537, %v1518
      %1553 = vst.msk [vmem:[#allocation2 + $0x78] sm:$0xff] %vm1537, %v1520
      %v1555 = vrot.slane %v294, 5
      %v1556 = vrot.slane %v1555, 4
      %v1557 = vrot.slane %v295, 5
      %v1558 = vsel %vm928, %v1556, %v1557
      %v1559 = vrot.slane %v1557, 4
      %v1560 = vrot.slane %v296, 5
      %v1561 = vsel %vm928, %v1559, %v1560
      %v1562 = vunpack.c.l.b16 %v1558
      %v1563 = vunpack.c.l.b16 %v1561
      %v1564 = vpack.c.b16 %v1563, %v1562
      %1565 = vrot.lane.b32.xlu0 %v1075, 32
      %v1566 = vpop.permute.xlu0 %1565
      %1567 = vrot.lane.b32.xlu0 %v1076, 32
      %v1568 = vpop.permute.xlu0 %1567
      %1569 = vrot.lane.b32.xlu0 %v1077, 32
      %v1570 = vpop.permute.xlu0 %1569
      %1571 = vrot.lane.b32.xlu0 %v1078, 32
      %v1572 = vpop.permute.xlu0 %1571
      %1573 = vrot.lane.b32.xlu0 %v1079, 32
      %v1574 = vpop.permute.xlu0 %1573
      %1575 = vrot.lane.b32.xlu0 %v1080, 32
      %v1576 = vpop.permute.xlu0 %1575
      %1577 = vrot.lane.b32.xlu0 %v1081, 32
      %v1578 = vpop.permute.xlu0 %1577
      %1579 = vrot.lane.b32.xlu0 %v1082, 32
      %v1580 = vpop.permute.xlu0 %1579
      %1581 = vrot.lane.b32.xlu0 %v1083, 32
      %v1582 = vpop.permute.xlu0 %1581
      %1583 = vrot.lane.b32.xlu0 %v1084, 32
      %v1584 = vpop.permute.xlu0 %1583
      %1585 = vrot.lane.b32.xlu0 %v1085, 32
      %v1586 = vpop.permute.xlu0 %1585
      %1587 = vrot.lane.b32.xlu0 %v1086, 32
      %v1588 = vpop.permute.xlu0 %1587
      %1589 = vrot.lane.b32.xlu0 %v1087, 32
      %v1590 = vpop.permute.xlu0 %1589
      %1591 = vrot.lane.b32.xlu0 %v1088, 32
      %v1592 = vpop.permute.xlu0 %1591
      %1593 = vrot.lane.b32.xlu0 %v1326, 32
      %v1594 = vpop.permute.xlu0 %1593
      %1595 = vrot.lane.b32.xlu0 %v1564, 32
      %v1596 = vpop.permute.xlu0 %1595
      %vm1613 = vcmask 294144
      %1614 = vst.msk [vmem:[#allocation2] sm:$0xff] %vm1613, %v1566
      %1615 = vst.msk [vmem:[#allocation2 + $0x8] sm:$0xff] %vm1613, %v1568
      %1616 = vst.msk [vmem:[#allocation2 + $0x10] sm:$0xff] %vm1613, %v1570
      %1617 = vst.msk [vmem:[#allocation2 + $0x18] sm:$0xff] %vm1613, %v1572
      %1618 = vst.msk [vmem:[#allocation2 + $0x20] sm:$0xff] %vm1613, %v1574
      %1619 = vst.msk [vmem:[#allocation2 + $0x28] sm:$0xff] %vm1613, %v1576
      %1620 = vst.msk [vmem:[#allocation2 + $0x30] sm:$0xff] %vm1613, %v1578
      %1621 = vst.msk [vmem:[#allocation2 + $0x38] sm:$0xff] %vm1613, %v1580
      %1622 = vst.msk [vmem:[#allocation2 + $0x40] sm:$0xff] %vm1613, %v1582
      %1623 = vst.msk [vmem:[#allocation2 + $0x48] sm:$0xff] %vm1613, %v1584
      %1624 = vst.msk [vmem:[#allocation2 + $0x50] sm:$0xff] %vm1613, %v1586
      %1625 = vst.msk [vmem:[#allocation2 + $0x58] sm:$0xff] %vm1613, %v1588
      %1626 = vst.msk [vmem:[#allocation2 + $0x60] sm:$0xff] %vm1613, %v1590
      %1627 = vst.msk [vmem:[#allocation2 + $0x68] sm:$0xff] %vm1613, %v1592
      %1628 = vst.msk [vmem:[#allocation2 + $0x70] sm:$0xff] %vm1613, %v1594
      %1629 = vst.msk [vmem:[#allocation2 + $0x78] sm:$0xff] %vm1613, %v1596
      %v1630 = vld [vmem:[#allocation2] sm:$0xff]
      %v1631 = vld [vmem:[#allocation2 + $0x8] sm:$0xff]
      %v1632 = vld [vmem:[#allocation2 + $0x10] sm:$0xff]
      %v1633 = vld [vmem:[#allocation2 + $0x18] sm:$0xff]
      %v1634 = vld [vmem:[#allocation2 + $0x20] sm:$0xff]
      %v1635 = vld [vmem:[#allocation2 + $0x28] sm:$0xff]
      %v1636 = vld [vmem:[#allocation2 + $0x30] sm:$0xff]
      %v1637 = vld [vmem:[#allocation2 + $0x38] sm:$0xff]
      %v1638 = vld [vmem:[#allocation2 + $0x40] sm:$0xff]
      %v1639 = vld [vmem:[#allocation2 + $0x48] sm:$0xff]
      %v1640 = vld [vmem:[#allocation2 + $0x50] sm:$0xff]
      %v1641 = vld [vmem:[#allocation2 + $0x58] sm:$0xff]
      %v1642 = vld [vmem:[#allocation2 + $0x60] sm:$0xff]
      %v1643 = vld [vmem:[#allocation2 + $0x68] sm:$0xff]
      %v1644 = vld [vmem:[#allocation2 + $0x70] sm:$0xff]
      %v1645 = vld [vmem:[#allocation2 + $0x78] sm:$0xff]
      %v1646 = vld [vmem:[%s1] sm:$0xf]
      %v1647 = vld [vmem:[%s1 + $0x4] sm:$0xf]
      %v1648 = vld [vmem:[%s1 + $0x8] sm:$0xf]
      %v1649 = vld [vmem:[%s1 + $0xc] sm:$0xf]
      %v1650 = vld [vmem:[%s1 + $0x10] sm:$0x3]
      %v1651 = vld [vmem:[%s2] sm:$0x1]
      %v1653 = vlaneseq
      %v1654 = vshrl.u32 %v1653, 7
      %v1655 = vsub.s32 0, %v1654
      %v1656 = vrot.slane %v1651, %v1655
      %v1663 = vunpack.c.l.b16 %v1646
      %v1664 = vunpack.c.l.b16 %v1647
      %v1665 = vunpack.c.l.b16 %v1648
      %v1666 = vunpack.c.l.b16 %v1649
      %v1667 = vunpack.c.l.b16 %v1650
      %v1668 = vpack.c.b16 %v1664, %v1663
      %v1669 = vpack.c.b16 %v1666, %v1665
      %v1670 = vpack.c.b16 %v1667, %v1667
      %vm1673 = vcmask 293888
      %v1675 = vsel %vm1673, %v1630, 0
      %v1678 = vsel %vm1673, %v1631, 0
      %v1681 = vsel %vm1673, %v1632, 0
      %v1684 = vsel %vm1673, %v1633, 0
      %v1687 = vsel %vm1673, %v1634, 0
      %v1690 = vsel %vm1673, %v1635, 0
      %v1693 = vsel %vm1673, %v1636, 0
      %v1696 = vsel %vm1673, %v1637, 0
      %v1699 = vsel %vm1673, %v1638, 0
      %v1702 = vsel %vm1673, %v1639, 0
      %v1705 = vsel %vm1673, %v1640, 0
      %v1708 = vsel %vm1673, %v1641, 0
      %v1711 = vsel %vm1673, %v1642, 0
      %v1714 = vsel %vm1673, %v1643, 0
      %v1717 = vsel %vm1673, %v1644, 0
      %v1720 = vsel %vm1673, %v1645, 0
      %vm1722 = vcmask 1041408
      %v1724 = vsel %vm1722, %v1670, 0
      %1726 = vmatprep.subr.bf16.mxu0 0
      %1727 = vmatpush1.bf16.msra.mxu0 %v1668
      %1728 = vmatprep.subr.bf16.mxu0 0
      %1729 = vmatpush1.bf16.msra.mxu0 %v1669
      %1730 = vmatprep.subr.bf16.mxu0 0
      %1731 = vmatpush1.bf16.msra.mxu0 %v1724
      %1732 = vmatprep.subr.bf16.mxu0 0
      %1733 = vmatpush1.bf16.msra.mxu0 0
      %1734 = vmatprep.subr.bf16.mxu0 0
      %1735 = vmatpush1.bf16.msra.mxu0 0
      %1736 = vmatprep.subr.bf16.mxu0 0
      %1737 = vmatpush1.bf16.msra.mxu0 0
      %1738 = vmatprep.subr.bf16.mxu0 0
      %1739 = vmatpush1.bf16.msra.mxu0 0
      %1740 = vmatprep.subr.bf16.mxu0 0
      %1741 = vmatpush1.bf16.msra.mxu0 0
      %1742 = vmatprep.subr.bf16.mxu0 0
      %1743 = vmatpush1.bf16.msra.mxu0 0
      %1744 = vmatprep.subr.bf16.mxu0 0
      %1745 = vmatpush1.bf16.msra.mxu0 0
      %1746 = vmatprep.subr.bf16.mxu0 0
      %1747 = vmatpush1.bf16.msra.mxu0 0
      %1748 = vmatprep.subr.bf16.mxu0 0
      %1749 = vmatpush1.bf16.msra.mxu0 0
      %1750 = vmatprep.subr.bf16.mxu0 0
      %1751 = vmatpush1.bf16.msra.mxu0 0
      %1752 = vmatprep.subr.bf16.mxu0 0
      %1753 = vmatpush1.bf16.msra.mxu0 0
      %1754 = vmatprep.subr.bf16.mxu0 0
      %1755 = vmatpush1.bf16.msra.mxu0 0
      %1756 = vmatprep.subr.bf16.mxu0 0
      %1757 = vmatpush1.bf16.msra.mxu0 0
      %1758 = vmatprep.mubr.bf16.mxu0 0
      %1759 = vmatmul.mubr.bf16.gmra.mrb[0].mxu0 %v1675
      %v1760 = vpop.f32.mrb[0].mxu0
      %v1761 = vadd.f32 %v1656, %v1760
      %v1762 = vpop.f32.mrb[0].mxu0
      %v1763 = vpop.f32.mrb[0].mxu0
      %v1764 = vadd.f32 %v1656, %v1763
      %v1765 = vpop.f32.mrb[0].mxu0
      %1766 = vmatprep.mubr.bf16.mxu0 0
      %1767 = vmatmul.mubr.bf16.gmra.mrb[0].mxu0 %v1678
      %v1768 = vpop.f32.mrb[0].mxu0
      %v1769 = vadd.f32 %v1656, %v1768
      %v1770 = vpop.f32.mrb[0].mxu0
      %v1771 = vpop.f32.mrb[0].mxu0
      %v1772 = vadd.f32 %v1656, %v1771
      %v1773 = vpop.f32.mrb[0].mxu0
      %1774 = vmatprep.mubr.bf16.mxu0 0
      %1775 = vmatmul.mubr.bf16.gmra.mrb[0].mxu0 %v1681
      %v1776 = vpop.f32.mrb[0].mxu0
      %v1777 = vadd.f32 %v1656, %v1776
      %v1778 = vpop.f32.mrb[0].mxu0
      %v1779 = vpop.f32.mrb[0].mxu0
      %v1780 = vadd.f32 %v1656, %v1779
      %v1781 = vpop.f32.mrb[0].mxu0
      %1782 = vmatprep.mubr.bf16.mxu0 0
      %1783 = vmatmul.mubr.bf16.gmra.mrb[0].mxu0 %v1684
      %v1784 = vpop.f32.mrb[0].mxu0
      %v1785 = vadd.f32 %v1656, %v1784
      %v1786 = vpop.f32.mrb[0].mxu0
      %v1787 = vpop.f32.mrb[0].mxu0
      %v1788 = vadd.f32 %v1656, %v1787
      %v1789 = vpop.f32.mrb[0].mxu0
      %1790 = vmatprep.mubr.bf16.mxu0 0
      %1791 = vmatmul.mubr.bf16.gmra.mrb[0].mxu0 %v1687
      %v1792 = vpop.f32.mrb[0].mxu0
      %v1793 = vadd.f32 %v1656, %v1792
      %v1794 = vpop.f32.mrb[0].mxu0
      %v1795 = vpop.f32.mrb[0].mxu0
      %v1796 = vadd.f32 %v1656, %v1795
      %v1797 = vpop.f32.mrb[0].mxu0
      %1798 = vmatprep.mubr.bf16.mxu0 0
      %1799 = vmatmul.mubr.bf16.gmra.mrb[0].mxu0 %v1690
      %v1800 = vpop.f32.mrb[0].mxu0
      %v1801 = vadd.f32 %v1656, %v1800
      %v1802 = vpop.f32.mrb[0].mxu0
      %v1803 = vpop.f32.mrb[0].mxu0
      %v1804 = vadd.f32 %v1656, %v1803
      %v1805 = vpop.f32.mrb[0].mxu0
      %1806 = vmatprep.mubr.bf16.mxu0 0
      %1807 = vmatmul.mubr.bf16.gmra.mrb[0].mxu0 %v1693
      %v1808 = vpop.f32.mrb[0].mxu0
      %v1809 = vadd.f32 %v1656, %v1808
      %v1810 = vpop.f32.mrb[0].mxu0
      %v1811 = vpop.f32.mrb[0].mxu0
      %v1812 = vadd.f32 %v1656, %v1811
      %v1813 = vpop.f32.mrb[0].mxu0
      %1814 = vmatprep.mubr.bf16.mxu0 0
      %1815 = vmatmul.mubr.bf16.gmra.mrb[0].mxu0 %v1696
      %v1816 = vpop.f32.mrb[0].mxu0
      %v1817 = vadd.f32 %v1656, %v1816
      %v1818 = vpop.f32.mrb[0].mxu0
      %v1819 = vpop.f32.mrb[0].mxu0
      %v1820 = vadd.f32 %v1656, %v1819
      %v1821 = vpop.f32.mrb[0].mxu0
      %1822 = vmatprep.mubr.bf16.mxu0 0
      %1823 = vmatmul.mubr.bf16.gmra.mrb[0].mxu0 %v1699
      %v1824 = vpop.f32.mrb[0].mxu0
      %v1825 = vadd.f32 %v1656, %v1824
      %v1826 = vpop.f32.mrb[0].mxu0
      %v1827 = vpop.f32.mrb[0].mxu0
      %v1828 = vadd.f32 %v1656, %v1827
      %v1829 = vpop.f32.mrb[0].mxu0
      %1830 = vmatprep.mubr.bf16.mxu0 0
      %1831 = vmatmul.mubr.bf16.gmra.mrb[0].mxu0 %v1702
      %v1832 = vpop.f32.mrb[0].mxu0
      %v1833 = vadd.f32 %v1656, %v1832
      %v1834 = vpop.f32.mrb[0].mxu0
      %v1835 = vpop.f32.mrb[0].mxu0
      %v1836 = vadd.f32 %v1656, %v1835
      %v1837 = vpop.f32.mrb[0].mxu0
      %1838 = vmatprep.mubr.bf16.mxu0 0
      %1839 = vmatmul.mubr.bf16.gmra.mrb[0].mxu0 %v1705
      %v1840 = vpop.f32.mrb[0].mxu0
      %v1841 = vadd.f32 %v1656, %v1840
      %v1842 = vpop.f32.mrb[0].mxu0
      %v1843 = vpop.f32.mrb[0].mxu0
      %v1844 = vadd.f32 %v1656, %v1843
      %v1845 = vpop.f32.mrb[0].mxu0
      %1846 = vmatprep.mubr.bf16.mxu0 0
      %1847 = vmatmul.mubr.bf16.gmra.mrb[0].mxu0 %v1708
      %v1848 = vpop.f32.mrb[0].mxu0
      %v1849 = vadd.f32 %v1656, %v1848
      %v1850 = vpop.f32.mrb[0].mxu0
      %v1851 = vpop.f32.mrb[0].mxu0
      %v1852 = vadd.f32 %v1656, %v1851
      %v1853 = vpop.f32.mrb[0].mxu0
      %1854 = vmatprep.mubr.bf16.mxu0 0
      %1855 = vmatmul.mubr.bf16.gmra.mrb[0].mxu0 %v1711
      %v1856 = vpop.f32.mrb[0].mxu0
      %v1857 = vadd.f32 %v1656, %v1856
      %v1858 = vpop.f32.mrb[0].mxu0
      %v1859 = vpop.f32.mrb[0].mxu0
      %v1860 = vadd.f32 %v1656, %v1859
      %v1861 = vpop.f32.mrb[0].mxu0
      %1862 = vmatprep.mubr.bf16.mxu0 0
      %1863 = vmatmul.mubr.bf16.gmra.mrb[0].mxu0 %v1714
      %v1864 = vpop.f32.mrb[0].mxu0
      %v1865 = vadd.f32 %v1656, %v1864
      %v1866 = vpop.f32.mrb[0].mxu0
      %v1867 = vpop.f32.mrb[0].mxu0
      %v1868 = vadd.f32 %v1656, %v1867
      %v1869 = vpop.f32.mrb[0].mxu0
      %1870 = vmatprep.mubr.bf16.mxu0 0
      %1871 = vmatmul.mubr.bf16.gmra.mrb[0].mxu0 %v1717
      %v1872 = vpop.f32.mrb[0].mxu0
      %v1873 = vadd.f32 %v1656, %v1872
      %v1874 = vpop.f32.mrb[0].mxu0
      %v1875 = vpop.f32.mrb[0].mxu0
      %v1876 = vadd.f32 %v1656, %v1875
      %v1877 = vpop.f32.mrb[0].mxu0
      %1878 = vmatprep.mubr.bf16.mxu0 0
      %1879 = vmatmul.mubr.bf16.gmra.mrb[0].mxu0 %v1720
      %v1880 = vpop.f32.mrb[0].mxu0
      %v1881 = vadd.f32 %v1656, %v1880
      %v1882 = vpop.f32.mrb[0].mxu0
      %v1883 = vpop.f32.mrb[0].mxu0
      %v1884 = vadd.f32 %v1656, %v1883
      %v1885 = vpop.f32.mrb[0].mxu0
      %1886 = vdwg.mxu0
      %1887 = vst [vmem:[%s235] sm:$0xff] %v1761
      %1888 = vst [vmem:[%s235 + $0x8] sm:$0xff] %v1764
      %1889 = vst [vmem:[%s235 + $0x10] sm:$0xff] %v1769
      %1890 = vst [vmem:[%s235 + $0x18] sm:$0xff] %v1772
      %1891 = vst [vmem:[%s235 + $0x20] sm:$0xff] %v1777
      %1892 = vst [vmem:[%s235 + $0x28] sm:$0xff] %v1780
      %1893 = vst [vmem:[%s235 + $0x30] sm:$0xff] %v1785
      %1894 = vst [vmem:[%s235 + $0x38] sm:$0xff] %v1788
      %1895 = vst [vmem:[%s235 + $0x40] sm:$0xff] %v1793
      %1896 = vst [vmem:[%s235 + $0x48] sm:$0xff] %v1796
      %1897 = vst [vmem:[%s235 + $0x50] sm:$0xff] %v1801
      %1898 = vst [vmem:[%s235 + $0x58] sm:$0xff] %v1804
      %1899 = vst [vmem:[%s235 + $0x60] sm:$0xff] %v1809
      %1900 = vst [vmem:[%s235 + $0x68] sm:$0xff] %v1812
      %1901 = vst [vmem:[%s235 + $0x70] sm:$0xff] %v1817
      %1902 = vst [vmem:[%s235 + $0x78] sm:$0xff] %v1820
      %1903 = vst [vmem:[%s235 + $0x80] sm:$0xff] %v1825
      %1904 = vst [vmem:[%s235 + $0x88] sm:$0xff] %v1828
      %1905 = vst [vmem:[%s235 + $0x90] sm:$0xff] %v1833
      %1906 = vst [vmem:[%s235 + $0x98] sm:$0xff] %v1836
      %1907 = vst [vmem:[%s235 + $0xa0] sm:$0xff] %v1841
      %1908 = vst [vmem:[%s235 + $0xa8] sm:$0xff] %v1844
      %1909 = vst [vmem:[%s235 + $0xb0] sm:$0xff] %v1849
      %1910 = vst [vmem:[%s235 + $0xb8] sm:$0xff] %v1852
      %1911 = vst [vmem:[%s235 + $0xc0] sm:$0xff] %v1857
      %1912 = vst [vmem:[%s235 + $0xc8] sm:$0xff] %v1860
      %1913 = vst [vmem:[%s235 + $0xd0] sm:$0xff] %v1865
      %1914 = vst [vmem:[%s235 + $0xd8] sm:$0xff] %v1868
      %1915 = vst [vmem:[%s235 + $0xe0] sm:$0xff] %v1873
      %1916 = vst [vmem:[%s235 + $0xe8] sm:$0xff] %v1876
      %1917 = vst [vmem:[%s235 + $0xf0] sm:$0xff] %v1881
      %1918 = vst [vmem:[%s235 + $0xf8] sm:$0xff] %v1884
      %v1919 = vadd.f32 %v1761, %v1764
      %v1920 = vadd.f32 %v1919, %v1769
      %v1921 = vadd.f32 %v1920, %v1772
      %v1922 = vadd.f32 %v1921, %v1777
      %v1923 = vadd.f32 %v1922, %v1780
      %v1924 = vadd.f32 %v1923, %v1785
      %v1925 = vadd.f32 %v1924, %v1788
      %v1926 = vadd.f32 %v1925, %v1793
      %v1927 = vadd.f32 %v1926, %v1796
      %v1928 = vadd.f32 %v1927, %v1801
      %v1929 = vadd.f32 %v1928, %v1804
      %v1930 = vadd.f32 %v1929, %v1809
      %v1931 = vadd.f32 %v1930, %v1812
      %v1932 = vadd.f32 %v1931, %v1817
      %v1933 = vadd.f32 %v1932, %v1820
      %v1934 = vadd.f32 %v1933, %v1825
      %v1935 = vadd.f32 %v1934, %v1828
      %v1936 = vadd.f32 %v1935, %v1833
      %v1937 = vadd.f32 %v1936, %v1836
      %v1938 = vadd.f32 %v1937, %v1841
      %v1939 = vadd.f32 %v1938, %v1844
      %v1940 = vadd.f32 %v1939, %v1849
      %v1941 = vadd.f32 %v1940, %v1852
      %v1942 = vadd.f32 %v1941, %v1857
      %v1943 = vadd.f32 %v1942, %v1860
      %v1944 = vadd.f32 %v1943, %v1865
      %v1945 = vadd.f32 %v1944, %v1868
      %v1946 = vadd.f32 %v1945, %v1873
      %v1947 = vadd.f32 %v1946, %v1876
      %v1948 = vadd.f32 %v1947, %v1881
      %v1949 = vadd.f32 %v1948, %v1884
      %v1950 = vrot.slane %v1949, 4
      %v1951 = vadd.f32 %v1949, %v1950
      %v1952 = vrot.slane %v1951, 2
      %v1953 = vadd.f32 %v1951, %v1952
      %v1954 = vrot.slane %v1953, 1
      %v1955 = vadd.f32 %v1953, %v1954
      %1956 = vst [vmem:[%s238] sm:$0x1] %v1955
      %v1957 = vmul.f32 %v1761, %v1761
      %v1958 = vmul.f32 %v1764, %v1764
      %v1959 = vmul.f32 %v1769, %v1769
      %v1960 = vmul.f32 %v1772, %v1772
      %v1961 = vmul.f32 %v1777, %v1777
      %v1962 = vmul.f32 %v1780, %v1780
      %v1963 = vmul.f32 %v1785, %v1785
      %v1964 = vmul.f32 %v1788, %v1788
      %v1965 = vmul.f32 %v1793, %v1793
      %v1966 = vmul.f32 %v1796, %v1796
      %v1967 = vmul.f32 %v1801, %v1801
      %v1968 = vmul.f32 %v1804, %v1804
      %v1969 = vmul.f32 %v1809, %v1809
      %v1970 = vmul.f32 %v1812, %v1812
      %v1971 = vmul.f32 %v1817, %v1817
      %v1972 = vmul.f32 %v1820, %v1820
      %v1973 = vmul.f32 %v1825, %v1825
      %v1974 = vmul.f32 %v1828, %v1828
      %v1975 = vmul.f32 %v1833, %v1833
      %v1976 = vmul.f32 %v1836, %v1836
      %v1977 = vmul.f32 %v1841, %v1841
      %v1978 = vmul.f32 %v1844, %v1844
      %v1979 = vmul.f32 %v1849, %v1849
      %v1980 = vmul.f32 %v1852, %v1852
      %v1981 = vmul.f32 %v1857, %v1857
      %v1982 = vmul.f32 %v1860, %v1860
      %v1983 = vmul.f32 %v1865, %v1865
      %v1984 = vmul.f32 %v1868, %v1868
      %v1985 = vmul.f32 %v1873, %v1873
      %v1986 = vmul.f32 %v1876, %v1876
      %v1987 = vmul.f32 %v1881, %v1881
      %v1988 = vmul.f32 %v1884, %v1884
      %v1989 = vadd.f32 %v1957, %v1958
      %v1990 = vadd.f32 %v1989, %v1959
      %v1991 = vadd.f32 %v1990, %v1960
      %v1992 = vadd.f32 %v1991, %v1961
      %v1993 = vadd.f32 %v1992, %v1962
      %v1994 = vadd.f32 %v1993, %v1963
      %v1995 = vadd.f32 %v1994, %v1964
      %v1996 = vadd.f32 %v1995, %v1965
      %v1997 = vadd.f32 %v1996, %v1966
      %v1998 = vadd.f32 %v1997, %v1967
      %v1999 = vadd.f32 %v1998, %v1968
      %v2000 = vadd.f32 %v1999, %v1969
      %v2001 = vadd.f32 %v2000, %v1970
      %v2002 = vadd.f32 %v2001, %v1971
      %v2003 = vadd.f32 %v2002, %v1972
      %v2004 = vadd.f32 %v2003, %v1973
      %v2005 = vadd.f32 %v2004, %v1974
      %v2006 = vadd.f32 %v2005, %v1975
      %v2007 = vadd.f32 %v2006, %v1976
      %v2008 = vadd.f32 %v2007, %v1977
      %v2009 = vadd.f32 %v2008, %v1978
      %v2010 = vadd.f32 %v2009, %v1979
      %v2011 = vadd.f32 %v2010, %v1980
      %v2012 = vadd.f32 %v2011, %v1981
      %v2013 = vadd.f32 %v2012, %v1982
      %v2014 = vadd.f32 %v2013, %v1983
      %v2015 = vadd.f32 %v2014, %v1984
      %v2016 = vadd.f32 %v2015, %v1985
      %v2017 = vadd.f32 %v2016, %v1986
      %v2018 = vadd.f32 %v2017, %v1987
      %v2019 = vadd.f32 %v2018, %v1988
      %v2020 = vrot.slane %v2019, 4
      %v2021 = vadd.f32 %v2019, %v2020
      %v2022 = vrot.slane %v2021, 2
      %v2023 = vadd.f32 %v2021, %v2022
      %v2024 = vrot.slane %v2023, 1
      %v2025 = vadd.f32 %v2023, %v2024
      %2026 = vst [vmem:[%s241] sm:$0x1] %v2025
      %p2027 = scmp.lt.s32.totalorder %s17, 1
      %s2028 = scalar_select %p2027, %s17, 1
      %s2029 = smul.addr %s2028, 32
      %s2030 = smul.addr %s2029, 8
      %s2031 = scalar_lea.vmem %s3, %s2030
      %p2032 = scmp.lt.s32.totalorder %s17, 1
      %s2033 = scalar_select %p2032, %s17, 1
      %s2034 = scalar_lea.vmem %s4, %s2033
      %p2035 = scmp.lt.s32.totalorder %s17, 1
      %s2036 = scalar_select %p2035, %s17, 1
      %s2037 = scalar_lea.vmem %s5, %s2036
      // Predicated region
      $region33: #{upconv_forward.8} parent=31 // pred_check
        %p2038 = pneg %p103
      $region34: #{upconv_forward.8} parent=31 // pred_check_branch
        %2040 = sbr.rel (%p2038) target = $region36
      $region35: #{upconv_forward.8} parent=31 // pred_region
        _
      $region36: #{upconv_forward.8} parent=31 // pred_fallthru
        _
      // Predicated region
      $region37: #{upconv_forward.8} parent=31 // pred_check
        %p2041 = pneg %p129
      $region38: #{upconv_forward.8} parent=31 // pred_check_branch
        %2043 = sbr.rel (%p2041) target = $region40
      $region39: #{upconv_forward.8} parent=31 // pred_region
        _
      $region40: #{upconv_forward.8} parent=31 // pred_fallthru
        _
      // Predicated region
      $region41: #{upconv_forward.8} parent=31 // pred_check
        %p2044 = pneg %p155
      $region42: #{upconv_forward.8} parent=31 // pred_check_branch
        %2046 = sbr.rel (%p2044) target = $region44
      $region43: #{upconv_forward.8} parent=31 // pred_region
        _
      $region44: #{upconv_forward.8} parent=31 // pred_fallthru
        _
    $region32: #{upconv_forward.8} parent=5 // pred_fallthru
      _
    %p2047 = scmp.le.s32.totalorder 2, %s12
    // Predicated region
    $region45: #{upconv_forward.8} parent=5 // pred_check
      %p2048 = pneg %p2047
    $region46: #{upconv_forward.8} parent=5 // pred_check_branch
      %2050 = sbr.rel (%p2048) target = $region48
    $region47: #{upconv_forward.8} parent=5 // pred_region
      %s2051 = ssub.s32 %s12, 2
      // Predicated region
      $region49: #{upconv_forward.8} parent=47 // pred_check
        %p2052 = pneg %p109
      $region50: #{upconv_forward.8} parent=47 // pred_check_branch
        %2054 = sbr.rel (%p2052) target = $region52
      $region51: #{upconv_forward.8} parent=47 // pred_region
        %p2055 = scmp.lt.s32.totalorder %s18, 1
        %s2056 = scalar_select %p2055, %s18, 1
        %s2057 = smul.addr %s2056, 32
        %s2058 = smul.addr %s2057, 8
        %s2059 = scalar_lea.vmem %s3, %s2058
      $region52: #{upconv_forward.8} parent=47 // pred_fallthru
        _
      // Predicated region
      $region53: #{upconv_forward.8} parent=47 // pred_check
        %p2060 = pneg %p135
      $region54: #{upconv_forward.8} parent=47 // pred_check_branch
        %2062 = sbr.rel (%p2060) target = $region56
      $region55: #{upconv_forward.8} parent=47 // pred_region
        %p2063 = scmp.lt.s32.totalorder %s18, 1
        %s2064 = scalar_select %p2063, %s18, 1
        %s2065 = scalar_lea.vmem %s4, %s2064
      $region56: #{upconv_forward.8} parent=47 // pred_fallthru
        _
      // Predicated region
      $region57: #{upconv_forward.8} parent=47 // pred_check
        %p2066 = pneg %p161
      $region58: #{upconv_forward.8} parent=47 // pred_check_branch
        %2068 = sbr.rel (%p2066) target = $region60
      $region59: #{upconv_forward.8} parent=47 // pred_region
        %p2069 = scmp.lt.s32.totalorder %s18, 1
        %s2070 = scalar_select %p2069, %s18, 1
        %s2071 = scalar_lea.vmem %s5, %s2070
      $region60: #{upconv_forward.8} parent=47 // pred_fallthru
        _
    $region48: #{upconv_forward.8} parent=5 // pred_fallthru
      _
  $region6: #{upconv_forward.8} parent=0 // loop_footer
    %s16 = sadd.s32 1, %s12
  $region7: #{upconv_forward.8} parent=0 // loop_footer_branch
    %11 = sbr.rel target = $region3
  $region8: #{upconv_forward.8} parent=0 // loop_exit
    _

</llo_original>
